<compile_context>
chip_gen: v5e
topology: v5e:2x2
jax: 0.10.0
libtpu: 0.0.40
codegen_flags: <defaults>
</compile_context>

<pallas_src>
import functools

import jax
import jax.numpy as jnp
from jax.experimental import pallas as pl
from jax.experimental.pallas import tpu as pltpu

LN_EPS = 1e-5  # nn.LayerNorm default


def _ln(x, g, b):
    mu = jnp.mean(x, axis=-1, keepdims=True)
    xc = x - mu
    var = jnp.mean(xc * xc, axis=-1, keepdims=True)
    return xc * jax.lax.rsqrt(var + LN_EPS) * g + b


# ----------------------------------------------------------------------------
# One fused kernel: 6x LayerNormalize(CMAttention) cls cross-attentions
# (kv_include_self + 3 memory tokens) with residual, then the
# Quater_Cross_Transformer block on the feature-concatenated tokens.
# `bb` batch elements are processed per grid step.
# ----------------------------------------------------------------------------
def fused_kernel(
    x_ref, x2_ref, z_ref, z2_ref,
    seg_ref, segt_ref,
    # 4 stacked CMAttention banks: [CThz.h, CThz.l, CThs.h, CThs.l]
    ln_g_ref, ln_b_ref, wq_ref, wk_ref, wv_ref, mk_ref, mv_ref, wo_ref, bo_ref,
    # Quater_Cross_Transformer params
    g1_ref, be1_ref, wqh_ref, bqh_ref, g2_ref, be2_ref,
    w1_ref, b1_ref, w2_ref, b2_ref,
    out_ref, zcls_ref,
    *, scale, bb):
    N, D = x_ref.shape[1], x_ref.shape[2]

    seg = seg_ref[...]      # (H*dh, H)  lane -> head one-hot
    seg_t = segt_ref[...]   # (H, H*dh)

    # mask selecting the cls row of an (N, D) token block (computed once)
    row0 = jax.lax.broadcasted_iota(jnp.int32, (N, D), 0) == 0

    xs = [x_ref[b] for b in range(bb)]
    x2s = [x2_ref[b] for b in range(bb)]
    zs = [z_ref[b] for b in range(bb)]
    z2s = [z2_ref[b] for b in range(bb)]
    x_cls = [t[0:1] for t in xs]
    x2_cls = [t[0:1] for t in x2s]
    z_cls = [t[0:1] for t in zs]
    z2_cls = [t[0:1] for t in z2s]

    def bank(p, items):
        """All attends of one CMAttention weight bank, batched.

        items: list of (cls_raw (1, D), kv_tokens (N, D)).  kv_tokens row 0 is
        replaced by LN(cls) (kv_include_self); rows 1: are the raw context
        patches.  Returns per-attend cls rows with the residual added.
        """
        na = len(items)
        cls_stack = jnp.concatenate([c for c, _ in items], axis=0)          # (na, D)
        xn = _ln(cls_stack, ln_g_ref[p], ln_b_ref[p])                        # LN on x only
        q_all = jnp.dot(xn, wq_ref[p], preferred_element_type=jnp.float32)   # (na, H*dh)
        # kv input: full token block with the cls row swapped for LN(cls)
        kv_in = jnp.concatenate(
            [jnp.where(row0, xn[i:i + 1], items[i][1]) for i in range(na)],
            axis=0)                                                          # (na*N, D)
        k_all = jnp.dot(kv_in, wk_ref[p], preferred_element_type=jnp.float32)
        v_all = jnp.dot(kv_in, wv_ref[p], preferred_element_type=jnp.float32)
        mk, mv = mk_ref[p], mv_ref[p]                                        # (3, H*dh)

        outs = []
        for i in range(na):
            k_i = jnp.concatenate([k_all[i * N:(i + 1) * N], mk], axis=0)    # (N+3, H*dh)
            v_i = jnp.concatenate([v_all[i * N:(i + 1) * N], mv], axis=0)
            q_i = q_all[i:i + 1]                                             # (1, H*dh)
            # per-head scores: s[j, h] = q_h . k_{j,h}
            s = jnp.dot(k_i * q_i, seg, preferred_element_type=jnp.float32) * scale
            m = jnp.max(s, axis=0, keepdims=True)
            e = jnp.exp(s - m)
            attn = e * pl.reciprocal(jnp.sum(e, axis=0, keepdims=True), approx=True)
            a_full = jnp.dot(attn, seg_t, preferred_element_type=jnp.float32)  # (N+3, H*dh)
            outs.append(jnp.sum(a_full * v_i, axis=0, keepdims=True))        # (1, H*dh)
        o_stack = jnp.concatenate(outs, axis=0)                              # (na, H*dh)
        proj = jnp.dot(o_stack, wo_ref[p], preferred_element_type=jnp.float32) + bo_ref[p]
        # residual with the raw (pre-LN) cls token, outside LayerNormalize
        return [cls_stack[i:i + 1] + proj[i:i + 1] for i in range(na)]

    # bank 0 (CThz, h attends l-patches): x_cls <- z patches, x2_cls <- z2 patches
    r0 = bank(0, [(x_cls[b], zs[b]) for b in range(bb)]
                 + [(x2_cls[b], z2s[b]) for b in range(bb)])
    cls_xz, cls_x2z = r0[:bb], r0[bb:]
    # bank 1 (CThz, l attends h-patches): z_cls <- x patches, z2_cls <- x2 patches
    r1 = bank(1, [(z_cls[b], xs[b]) for b in range(bb)]
                 + [(z2_cls[b], x2s[b]) for b in range(bb)])
    cls_z, cls_z2 = r1[:bb], r1[bb:]
    # bank 2 (CThs, h attends l-patches): x_cls <- x2 patches
    cls_xx2 = bank(2, [(x_cls[b], x2s[b]) for b in range(bb)])
    # bank 3 (CThs, l attends h-patches): x2_cls <- x patches
    cls_x2x = bank(3, [(x2_cls[b], xs[b]) for b in range(bb)])

    # only the updated z / z2 cls rows are written back (patch rows unchanged)
    for b in range(bb):
        zcls_ref[b] = jnp.concatenate([cls_z[b], cls_z2[b]], axis=0)

    # Quater_Cross_Transformer on concat([xz, x2z, xx2, x2x], features)
    slot0 = jnp.concatenate([jnp.where(row0, cls_xz[b], xs[b]) for b in range(bb)], axis=0)
    slot1 = jnp.concatenate([jnp.where(row0, cls_x2z[b], x2s[b]) for b in range(bb)], axis=0)
    slot2 = jnp.concatenate([jnp.where(row0, cls_xx2[b], xs[b]) for b in range(bb)], axis=0)
    slot3 = jnp.concatenate([jnp.where(row0, cls_x2x[b], x2s[b]) for b in range(bb)], axis=0)
    t = jnp.concatenate([slot0, slot1, slot2, slot3], axis=-1)               # (bb*N, 4D)

    u = _ln(t, g1_ref[...], be1_ref[...])
    t1 = jnp.dot(u, wqh_ref[...], preferred_element_type=jnp.float32) + bqh_ref[...] + t
    y = _ln(t1, g2_ref[...], be2_ref[...])
    hid = jnp.dot(y, w1_ref[...], preferred_element_type=jnp.float32) + b1_ref[...]
    # TODO(synk): FeedForward is not defined in the source file; assuming the
    # standard ViT FF (Linear -> GELU -> Linear); tanh-approx GELU used here
    # (PyTorch nn.GELU default is the exact erf form).
    hid = jax.nn.gelu(hid, approximate=True)
    t2 = jnp.dot(hid, w2_ref[...], preferred_element_type=jnp.float32) + b2_ref[...] + t1
    for b in range(bb):
        out_ref[b] = t2[b * N:(b + 1) * N]


def _batch_fold(batch):
    """Batch elements per grid step.

    v5e / v6e have a single TensorCore, so a (B,) grid is just a serial loop
    with per-step overhead -> fold the whole batch into one step (fuller
    matmuls).  On multi-TensorCore chips (v7x) keep one batch element per step
    so the "parallel" grid axis shards across cores.
    """
    try:
        kind = jax.devices()[0].device_kind.lower()
    except Exception:
        return 1
    single_tc = any(tag in kind for tag in
                    ("v5 lite", "v5lite", "v5e", "v6 lite", "v6lite", "v6e"))
    return batch if single_tc else 1


def attention_3_branches(params, x, x2, z, z2):
    B, N, D = x.shape
    cp, qp = params["cls"], params["out"]
    heads, dim_head = params["heads"], params["dim_head"]
    hd, d4 = heads * dim_head, 4 * D
    scale = float(dim_head) ** (-0.5)

    # host-precomputed one-hot head-membership matrices
    lane = jnp.arange(hd, dtype=jnp.int32)[:, None]
    head = jnp.arange(heads, dtype=jnp.int32)[None, :]
    seg = (lane // dim_head == head).astype(jnp.float32)      # (H*dh, H)
    seg_t = jnp.transpose(seg)                                 # (H, H*dh)

    bb = _batch_fold(B)
    grid = (B // bb,)

    kernel = functools.partial(fused_kernel, scale=scale, bb=bb)

    def const_spec(arr):
        nd = arr.ndim
        return pl.BlockSpec(arr.shape, lambda i, _nd=nd: (0,) * _nd)

    tok_spec = pl.BlockSpec((bb, N, D), lambda i: (i, 0, 0))

    cls_order = ["ln_g", "ln_b", "Wq", "Wk", "Wv", "mk", "mv", "Wo", "bo"]
    q_order = ["g1", "be1", "wq", "bq", "g2", "be2", "w1", "b1", "w2", "b2"]
    cls_args = [cp[k] for k in cls_order]
    q_args = [qp[k] for k in q_order]
    const_args = [seg, seg_t] + cls_args + q_args

    out, zcls = pl.pallas_call(
        kernel,
        out_shape=(jax.ShapeDtypeStruct((B, N, d4), jnp.float32),
                   jax.ShapeDtypeStruct((B, 2, D), jnp.float32)),
        grid_spec=pltpu.PrefetchScalarGridSpec(
            num_scalar_prefetch=0,
            grid=grid,
            in_specs=[tok_spec] * 4 + [const_spec(a) for a in const_args],
            out_specs=(pl.BlockSpec((bb, N, d4), lambda i: (i, 0, 0)),
                       pl.BlockSpec((bb, 2, D), lambda i: (i, 0, 0))),
        ),
        compiler_params=pltpu.CompilerParams(
            dimension_semantics=("parallel",)),   # batch across TCs on v7x
    )(x, x2, z, z2, *const_args)

    # re-attach the untouched patch rows of z / z2 outside the kernel
    z_out = z.at[:, 0:1, :].set(zcls[:, 0:1, :])
    z2_out = z2.at[:, 0:1, :].set(zcls[:, 1:2, :])
    return out, z_out, z2_out


# ----------------------------------------------------------------------------
# Parameter construction (deterministic, synthetic)
# ----------------------------------------------------------------------------
def _init_cm_branch(key, dim, heads, dim_head):
    """One LayerNormalize(CMAttention) branch, preprocessed for the fused kernel."""
    inner = heads * dim_head
    ks = jax.random.split(key, 6)
    std = (2.0 / (dim + inner)) ** 0.5
    wq = jax.random.normal(ks[0], (dim, inner), jnp.float32) * std
    wkv = jax.random.normal(ks[1], (dim, 2 * inner), jnp.float32) * std
    wo = jax.random.normal(ks[2], (inner, dim), jnp.float32) * std
    bo = jax.random.normal(ks[3], (dim,), jnp.float32) * 0.02
    std_m = (2.0 / (3 * inner + inner)) ** 0.5   # xavier_normal-like for (1,3,inner)
    mk = jax.random.normal(ks[4], (1, 3, inner), jnp.float32) * std_m
    mv = jax.random.normal(ks[5], (1, 3, inner), jnp.float32) * std_m

    # PyTorch: sqrt(dim_head) * m_k.expand(b,3,inner).view(b, heads, 3, dim_head)
    #   -> contiguous (3, inner) block reinterpreted row-major as (heads, 3, dh),
    # then laid out for the fused-head kernel with head blocks along lanes: (3, inner).
    mk_hd = (jnp.sqrt(float(dim_head)) * mk).reshape(heads, 3, dim_head)
    mv_hd = (jnp.sqrt(3.0) * mv).reshape(heads, 3, dim_head)
    mk_k = jnp.transpose(mk_hd, (1, 0, 2)).reshape(3, inner)
    mv_k = jnp.transpose(mv_hd, (1, 0, 2)).reshape(3, inner)
    return dict(ln_g=jnp.ones((1, dim), jnp.float32),
                ln_b=jnp.zeros((1, dim), jnp.float32),
                Wq=wq, Wk=wkv[:, :inner], Wv=wkv[:, inner:],
                mk=mk_k, mv=mv_k, Wo=wo, bo=bo.reshape(1, dim))


def init_quater(key, h_dim):
    d4, d8, q = 4 * h_dim, 8 * h_dim, h_dim
    ks = jax.random.split(key, 9)
    s = 1.0 / (q ** 0.5)
    r = jax.random.normal(ks[0], (q, q), jnp.float32) * s
    i = jax.random.normal(ks[1], (q, q), jnp.float32) * s
    j = jax.random.normal(ks[2], (q, q), jnp.float32) * s
    k = jax.random.normal(ks[3], (q, q), jnp.float32) * s
    # TODO(synk): QuaternionLinear is not defined in the source file; assuming the
    # standard Hamilton-product quaternion linear layout (input @ W + bias).
    row_r = jnp.concatenate([r, -i, -j, -k], axis=0)
    row_i = jnp.concatenate([i, r, -k, j], axis=0)
    row_j = jnp.concatenate([j, k, r, -i], axis=0)
    row_k = jnp.concatenate([k, -j, i, r], axis=0)
    wq = jnp.concatenate([row_r, row_i, row_j, row_k], axis=1)            # (4D, 4D)
    return dict(
        g1=jnp.ones((1, d4), jnp.float32), be1=jnp.zeros((1, d4), jnp.float32),
        wq=wq, bq=(jax.random.normal(ks[4], (1, d4), jnp.float32) * 0.02),
        g2=jnp.ones((1, d4), jnp.float32), be2=jnp.zeros((1, d4), jnp.float32),
        w1=jax.random.normal(ks[5], (d4, d8), jnp.float32) * (2.0 / (d4 + d8)) ** 0.5,
        b1=jax.random.normal(ks[6], (1, d8), jnp.float32) * 0.02,
        w2=jax.random.normal(ks[7], (d8, d4), jnp.float32) * (2.0 / (d4 + d8)) ** 0.5,
        b2=jax.random.normal(ks[8], (1, d4), jnp.float32) * 0.02,
    )


def init_params(key, dim, heads, dim_head):
    kz, ks, kq = jax.random.split(key, 3)
    kzh, kzl = jax.random.split(kz)
    ksh, ksl = jax.random.split(ks)
    # ProjectInOut is Identity (h_dim == s_dim == z_dim == feature_dim)
    branches = [_init_cm_branch(kzh, dim, heads, dim_head),   # 0: CThz, h attends l
                _init_cm_branch(kzl, dim, heads, dim_head),   # 1: CThz, l attends h
                _init_cm_branch(ksh, dim, heads, dim_head),   # 2: CThs, h attends l
                _init_cm_branch(ksl, dim, heads, dim_head)]   # 3: CThs, l attends h
    stacked = {k: jnp.stack([br[k] for br in branches], axis=0) for k in branches[0]}
    return dict(cls=stacked, out=init_quater(kq, dim),
                heads=heads, dim_head=dim_head)


if __name__ == "__main__":
    B, N, D, H = 2, 8, 32, 4      # batch, tokens (1 cls + 7 patches), feature_dim, heads
    key = jax.random.PRNGKey(0)
    k_params, k_in = jax.random.split(key)
    params = init_params(k_params, D, H, D)   # ct_attn_dim_head == feature_dim

    kx, kx2, kzt, kz2 = jax.random.split(k_in, 4)
    x = jax.random.normal(kx, (B, N, D), jnp.float32)
    x2 = jax.random.normal(kx2, (B, N, D), jnp.float32)
    z = jax.random.normal(kzt, (B, N, D), jnp.float32)
    z2 = jax.random.normal(kz2, (B, N, D), jnp.float32)

    out, z_out, z2_out = attention_3_branches(params, x, x2, z, z2)
    jax.block_until_ready((out, z_out, z2_out))
    assert out.shape == (B, N, 4 * D)
    assert z_out.shape == (B, N, D) and z2_out.shape == (B, N, D)
    print("KERNEL_OK")
</pallas_src>

<mosaic_0001>
module attributes {stable_mosaic.version = 11 : i64} {
  func.func @fused_kernel(%arg0: i32, %arg1: memref<1x8x32xf32, #tpu.memory_space<vmem>>, %arg2: memref<1x8x32xf32, #tpu.memory_space<vmem>>, %arg3: memref<1x8x32xf32, #tpu.memory_space<vmem>>, %arg4: memref<1x8x32xf32, #tpu.memory_space<vmem>>, %arg5: memref<128x4xf32, #tpu.memory_space<vmem>>, %arg6: memref<4x128xf32, #tpu.memory_space<vmem>>, %arg7: memref<4x1x32xf32, #tpu.memory_space<vmem>>, %arg8: memref<4x1x32xf32, #tpu.memory_space<vmem>>, %arg9: memref<4x32x128xf32, #tpu.memory_space<vmem>>, %arg10: memref<4x32x128xf32, #tpu.memory_space<vmem>>, %arg11: memref<4x32x128xf32, #tpu.memory_space<vmem>>, %arg12: memref<4x3x128xf32, #tpu.memory_space<vmem>>, %arg13: memref<4x3x128xf32, #tpu.memory_space<vmem>>, %arg14: memref<4x128x32xf32, #tpu.memory_space<vmem>>, %arg15: memref<4x1x32xf32, #tpu.memory_space<vmem>>, %arg16: memref<1x128xf32, #tpu.memory_space<vmem>>, %arg17: memref<1x128xf32, #tpu.memory_space<vmem>>, %arg18: memref<128x128xf32, #tpu.memory_space<vmem>>, %arg19: memref<1x128xf32, #tpu.memory_space<vmem>>, %arg20: memref<1x128xf32, #tpu.memory_space<vmem>>, %arg21: memref<1x128xf32, #tpu.memory_space<vmem>>, %arg22: memref<128x256xf32, #tpu.memory_space<vmem>>, %arg23: memref<1x256xf32, #tpu.memory_space<vmem>>, %arg24: memref<256x128xf32, #tpu.memory_space<vmem>>, %arg25: memref<1x128xf32, #tpu.memory_space<vmem>>, %arg26: memref<1x8x128xf32, #tpu.memory_space<vmem>>, %arg27: memref<1x2x32xf32, #tpu.memory_space<vmem>>) attributes {dimension_semantics = [#tpu.dimension_semantics<parallel>], iteration_bounds = array<i64: 2>, scalar_prefetch = 0 : i64, scratch_operands = 0 : i64, tpu.core_type = #tpu.core_type<tc>, window_params = [{transform_indices = @transform_0, window_bounds = array<i64: 1, 8, 32>}, {transform_indices = @transform_1, window_bounds = array<i64: 1, 8, 32>}, {transform_indices = @transform_2, window_bounds = array<i64: 1, 8, 32>}, {transform_indices = @transform_3, window_bounds = array<i64: 1, 8, 32>}, {pipeline_mode = #tpu.pipeline_mode<synchronous>, transform_indices = @transform_4, window_bounds = array<i64: 128, 4>}, {pipeline_mode = #tpu.pipeline_mode<synchronous>, transform_indices = @transform_5, window_bounds = array<i64: 4, 128>}, {pipeline_mode = #tpu.pipeline_mode<synchronous>, transform_indices = @transform_6, window_bounds = array<i64: 4, 1, 32>}, {pipeline_mode = #tpu.pipeline_mode<synchronous>, transform_indices = @transform_7, window_bounds = array<i64: 4, 1, 32>}, {pipeline_mode = #tpu.pipeline_mode<synchronous>, transform_indices = @transform_8, window_bounds = array<i64: 4, 32, 128>}, {pipeline_mode = #tpu.pipeline_mode<synchronous>, transform_indices = @transform_9, window_bounds = array<i64: 4, 32, 128>}, {pipeline_mode = #tpu.pipeline_mode<synchronous>, transform_indices = @transform_10, window_bounds = array<i64: 4, 32, 128>}, {pipeline_mode = #tpu.pipeline_mode<synchronous>, transform_indices = @transform_11, window_bounds = array<i64: 4, 3, 128>}, {pipeline_mode = #tpu.pipeline_mode<synchronous>, transform_indices = @transform_12, window_bounds = array<i64: 4, 3, 128>}, {pipeline_mode = #tpu.pipeline_mode<synchronous>, transform_indices = @transform_13, window_bounds = array<i64: 4, 128, 32>}, {pipeline_mode = #tpu.pipeline_mode<synchronous>, transform_indices = @transform_14, window_bounds = array<i64: 4, 1, 32>}, {pipeline_mode = #tpu.pipeline_mode<synchronous>, transform_indices = @transform_15, window_bounds = array<i64: 1, 128>}, {pipeline_mode = #tpu.pipeline_mode<synchronous>, transform_indices = @transform_16, window_bounds = array<i64: 1, 128>}, {pipeline_mode = #tpu.pipeline_mode<synchronous>, transform_indices = @transform_17, window_bounds = array<i64: 128, 128>}, {pipeline_mode = #tpu.pipeline_mode<synchronous>, transform_indices = @transform_18, window_bounds = array<i64: 1, 128>}, {pipeline_mode = #tpu.pipeline_mode<synchronous>, transform_indices = @transform_19, window_bounds = array<i64: 1, 128>}, {pipeline_mode = #tpu.pipeline_mode<synchronous>, transform_indices = @transform_20, window_bounds = array<i64: 1, 128>}, {pipeline_mode = #tpu.pipeline_mode<synchronous>, transform_indices = @transform_21, window_bounds = array<i64: 128, 256>}, {pipeline_mode = #tpu.pipeline_mode<synchronous>, transform_indices = @transform_22, window_bounds = array<i64: 1, 256>}, {pipeline_mode = #tpu.pipeline_mode<synchronous>, transform_indices = @transform_23, window_bounds = array<i64: 256, 128>}, {pipeline_mode = #tpu.pipeline_mode<synchronous>, transform_indices = @transform_24, window_bounds = array<i64: 1, 128>}, {transform_indices = @transform_25, window_bounds = array<i64: 1, 8, 128>}, {transform_indices = @transform_26, window_bounds = array<i64: 1, 2, 32>}]} {
    %c0 = arith.constant 0 : index
    %c0_0 = arith.constant 0 : index
    %0 = vector.load %arg5[%c0, %c0_0] : memref<128x4xf32, #tpu.memory_space<vmem>>, vector<128x4xf32>
    %c0_1 = arith.constant 0 : index
    %c0_2 = arith.constant 0 : index
    %1 = vector.load %arg6[%c0_1, %c0_2] : memref<4x128xf32, #tpu.memory_space<vmem>>, vector<4x128xf32>
    %2 = tpu.iota {dimensions = array<i32: 0>} : vector<8x32xi32>
    %c0_i32 = arith.constant 0 : i32
    %3 = vector.broadcast %c0_i32 : i32 to vector<8x32xi32>
    %4 = arith.cmpi eq, %2, %3 : vector<8x32xi32>
    %c0_3 = arith.constant 0 : index
    %c0_4 = arith.constant 0 : index
    %c0_5 = arith.constant 0 : index
    %5 = vector.load %arg1[%c0_3, %c0_4, %c0_5] : memref<1x8x32xf32, #tpu.memory_space<vmem>>, vector<1x8x32xf32>
    %6 = vector.shape_cast %5 : vector<1x8x32xf32> to vector<8x32xf32>
    %c0_6 = arith.constant 0 : index
    %c0_7 = arith.constant 0 : index
    %c0_8 = arith.constant 0 : index
    %7 = vector.load %arg2[%c0_6, %c0_7, %c0_8] : memref<1x8x32xf32, #tpu.memory_space<vmem>>, vector<1x8x32xf32>
    %8 = vector.shape_cast %7 : vector<1x8x32xf32> to vector<8x32xf32>
    %c0_9 = arith.constant 0 : index
    %c0_10 = arith.constant 0 : index
    %c0_11 = arith.constant 0 : index
    %9 = vector.load %arg3[%c0_9, %c0_10, %c0_11] : memref<1x8x32xf32, #tpu.memory_space<vmem>>, vector<1x8x32xf32>
    %10 = vector.shape_cast %9 : vector<1x8x32xf32> to vector<8x32xf32>
    %c0_12 = arith.constant 0 : index
    %c0_13 = arith.constant 0 : index
    %c0_14 = arith.constant 0 : index
    %11 = vector.load %arg4[%c0_12, %c0_13, %c0_14] : memref<1x8x32xf32, #tpu.memory_space<vmem>>, vector<1x8x32xf32>
    %12 = vector.shape_cast %11 : vector<1x8x32xf32> to vector<8x32xf32>
    %13 = vector.extract_strided_slice %6 {offsets = [0, 0], sizes = [1, 32], strides = [1, 1]} : vector<8x32xf32> to vector<1x32xf32>
    %14 = vector.extract_strided_slice %8 {offsets = [0, 0], sizes = [1, 32], strides = [1, 1]} : vector<8x32xf32> to vector<1x32xf32>
    %15 = vector.extract_strided_slice %10 {offsets = [0, 0], sizes = [1, 32], strides = [1, 1]} : vector<8x32xf32> to vector<1x32xf32>
    %16 = vector.extract_strided_slice %12 {offsets = [0, 0], sizes = [1, 32], strides = [1, 1]} : vector<8x32xf32> to vector<1x32xf32>
    %17 = tpu.concatenate %13, %14 in 0 : vector<1x32xf32>, vector<1x32xf32> -> vector<2x32xf32>
    %c0_15 = arith.constant 0 : index
    %c0_16 = arith.constant 0 : index
    %c0_17 = arith.constant 0 : index
    %18 = vector.load %arg7[%c0_15, %c0_16, %c0_17] : memref<4x1x32xf32, #tpu.memory_space<vmem>>, vector<1x1x32xf32>
    %19 = vector.shape_cast %18 : vector<1x1x32xf32> to vector<1x32xf32>
    %c0_18 = arith.constant 0 : index
    %c0_19 = arith.constant 0 : index
    %c0_20 = arith.constant 0 : index
    %20 = vector.load %arg8[%c0_18, %c0_19, %c0_20] : memref<4x1x32xf32, #tpu.memory_space<vmem>>, vector<1x1x32xf32>
    %21 = vector.shape_cast %20 : vector<1x1x32xf32> to vector<1x32xf32>
    %cst = arith.constant dense<0.000000e+00> : vector<2xf32>
    %22 = vector.multi_reduction <add>, %17, %cst [1] : vector<2x32xf32> to vector<2xf32>
    %23 = vector.shape_cast %22 : vector<2xf32> to vector<2x1xf32>
    %cst_21 = arith.constant 3.200000e+01 : f32
    %24 = vector.broadcast %cst_21 : f32 to vector<2x1xf32>
    %25 = arith.divf %23, %24 : vector<2x1xf32>
    %26 = vector.broadcast %25 : vector<2x1xf32> to vector<2x32xf32>
    %27 = arith.subf %17, %26 : vector<2x32xf32>
    %28 = arith.mulf %27, %27 : vector<2x32xf32>
    %cst_22 = arith.constant dense<0.000000e+00> : vector<2xf32>
    %29 = vector.multi_reduction <add>, %28, %cst_22 [1] : vector<2x32xf32> to vector<2xf32>
    %30 = vector.shape_cast %29 : vector<2xf32> to vector<2x1xf32>
    %cst_23 = arith.constant 3.200000e+01 : f32
    %31 = vector.broadcast %cst_23 : f32 to vector<2x1xf32>
    %32 = arith.divf %30, %31 : vector<2x1xf32>
    %cst_24 = arith.constant 9.99999974E-6 : f32
    %33 = vector.broadcast %cst_24 : f32 to vector<2x1xf32>
    %34 = arith.addf %32, %33 : vector<2x1xf32>
    %35 = math.rsqrt %34 : vector<2x1xf32>
    %36 = vector.broadcast %35 : vector<2x1xf32> to vector<2x32xf32>
    %37 = arith.mulf %27, %36 : vector<2x32xf32>
    %38 = vector.broadcast %19 : vector<1x32xf32> to vector<2x32xf32>
    %39 = arith.mulf %37, %38 : vector<2x32xf32>
    %40 = vector.broadcast %21 : vector<1x32xf32> to vector<2x32xf32>
    %41 = arith.addf %39, %40 : vector<2x32xf32>
    %c0_25 = arith.constant 0 : index
    %c0_26 = arith.constant 0 : index
    %c0_27 = arith.constant 0 : index
    %42 = vector.load %arg9[%c0_25, %c0_26, %c0_27] : memref<4x32x128xf32, #tpu.memory_space<vmem>>, vector<1x32x128xf32>
    %43 = vector.shape_cast %42 : vector<1x32x128xf32> to vector<32x128xf32>
    %cst_28 = arith.constant dense<0.000000e+00> : vector<2x128xf32>
    %44 = tpu.matmul %41, %43, %cst_28 {dimension_numbers = #tpu.dot_dimension_numbers<[1], [0], [0], [1], [0, 0, 1, 1], [], []>} : vector<2x32xf32>, vector<32x128xf32>, vector<2x128xf32> -> vector<2x128xf32>
    %45 = vector.extract_strided_slice %41 {offsets = [0, 0], sizes = [1, 32], strides = [1, 1]} : vector<2x32xf32> to vector<1x32xf32>
    %46 = vector.shape_cast %45 : vector<1x32xf32> to vector<1x32xf32>
    %47 = vector.broadcast %46 : vector<1x32xf32> to vector<8x32xf32>
    %48 = arith.select %4, %47, %10 : vector<8x32xi1>, vector<8x32xf32>
    %49 = vector.extract_strided_slice %41 {offsets = [1, 0], sizes = [1, 32], strides = [1, 1]} : vector<2x32xf32> to vector<1x32xf32>
    %50 = vector.shape_cast %49 : vector<1x32xf32> to vector<1x32xf32>
    %51 = vector.broadcast %50 : vector<1x32xf32> to vector<8x32xf32>
    %52 = arith.select %4, %51, %12 : vector<8x32xi1>, vector<8x32xf32>
    %53 = tpu.concatenate %48, %52 in 0 : vector<8x32xf32>, vector<8x32xf32> -> vector<16x32xf32>
    %c0_29 = arith.constant 0 : index
    %c0_30 = arith.constant 0 : index
    %c0_31 = arith.constant 0 : index
    %54 = vector.load %arg10[%c0_29, %c0_30, %c0_31] : memref<4x32x128xf32, #tpu.memory_space<vmem>>, vector<1x32x128xf32>
    %55 = vector.shape_cast %54 : vector<1x32x128xf32> to vector<32x128xf32>
    %cst_32 = arith.constant dense<0.000000e+00> : vector<16x128xf32>
    %56 = tpu.matmul %53, %55, %cst_32 {dimension_numbers = #tpu.dot_dimension_numbers<[1], [0], [0], [1], [0, 0, 1, 1], [], []>} : vector<16x32xf32>, vector<32x128xf32>, vector<16x128xf32> -> vector<16x128xf32>
    %c0_33 = arith.constant 0 : index
    %c0_34 = arith.constant 0 : index
    %c0_35 = arith.constant 0 : index
    %57 = vector.load %arg11[%c0_33, %c0_34, %c0_35] : memref<4x32x128xf32, #tpu.memory_space<vmem>>, vector<1x32x128xf32>
    %58 = vector.shape_cast %57 : vector<1x32x128xf32> to vector<32x128xf32>
    %cst_36 = arith.constant dense<0.000000e+00> : vector<16x128xf32>
    %59 = tpu.matmul %53, %58, %cst_36 {dimension_numbers = #tpu.dot_dimension_numbers<[1], [0], [0], [1], [0, 0, 1, 1], [], []>} : vector<16x32xf32>, vector<32x128xf32>, vector<16x128xf32> -> vector<16x128xf32>
    %c0_37 = arith.constant 0 : index
    %c0_38 = arith.constant 0 : index
    %c0_39 = arith.constant 0 : index
    %60 = vector.load %arg12[%c0_37, %c0_38, %c0_39] : memref<4x3x128xf32, #tpu.memory_space<vmem>>, vector<1x3x128xf32>
    %61 = vector.shape_cast %60 : vector<1x3x128xf32> to vector<3x128xf32>
    %c0_40 = arith.constant 0 : index
    %c0_41 = arith.constant 0 : index
    %c0_42 = arith.constant 0 : index
    %62 = vector.load %arg13[%c0_40, %c0_41, %c0_42] : memref<4x3x128xf32, #tpu.memory_space<vmem>>, vector<1x3x128xf32>
    %63 = vector.shape_cast %62 : vector<1x3x128xf32> to vector<3x128xf32>
    %64 = vector.extract_strided_slice %56 {offsets = [0, 0], sizes = [8, 128], strides = [1, 1]} : vector<16x128xf32> to vector<8x128xf32>
    %65 = tpu.concatenate %64, %61 in 0 : vector<8x128xf32>, vector<3x128xf32> -> vector<11x128xf32>
    %66 = vector.extract_strided_slice %59 {offsets = [0, 0], sizes = [8, 128], strides = [1, 1]} : vector<16x128xf32> to vector<8x128xf32>
    %67 = tpu.concatenate %66, %63 in 0 : vector<8x128xf32>, vector<3x128xf32> -> vector<11x128xf32>
    %68 = vector.extract_strided_slice %44 {offsets = [0, 0], sizes = [1, 128], strides = [1, 1]} : vector<2x128xf32> to vector<1x128xf32>
    %69 = vector.broadcast %68 : vector<1x128xf32> to vector<11x128xf32>
    %70 = arith.mulf %65, %69 : vector<11x128xf32>
    %cst_43 = arith.constant dense<0.000000e+00> : vector<11x4xf32>
    %71 = tpu.matmul %70, %0, %cst_43 {dimension_numbers = #tpu.dot_dimension_numbers<[1], [0], [0], [1], [0, 0, 1, 1], [], []>} : vector<11x128xf32>, vector<128x4xf32>, vector<11x4xf32> -> vector<11x4xf32>
    %cst_44 = arith.constant 0.176776692 : f32
    %72 = vector.broadcast %cst_44 : f32 to vector<11x4xf32>
    %73 = arith.mulf %71, %72 : vector<11x4xf32>
    %cst_45 = arith.constant dense<0xFF800000> : vector<4xf32>
    %74 = vector.multi_reduction <maximumf>, %73, %cst_45 [0] : vector<11x4xf32> to vector<4xf32>
    %75 = vector.shape_cast %74 : vector<4xf32> to vector<1x4xf32>
    %76 = vector.broadcast %75 : vector<1x4xf32> to vector<11x4xf32>
    %77 = arith.subf %73, %76 : vector<11x4xf32>
    %78 = math.exp %77 : vector<11x4xf32>
    %cst_46 = arith.constant dense<0.000000e+00> : vector<4xf32>
    %79 = vector.multi_reduction <add>, %78, %cst_46 [0] : vector<11x4xf32> to vector<4xf32>
    %80 = vector.shape_cast %79 : vector<4xf32> to vector<1x4xf32>
    %81 = tpu.reciprocal %80 {approx = true} : vector<1x4xf32> -> vector<1x4xf32>
    %82 = vector.broadcast %81 : vector<1x4xf32> to vector<11x4xf32>
    %83 = arith.mulf %78, %82 : vector<11x4xf32>
    %cst_47 = arith.constant dense<0.000000e+00> : vector<11x128xf32>
    %84 = tpu.matmul %83, %1, %cst_47 {dimension_numbers = #tpu.dot_dimension_numbers<[1], [0], [0], [1], [0, 0, 1, 1], [], []>} : vector<11x4xf32>, vector<4x128xf32>, vector<11x128xf32> -> vector<11x128xf32>
    %85 = arith.mulf %84, %67 : vector<11x128xf32>
    %cst_48 = arith.constant dense<0.000000e+00> : vector<128xf32>
    %86 = vector.multi_reduction <add>, %85, %cst_48 [0] : vector<11x128xf32> to vector<128xf32>
    %87 = vector.shape_cast %86 : vector<128xf32> to vector<1x128xf32>
    %88 = vector.extract_strided_slice %56 {offsets = [8, 0], sizes = [8, 128], strides = [1, 1]} : vector<16x128xf32> to vector<8x128xf32>
    %89 = tpu.concatenate %88, %61 in 0 : vector<8x128xf32>, vector<3x128xf32> -> vector<11x128xf32>
    %90 = vector.extract_strided_slice %59 {offsets = [8, 0], sizes = [8, 128], strides = [1, 1]} : vector<16x128xf32> to vector<8x128xf32>
    %91 = tpu.concatenate %90, %63 in 0 : vector<8x128xf32>, vector<3x128xf32> -> vector<11x128xf32>
    %92 = vector.extract_strided_slice %44 {offsets = [1, 0], sizes = [1, 128], strides = [1, 1]} : vector<2x128xf32> to vector<1x128xf32>
    %93 = vector.broadcast %92 : vector<1x128xf32> to vector<11x128xf32>
    %94 = arith.mulf %89, %93 : vector<11x128xf32>
    %cst_49 = arith.constant dense<0.000000e+00> : vector<11x4xf32>
    %95 = tpu.matmul %94, %0, %cst_49 {dimension_numbers = #tpu.dot_dimension_numbers<[1], [0], [0], [1], [0, 0, 1, 1], [], []>} : vector<11x128xf32>, vector<128x4xf32>, vector<11x4xf32> -> vector<11x4xf32>
    %cst_50 = arith.constant 0.176776692 : f32
    %96 = vector.broadcast %cst_50 : f32 to vector<11x4xf32>
    %97 = arith.mulf %95, %96 : vector<11x4xf32>
    %cst_51 = arith.constant dense<0xFF800000> : vector<4xf32>
    %98 = vector.multi_reduction <maximumf>, %97, %cst_51 [0] : vector<11x4xf32> to vector<4xf32>
    %99 = vector.shape_cast %98 : vector<4xf32> to vector<1x4xf32>
    %100 = vector.broadcast %99 : vector<1x4xf32> to vector<11x4xf32>
    %101 = arith.subf %97, %100 : vector<11x4xf32>
    %102 = math.exp %101 : vector<11x4xf32>
    %cst_52 = arith.constant dense<0.000000e+00> : vector<4xf32>
    %103 = vector.multi_reduction <add>, %102, %cst_52 [0] : vector<11x4xf32> to vector<4xf32>
    %104 = vector.shape_cast %103 : vector<4xf32> to vector<1x4xf32>
    %105 = tpu.reciprocal %104 {approx = true} : vector<1x4xf32> -> vector<1x4xf32>
    %106 = vector.broadcast %105 : vector<1x4xf32> to vector<11x4xf32>
    %107 = arith.mulf %102, %106 : vector<11x4xf32>
    %cst_53 = arith.constant dense<0.000000e+00> : vector<11x128xf32>
    %108 = tpu.matmul %107, %1, %cst_53 {dimension_numbers = #tpu.dot_dimension_numbers<[1], [0], [0], [1], [0, 0, 1, 1], [], []>} : vector<11x4xf32>, vector<4x128xf32>, vector<11x128xf32> -> vector<11x128xf32>
    %109 = arith.mulf %108, %91 : vector<11x128xf32>
    %cst_54 = arith.constant dense<0.000000e+00> : vector<128xf32>
    %110 = vector.multi_reduction <add>, %109, %cst_54 [0] : vector<11x128xf32> to vector<128xf32>
    %111 = vector.shape_cast %110 : vector<128xf32> to vector<1x128xf32>
    %112 = tpu.concatenate %87, %111 in 0 : vector<1x128xf32>, vector<1x128xf32> -> vector<2x128xf32>
    %c0_55 = arith.constant 0 : index
    %c0_56 = arith.constant 0 : index
    %c0_57 = arith.constant 0 : index
    %113 = vector.load %arg14[%c0_55, %c0_56, %c0_57] : memref<4x128x32xf32, #tpu.memory_space<vmem>>, vector<1x128x32xf32>
    %114 = vector.shape_cast %113 : vector<1x128x32xf32> to vector<128x32xf32>
    %cst_58 = arith.constant dense<0.000000e+00> : vector<2x32xf32>
    %115 = tpu.matmul %112, %114, %cst_58 {dimension_numbers = #tpu.dot_dimension_numbers<[1], [0], [0], [1], [0, 0, 1, 1], [], []>} : vector<2x128xf32>, vector<128x32xf32>, vector<2x32xf32> -> vector<2x32xf32>
    %c0_59 = arith.constant 0 : index
    %c0_60 = arith.constant 0 : index
    %c0_61 = arith.constant 0 : index
    %116 = vector.load %arg15[%c0_59, %c0_60, %c0_61] : memref<4x1x32xf32, #tpu.memory_space<vmem>>, vector<1x1x32xf32>
    %117 = vector.shape_cast %116 : vector<1x1x32xf32> to vector<1x32xf32>
    %118 = vector.broadcast %117 : vector<1x32xf32> to vector<2x32xf32>
    %119 = arith.addf %115, %118 : vector<2x32xf32>
    %120 = vector.extract_strided_slice %17 {offsets = [0, 0], sizes = [1, 32], strides = [1, 1]} : vector<2x32xf32> to vector<1x32xf32>
    %121 = vector.extract_strided_slice %119 {offsets = [0, 0], sizes = [1, 32], strides = [1, 1]} : vector<2x32xf32> to vector<1x32xf32>
    %122 = arith.addf %120, %121 : vector<1x32xf32>
    %123 = vector.extract_strided_slice %17 {offsets = [1, 0], sizes = [1, 32], strides = [1, 1]} : vector<2x32xf32> to vector<1x32xf32>
    %124 = vector.extract_strided_slice %119 {offsets = [1, 0], sizes = [1, 32], strides = [1, 1]} : vector<2x32xf32> to vector<1x32xf32>
    %125 = arith.addf %123, %124 : vector<1x32xf32>
    %126 = tpu.concatenate %15, %16 in 0 : vector<1x32xf32>, vector<1x32xf32> -> vector<2x32xf32>
    %c1 = arith.constant 1 : index
    %c0_62 = arith.constant 0 : index
    %c0_63 = arith.constant 0 : index
    %127 = vector.load %arg7[%c1, %c0_62, %c0_63] : memref<4x1x32xf32, #tpu.memory_space<vmem>>, vector<1x1x32xf32>
    %128 = vector.shape_cast %127 : vector<1x1x32xf32> to vector<1x32xf32>
    %c1_64 = arith.constant 1 : index
    %c0_65 = arith.constant 0 : index
    %c0_66 = arith.constant 0 : index
    %129 = vector.load %arg8[%c1_64, %c0_65, %c0_66] : memref<4x1x32xf32, #tpu.memory_space<vmem>>, vector<1x1x32xf32>
    %130 = vector.shape_cast %129 : vector<1x1x32xf32> to vector<1x32xf32>
    %cst_67 = arith.constant dense<0.000000e+00> : vector<2xf32>
    %131 = vector.multi_reduction <add>, %126, %cst_67 [1] : vector<2x32xf32> to vector<2xf32>
    %132 = vector.shape_cast %131 : vector<2xf32> to vector<2x1xf32>
    %cst_68 = arith.constant 3.200000e+01 : f32
    %133 = vector.broadcast %cst_68 : f32 to vector<2x1xf32>
    %134 = arith.divf %132, %133 : vector<2x1xf32>
    %135 = vector.broadcast %134 : vector<2x1xf32> to vector<2x32xf32>
    %136 = arith.subf %126, %135 : vector<2x32xf32>
    %137 = arith.mulf %136, %136 : vector<2x32xf32>
    %cst_69 = arith.constant dense<0.000000e+00> : vector<2xf32>
    %138 = vector.multi_reduction <add>, %137, %cst_69 [1] : vector<2x32xf32> to vector<2xf32>
    %139 = vector.shape_cast %138 : vector<2xf32> to vector<2x1xf32>
    %cst_70 = arith.constant 3.200000e+01 : f32
    %140 = vector.broadcast %cst_70 : f32 to vector<2x1xf32>
    %141 = arith.divf %139, %140 : vector<2x1xf32>
    %cst_71 = arith.constant 9.99999974E-6 : f32
    %142 = vector.broadcast %cst_71 : f32 to vector<2x1xf32>
    %143 = arith.addf %141, %142 : vector<2x1xf32>
    %144 = math.rsqrt %143 : vector<2x1xf32>
    %145 = vector.broadcast %144 : vector<2x1xf32> to vector<2x32xf32>
    %146 = arith.mulf %136, %145 : vector<2x32xf32>
    %147 = vector.broadcast %128 : vector<1x32xf32> to vector<2x32xf32>
    %148 = arith.mulf %146, %147 : vector<2x32xf32>
    %149 = vector.broadcast %130 : vector<1x32xf32> to vector<2x32xf32>
    %150 = arith.addf %148, %149 : vector<2x32xf32>
    %c1_72 = arith.constant 1 : index
    %c0_73 = arith.constant 0 : index
    %c0_74 = arith.constant 0 : index
    %151 = vector.load %arg9[%c1_72, %c0_73, %c0_74] : memref<4x32x128xf32, #tpu.memory_space<vmem>>, vector<1x32x128xf32>
    %152 = vector.shape_cast %151 : vector<1x32x128xf32> to vector<32x128xf32>
    %cst_75 = arith.constant dense<0.000000e+00> : vector<2x128xf32>
    %153 = tpu.matmul %150, %152, %cst_75 {dimension_numbers = #tpu.dot_dimension_numbers<[1], [0], [0], [1], [0, 0, 1, 1], [], []>} : vector<2x32xf32>, vector<32x128xf32>, vector<2x128xf32> -> vector<2x128xf32>
    %154 = vector.extract_strided_slice %150 {offsets = [0, 0], sizes = [1, 32], strides = [1, 1]} : vector<2x32xf32> to vector<1x32xf32>
    %155 = vector.shape_cast %154 : vector<1x32xf32> to vector<1x32xf32>
    %156 = vector.broadcast %155 : vector<1x32xf32> to vector<8x32xf32>
    %157 = arith.select %4, %156, %6 : vector<8x32xi1>, vector<8x32xf32>
    %158 = vector.extract_strided_slice %150 {offsets = [1, 0], sizes = [1, 32], strides = [1, 1]} : vector<2x32xf32> to vector<1x32xf32>
    %159 = vector.shape_cast %158 : vector<1x32xf32> to vector<1x32xf32>
    %160 = vector.broadcast %159 : vector<1x32xf32> to vector<8x32xf32>
    %161 = arith.select %4, %160, %8 : vector<8x32xi1>, vector<8x32xf32>
    %162 = tpu.concatenate %157, %161 in 0 : vector<8x32xf32>, vector<8x32xf32> -> vector<16x32xf32>
    %c1_76 = arith.constant 1 : index
    %c0_77 = arith.constant 0 : index
    %c0_78 = arith.constant 0 : index
    %163 = vector.load %arg10[%c1_76, %c0_77, %c0_78] : memref<4x32x128xf32, #tpu.memory_space<vmem>>, vector<1x32x128xf32>
    %164 = vector.shape_cast %163 : vector<1x32x128xf32> to vector<32x128xf32>
    %cst_79 = arith.constant dense<0.000000e+00> : vector<16x128xf32>
    %165 = tpu.matmul %162, %164, %cst_79 {dimension_numbers = #tpu.dot_dimension_numbers<[1], [0], [0], [1], [0, 0, 1, 1], [], []>} : vector<16x32xf32>, vector<32x128xf32>, vector<16x128xf32> -> vector<16x128xf32>
    %c1_80 = arith.constant 1 : index
    %c0_81 = arith.constant 0 : index
    %c0_82 = arith.constant 0 : index
    %166 = vector.load %arg11[%c1_80, %c0_81, %c0_82] : memref<4x32x128xf32, #tpu.memory_space<vmem>>, vector<1x32x128xf32>
    %167 = vector.shape_cast %166 : vector<1x32x128xf32> to vector<32x128xf32>
    %cst_83 = arith.constant dense<0.000000e+00> : vector<16x128xf32>
    %168 = tpu.matmul %162, %167, %cst_83 {dimension_numbers = #tpu.dot_dimension_numbers<[1], [0], [0], [1], [0, 0, 1, 1], [], []>} : vector<16x32xf32>, vector<32x128xf32>, vector<16x128xf32> -> vector<16x128xf32>
    %c1_84 = arith.constant 1 : index
    %c0_85 = arith.constant 0 : index
    %c0_86 = arith.constant 0 : index
    %169 = vector.load %arg12[%c1_84, %c0_85, %c0_86] : memref<4x3x128xf32, #tpu.memory_space<vmem>>, vector<1x3x128xf32>
    %170 = vector.shape_cast %169 : vector<1x3x128xf32> to vector<3x128xf32>
    %c1_87 = arith.constant 1 : index
    %c0_88 = arith.constant 0 : index
    %c0_89 = arith.constant 0 : index
    %171 = vector.load %arg13[%c1_87, %c0_88, %c0_89] : memref<4x3x128xf32, #tpu.memory_space<vmem>>, vector<1x3x128xf32>
    %172 = vector.shape_cast %171 : vector<1x3x128xf32> to vector<3x128xf32>
    %173 = vector.extract_strided_slice %165 {offsets = [0, 0], sizes = [8, 128], strides = [1, 1]} : vector<16x128xf32> to vector<8x128xf32>
    %174 = tpu.concatenate %173, %170 in 0 : vector<8x128xf32>, vector<3x128xf32> -> vector<11x128xf32>
    %175 = vector.extract_strided_slice %168 {offsets = [0, 0], sizes = [8, 128], strides = [1, 1]} : vector<16x128xf32> to vector<8x128xf32>
    %176 = tpu.concatenate %175, %172 in 0 : vector<8x128xf32>, vector<3x128xf32> -> vector<11x128xf32>
    %177 = vector.extract_strided_slice %153 {offsets = [0, 0], sizes = [1, 128], strides = [1, 1]} : vector<2x128xf32> to vector<1x128xf32>
    %178 = vector.broadcast %177 : vector<1x128xf32> to vector<11x128xf32>
    %179 = arith.mulf %174, %178 : vector<11x128xf32>
    %cst_90 = arith.constant dense<0.000000e+00> : vector<11x4xf32>
    %180 = tpu.matmul %179, %0, %cst_90 {dimension_numbers = #tpu.dot_dimension_numbers<[1], [0], [0], [1], [0, 0, 1, 1], [], []>} : vector<11x128xf32>, vector<128x4xf32>, vector<11x4xf32> -> vector<11x4xf32>
    %cst_91 = arith.constant 0.176776692 : f32
    %181 = vector.broadcast %cst_91 : f32 to vector<11x4xf32>
    %182 = arith.mulf %180, %181 : vector<11x4xf32>
    %cst_92 = arith.constant dense<0xFF800000> : vector<4xf32>
    %183 = vector.multi_reduction <maximumf>, %182, %cst_92 [0] : vector<11x4xf32> to vector<4xf32>
    %184 = vector.shape_cast %183 : vector<4xf32> to vector<1x4xf32>
    %185 = vector.broadcast %184 : vector<1x4xf32> to vector<11x4xf32>
    %186 = arith.subf %182, %185 : vector<11x4xf32>
    %187 = math.exp %186 : vector<11x4xf32>
    %cst_93 = arith.constant dense<0.000000e+00> : vector<4xf32>
    %188 = vector.multi_reduction <add>, %187, %cst_93 [0] : vector<11x4xf32> to vector<4xf32>
    %189 = vector.shape_cast %188 : vector<4xf32> to vector<1x4xf32>
    %190 = tpu.reciprocal %189 {approx = true} : vector<1x4xf32> -> vector<1x4xf32>
    %191 = vector.broadcast %190 : vector<1x4xf32> to vector<11x4xf32>
    %192 = arith.mulf %187, %191 : vector<11x4xf32>
    %cst_94 = arith.constant dense<0.000000e+00> : vector<11x128xf32>
    %193 = tpu.matmul %192, %1, %cst_94 {dimension_numbers = #tpu.dot_dimension_numbers<[1], [0], [0], [1], [0, 0, 1, 1], [], []>} : vector<11x4xf32>, vector<4x128xf32>, vector<11x128xf32> -> vector<11x128xf32>
    %194 = arith.mulf %193, %176 : vector<11x128xf32>
    %cst_95 = arith.constant dense<0.000000e+00> : vector<128xf32>
    %195 = vector.multi_reduction <add>, %194, %cst_95 [0] : vector<11x128xf32> to vector<128xf32>
    %196 = vector.shape_cast %195 : vector<128xf32> to vector<1x128xf32>
    %197 = vector.extract_strided_slice %165 {offsets = [8, 0], sizes = [8, 128], strides = [1, 1]} : vector<16x128xf32> to vector<8x128xf32>
    %198 = tpu.concatenate %197, %170 in 0 : vector<8x128xf32>, vector<3x128xf32> -> vector<11x128xf32>
    %199 = vector.extract_strided_slice %168 {offsets = [8, 0], sizes = [8, 128], strides = [1, 1]} : vector<16x128xf32> to vector<8x128xf32>
    %200 = tpu.concatenate %199, %172 in 0 : vector<8x128xf32>, vector<3x128xf32> -> vector<11x128xf32>
    %201 = vector.extract_strided_slice %153 {offsets = [1, 0], sizes = [1, 128], strides = [1, 1]} : vector<2x128xf32> to vector<1x128xf32>
    %202 = vector.broadcast %201 : vector<1x128xf32> to vector<11x128xf32>
    %203 = arith.mulf %198, %202 : vector<11x128xf32>
    %cst_96 = arith.constant dense<0.000000e+00> : vector<11x4xf32>
    %204 = tpu.matmul %203, %0, %cst_96 {dimension_numbers = #tpu.dot_dimension_numbers<[1], [0], [0], [1], [0, 0, 1, 1], [], []>} : vector<11x128xf32>, vector<128x4xf32>, vector<11x4xf32> -> vector<11x4xf32>
    %cst_97 = arith.constant 0.176776692 : f32
    %205 = vector.broadcast %cst_97 : f32 to vector<11x4xf32>
    %206 = arith.mulf %204, %205 : vector<11x4xf32>
    %cst_98 = arith.constant dense<0xFF800000> : vector<4xf32>
    %207 = vector.multi_reduction <maximumf>, %206, %cst_98 [0] : vector<11x4xf32> to vector<4xf32>
    %208 = vector.shape_cast %207 : vector<4xf32> to vector<1x4xf32>
    %209 = vector.broadcast %208 : vector<1x4xf32> to vector<11x4xf32>
    %210 = arith.subf %206, %209 : vector<11x4xf32>
    %211 = math.exp %210 : vector<11x4xf32>
    %cst_99 = arith.constant dense<0.000000e+00> : vector<4xf32>
    %212 = vector.multi_reduction <add>, %211, %cst_99 [0] : vector<11x4xf32> to vector<4xf32>
    %213 = vector.shape_cast %212 : vector<4xf32> to vector<1x4xf32>
    %214 = tpu.reciprocal %213 {approx = true} : vector<1x4xf32> -> vector<1x4xf32>
    %215 = vector.broadcast %214 : vector<1x4xf32> to vector<11x4xf32>
    %216 = arith.mulf %211, %215 : vector<11x4xf32>
    %cst_100 = arith.constant dense<0.000000e+00> : vector<11x128xf32>
    %217 = tpu.matmul %216, %1, %cst_100 {dimension_numbers = #tpu.dot_dimension_numbers<[1], [0], [0], [1], [0, 0, 1, 1], [], []>} : vector<11x4xf32>, vector<4x128xf32>, vector<11x128xf32> -> vector<11x128xf32>
    %218 = arith.mulf %217, %200 : vector<11x128xf32>
    %cst_101 = arith.constant dense<0.000000e+00> : vector<128xf32>
    %219 = vector.multi_reduction <add>, %218, %cst_101 [0] : vector<11x128xf32> to vector<128xf32>
    %220 = vector.shape_cast %219 : vector<128xf32> to vector<1x128xf32>
    %221 = tpu.concatenate %196, %220 in 0 : vector<1x128xf32>, vector<1x128xf32> -> vector<2x128xf32>
    %c1_102 = arith.constant 1 : index
    %c0_103 = arith.constant 0 : index
    %c0_104 = arith.constant 0 : index
    %222 = vector.load %arg14[%c1_102, %c0_103, %c0_104] : memref<4x128x32xf32, #tpu.memory_space<vmem>>, vector<1x128x32xf32>
    %223 = vector.shape_cast %222 : vector<1x128x32xf32> to vector<128x32xf32>
    %cst_105 = arith.constant dense<0.000000e+00> : vector<2x32xf32>
    %224 = tpu.matmul %221, %223, %cst_105 {dimension_numbers = #tpu.dot_dimension_numbers<[1], [0], [0], [1], [0, 0, 1, 1], [], []>} : vector<2x128xf32>, vector<128x32xf32>, vector<2x32xf32> -> vector<2x32xf32>
    %c1_106 = arith.constant 1 : index
    %c0_107 = arith.constant 0 : index
    %c0_108 = arith.constant 0 : index
    %225 = vector.load %arg15[%c1_106, %c0_107, %c0_108] : memref<4x1x32xf32, #tpu.memory_space<vmem>>, vector<1x1x32xf32>
    %226 = vector.shape_cast %225 : vector<1x1x32xf32> to vector<1x32xf32>
    %227 = vector.broadcast %226 : vector<1x32xf32> to vector<2x32xf32>
    %228 = arith.addf %224, %227 : vector<2x32xf32>
    %229 = vector.extract_strided_slice %126 {offsets = [0, 0], sizes = [1, 32], strides = [1, 1]} : vector<2x32xf32> to vector<1x32xf32>
    %230 = vector.extract_strided_slice %228 {offsets = [0, 0], sizes = [1, 32], strides = [1, 1]} : vector<2x32xf32> to vector<1x32xf32>
    %231 = arith.addf %229, %230 : vector<1x32xf32>
    %232 = vector.extract_strided_slice %126 {offsets = [1, 0], sizes = [1, 32], strides = [1, 1]} : vector<2x32xf32> to vector<1x32xf32>
    %233 = vector.extract_strided_slice %228 {offsets = [1, 0], sizes = [1, 32], strides = [1, 1]} : vector<2x32xf32> to vector<1x32xf32>
    %234 = arith.addf %232, %233 : vector<1x32xf32>
    %c2 = arith.constant 2 : index
    %c0_109 = arith.constant 0 : index
    %c0_110 = arith.constant 0 : index
    %235 = vector.load %arg7[%c2, %c0_109, %c0_110] : memref<4x1x32xf32, #tpu.memory_space<vmem>>, vector<1x1x32xf32>
    %236 = vector.shape_cast %235 : vector<1x1x32xf32> to vector<1x32xf32>
    %c2_111 = arith.constant 2 : index
    %c0_112 = arith.constant 0 : index
    %c0_113 = arith.constant 0 : index
    %237 = vector.load %arg8[%c2_111, %c0_112, %c0_113] : memref<4x1x32xf32, #tpu.memory_space<vmem>>, vector<1x1x32xf32>
    %238 = vector.shape_cast %237 : vector<1x1x32xf32> to vector<1x32xf32>
    %cst_114 = arith.constant dense<0.000000e+00> : vector<1xf32>
    %239 = vector.multi_reduction <add>, %13, %cst_114 [1] : vector<1x32xf32> to vector<1xf32>
    %240 = vector.shape_cast %239 : vector<1xf32> to vector<1x1xf32>
    %cst_115 = arith.constant 3.200000e+01 : f32
    %241 = vector.broadcast %cst_115 : f32 to vector<1x1xf32>
    %242 = arith.divf %240, %241 : vector<1x1xf32>
    %243 = vector.broadcast %242 : vector<1x1xf32> to vector<1x32xf32>
    %244 = arith.subf %13, %243 : vector<1x32xf32>
    %245 = arith.mulf %244, %244 : vector<1x32xf32>
    %cst_116 = arith.constant dense<0.000000e+00> : vector<1xf32>
    %246 = vector.multi_reduction <add>, %245, %cst_116 [1] : vector<1x32xf32> to vector<1xf32>
    %247 = vector.shape_cast %246 : vector<1xf32> to vector<1x1xf32>
    %cst_117 = arith.constant 3.200000e+01 : f32
    %248 = vector.broadcast %cst_117 : f32 to vector<1x1xf32>
    %249 = arith.divf %247, %248 : vector<1x1xf32>
    %cst_118 = arith.constant 9.99999974E-6 : f32
    %250 = vector.broadcast %cst_118 : f32 to vector<1x1xf32>
    %251 = arith.addf %249, %250 : vector<1x1xf32>
    %252 = math.rsqrt %251 : vector<1x1xf32>
    %253 = vector.broadcast %252 : vector<1x1xf32> to vector<1x32xf32>
    %254 = arith.mulf %244, %253 : vector<1x32xf32>
    %255 = arith.mulf %254, %236 : vector<1x32xf32>
    %256 = arith.addf %255, %238 : vector<1x32xf32>
    %c2_119 = arith.constant 2 : index
    %c0_120 = arith.constant 0 : index
    %c0_121 = arith.constant 0 : index
    %257 = vector.load %arg9[%c2_119, %c0_120, %c0_121] : memref<4x32x128xf32, #tpu.memory_space<vmem>>, vector<1x32x128xf32>
    %258 = vector.shape_cast %257 : vector<1x32x128xf32> to vector<32x128xf32>
    %cst_122 = arith.constant dense<0.000000e+00> : vector<1x128xf32>
    %259 = tpu.matmul %256, %258, %cst_122 {dimension_numbers = #tpu.dot_dimension_numbers<[1], [0], [0], [1], [0, 0, 1, 1], [], []>} : vector<1x32xf32>, vector<32x128xf32>, vector<1x128xf32> -> vector<1x128xf32>
    %260 = vector.shape_cast %256 : vector<1x32xf32> to vector<1x32xf32>
    %261 = vector.broadcast %260 : vector<1x32xf32> to vector<8x32xf32>
    %262 = arith.select %4, %261, %8 : vector<8x32xi1>, vector<8x32xf32>
    %c2_123 = arith.constant 2 : index
    %c0_124 = arith.constant 0 : index
    %c0_125 = arith.constant 0 : index
    %263 = vector.load %arg10[%c2_123, %c0_124, %c0_125] : memref<4x32x128xf32, #tpu.memory_space<vmem>>, vector<1x32x128xf32>
    %264 = vector.shape_cast %263 : vector<1x32x128xf32> to vector<32x128xf32>
    %cst_126 = arith.constant dense<0.000000e+00> : vector<8x128xf32>
    %265 = tpu.matmul %262, %264, %cst_126 {dimension_numbers = #tpu.dot_dimension_numbers<[1], [0], [0], [1], [0, 0, 1, 1], [], []>} : vector<8x32xf32>, vector<32x128xf32>, vector<8x128xf32> -> vector<8x128xf32>
    %c2_127 = arith.constant 2 : index
    %c0_128 = arith.constant 0 : index
    %c0_129 = arith.constant 0 : index
    %266 = vector.load %arg11[%c2_127, %c0_128, %c0_129] : memref<4x32x128xf32, #tpu.memory_space<vmem>>, vector<1x32x128xf32>
    %267 = vector.shape_cast %266 : vector<1x32x128xf32> to vector<32x128xf32>
    %cst_130 = arith.constant dense<0.000000e+00> : vector<8x128xf32>
    %268 = tpu.matmul %262, %267, %cst_130 {dimension_numbers = #tpu.dot_dimension_numbers<[1], [0], [0], [1], [0, 0, 1, 1], [], []>} : vector<8x32xf32>, vector<32x128xf32>, vector<8x128xf32> -> vector<8x128xf32>
    %c2_131 = arith.constant 2 : index
    %c0_132 = arith.constant 0 : index
    %c0_133 = arith.constant 0 : index
    %269 = vector.load %arg12[%c2_131, %c0_132, %c0_133] : memref<4x3x128xf32, #tpu.memory_space<vmem>>, vector<1x3x128xf32>
    %270 = vector.shape_cast %269 : vector<1x3x128xf32> to vector<3x128xf32>
    %c2_134 = arith.constant 2 : index
    %c0_135 = arith.constant 0 : index
    %c0_136 = arith.constant 0 : index
    %271 = vector.load %arg13[%c2_134, %c0_135, %c0_136] : memref<4x3x128xf32, #tpu.memory_space<vmem>>, vector<1x3x128xf32>
    %272 = vector.shape_cast %271 : vector<1x3x128xf32> to vector<3x128xf32>
    %273 = tpu.concatenate %265, %270 in 0 : vector<8x128xf32>, vector<3x128xf32> -> vector<11x128xf32>
    %274 = tpu.concatenate %268, %272 in 0 : vector<8x128xf32>, vector<3x128xf32> -> vector<11x128xf32>
    %275 = vector.broadcast %259 : vector<1x128xf32> to vector<11x128xf32>
    %276 = arith.mulf %273, %275 : vector<11x128xf32>
    %cst_137 = arith.constant dense<0.000000e+00> : vector<11x4xf32>
    %277 = tpu.matmul %276, %0, %cst_137 {dimension_numbers = #tpu.dot_dimension_numbers<[1], [0], [0], [1], [0, 0, 1, 1], [], []>} : vector<11x128xf32>, vector<128x4xf32>, vector<11x4xf32> -> vector<11x4xf32>
    %cst_138 = arith.constant 0.176776692 : f32
    %278 = vector.broadcast %cst_138 : f32 to vector<11x4xf32>
    %279 = arith.mulf %277, %278 : vector<11x4xf32>
    %cst_139 = arith.constant dense<0xFF800000> : vector<4xf32>
    %280 = vector.multi_reduction <maximumf>, %279, %cst_139 [0] : vector<11x4xf32> to vector<4xf32>
    %281 = vector.shape_cast %280 : vector<4xf32> to vector<1x4xf32>
    %282 = vector.broadcast %281 : vector<1x4xf32> to vector<11x4xf32>
    %283 = arith.subf %279, %282 : vector<11x4xf32>
    %284 = math.exp %283 : vector<11x4xf32>
    %cst_140 = arith.constant dense<0.000000e+00> : vector<4xf32>
    %285 = vector.multi_reduction <add>, %284, %cst_140 [0] : vector<11x4xf32> to vector<4xf32>
    %286 = vector.shape_cast %285 : vector<4xf32> to vector<1x4xf32>
    %287 = tpu.reciprocal %286 {approx = true} : vector<1x4xf32> -> vector<1x4xf32>
    %288 = vector.broadcast %287 : vector<1x4xf32> to vector<11x4xf32>
    %289 = arith.mulf %284, %288 : vector<11x4xf32>
    %cst_141 = arith.constant dense<0.000000e+00> : vector<11x128xf32>
    %290 = tpu.matmul %289, %1, %cst_141 {dimension_numbers = #tpu.dot_dimension_numbers<[1], [0], [0], [1], [0, 0, 1, 1], [], []>} : vector<11x4xf32>, vector<4x128xf32>, vector<11x128xf32> -> vector<11x128xf32>
    %291 = arith.mulf %290, %274 : vector<11x128xf32>
    %cst_142 = arith.constant dense<0.000000e+00> : vector<128xf32>
    %292 = vector.multi_reduction <add>, %291, %cst_142 [0] : vector<11x128xf32> to vector<128xf32>
    %293 = vector.shape_cast %292 : vector<128xf32> to vector<1x128xf32>
    %c2_143 = arith.constant 2 : index
    %c0_144 = arith.constant 0 : index
    %c0_145 = arith.constant 0 : index
    %294 = vector.load %arg14[%c2_143, %c0_144, %c0_145] : memref<4x128x32xf32, #tpu.memory_space<vmem>>, vector<1x128x32xf32>
    %295 = vector.shape_cast %294 : vector<1x128x32xf32> to vector<128x32xf32>
    %cst_146 = arith.constant dense<0.000000e+00> : vector<1x32xf32>
    %296 = tpu.matmul %293, %295, %cst_146 {dimension_numbers = #tpu.dot_dimension_numbers<[1], [0], [0], [1], [0, 0, 1, 1], [], []>} : vector<1x128xf32>, vector<128x32xf32>, vector<1x32xf32> -> vector<1x32xf32>
    %c2_147 = arith.constant 2 : index
    %c0_148 = arith.constant 0 : index
    %c0_149 = arith.constant 0 : index
    %297 = vector.load %arg15[%c2_147, %c0_148, %c0_149] : memref<4x1x32xf32, #tpu.memory_space<vmem>>, vector<1x1x32xf32>
    %298 = vector.shape_cast %297 : vector<1x1x32xf32> to vector<1x32xf32>
    %299 = arith.addf %296, %298 : vector<1x32xf32>
    %300 = arith.addf %13, %299 : vector<1x32xf32>
    %c3 = arith.constant 3 : index
    %c0_150 = arith.constant 0 : index
    %c0_151 = arith.constant 0 : index
    %301 = vector.load %arg7[%c3, %c0_150, %c0_151] : memref<4x1x32xf32, #tpu.memory_space<vmem>>, vector<1x1x32xf32>
    %302 = vector.shape_cast %301 : vector<1x1x32xf32> to vector<1x32xf32>
    %c3_152 = arith.constant 3 : index
    %c0_153 = arith.constant 0 : index
    %c0_154 = arith.constant 0 : index
    %303 = vector.load %arg8[%c3_152, %c0_153, %c0_154] : memref<4x1x32xf32, #tpu.memory_space<vmem>>, vector<1x1x32xf32>
    %304 = vector.shape_cast %303 : vector<1x1x32xf32> to vector<1x32xf32>
    %cst_155 = arith.constant dense<0.000000e+00> : vector<1xf32>
    %305 = vector.multi_reduction <add>, %14, %cst_155 [1] : vector<1x32xf32> to vector<1xf32>
    %306 = vector.shape_cast %305 : vector<1xf32> to vector<1x1xf32>
    %cst_156 = arith.constant 3.200000e+01 : f32
    %307 = vector.broadcast %cst_156 : f32 to vector<1x1xf32>
    %308 = arith.divf %306, %307 : vector<1x1xf32>
    %309 = vector.broadcast %308 : vector<1x1xf32> to vector<1x32xf32>
    %310 = arith.subf %14, %309 : vector<1x32xf32>
    %311 = arith.mulf %310, %310 : vector<1x32xf32>
    %cst_157 = arith.constant dense<0.000000e+00> : vector<1xf32>
    %312 = vector.multi_reduction <add>, %311, %cst_157 [1] : vector<1x32xf32> to vector<1xf32>
    %313 = vector.shape_cast %312 : vector<1xf32> to vector<1x1xf32>
    %cst_158 = arith.constant 3.200000e+01 : f32
    %314 = vector.broadcast %cst_158 : f32 to vector<1x1xf32>
    %315 = arith.divf %313, %314 : vector<1x1xf32>
    %cst_159 = arith.constant 9.99999974E-6 : f32
    %316 = vector.broadcast %cst_159 : f32 to vector<1x1xf32>
    %317 = arith.addf %315, %316 : vector<1x1xf32>
    %318 = math.rsqrt %317 : vector<1x1xf32>
    %319 = vector.broadcast %318 : vector<1x1xf32> to vector<1x32xf32>
    %320 = arith.mulf %310, %319 : vector<1x32xf32>
    %321 = arith.mulf %320, %302 : vector<1x32xf32>
    %322 = arith.addf %321, %304 : vector<1x32xf32>
    %c3_160 = arith.constant 3 : index
    %c0_161 = arith.constant 0 : index
    %c0_162 = arith.constant 0 : index
    %323 = vector.load %arg9[%c3_160, %c0_161, %c0_162] : memref<4x32x128xf32, #tpu.memory_space<vmem>>, vector<1x32x128xf32>
    %324 = vector.shape_cast %323 : vector<1x32x128xf32> to vector<32x128xf32>
    %cst_163 = arith.constant dense<0.000000e+00> : vector<1x128xf32>
    %325 = tpu.matmul %322, %324, %cst_163 {dimension_numbers = #tpu.dot_dimension_numbers<[1], [0], [0], [1], [0, 0, 1, 1], [], []>} : vector<1x32xf32>, vector<32x128xf32>, vector<1x128xf32> -> vector<1x128xf32>
    %326 = vector.shape_cast %322 : vector<1x32xf32> to vector<1x32xf32>
    %327 = vector.broadcast %326 : vector<1x32xf32> to vector<8x32xf32>
    %328 = arith.select %4, %327, %6 : vector<8x32xi1>, vector<8x32xf32>
    %c3_164 = arith.constant 3 : index
    %c0_165 = arith.constant 0 : index
    %c0_166 = arith.constant 0 : index
    %329 = vector.load %arg10[%c3_164, %c0_165, %c0_166] : memref<4x32x128xf32, #tpu.memory_space<vmem>>, vector<1x32x128xf32>
    %330 = vector.shape_cast %329 : vector<1x32x128xf32> to vector<32x128xf32>
    %cst_167 = arith.constant dense<0.000000e+00> : vector<8x128xf32>
    %331 = tpu.matmul %328, %330, %cst_167 {dimension_numbers = #tpu.dot_dimension_numbers<[1], [0], [0], [1], [0, 0, 1, 1], [], []>} : vector<8x32xf32>, vector<32x128xf32>, vector<8x128xf32> -> vector<8x128xf32>
    %c3_168 = arith.constant 3 : index
    %c0_169 = arith.constant 0 : index
    %c0_170 = arith.constant 0 : index
    %332 = vector.load %arg11[%c3_168, %c0_169, %c0_170] : memref<4x32x128xf32, #tpu.memory_space<vmem>>, vector<1x32x128xf32>
    %333 = vector.shape_cast %332 : vector<1x32x128xf32> to vector<32x128xf32>
    %cst_171 = arith.constant dense<0.000000e+00> : vector<8x128xf32>
    %334 = tpu.matmul %328, %333, %cst_171 {dimension_numbers = #tpu.dot_dimension_numbers<[1], [0], [0], [1], [0, 0, 1, 1], [], []>} : vector<8x32xf32>, vector<32x128xf32>, vector<8x128xf32> -> vector<8x128xf32>
    %c3_172 = arith.constant 3 : index
    %c0_173 = arith.constant 0 : index
    %c0_174 = arith.constant 0 : index
    %335 = vector.load %arg12[%c3_172, %c0_173, %c0_174] : memref<4x3x128xf32, #tpu.memory_space<vmem>>, vector<1x3x128xf32>
    %336 = vector.shape_cast %335 : vector<1x3x128xf32> to vector<3x128xf32>
    %c3_175 = arith.constant 3 : index
    %c0_176 = arith.constant 0 : index
    %c0_177 = arith.constant 0 : index
    %337 = vector.load %arg13[%c3_175, %c0_176, %c0_177] : memref<4x3x128xf32, #tpu.memory_space<vmem>>, vector<1x3x128xf32>
    %338 = vector.shape_cast %337 : vector<1x3x128xf32> to vector<3x128xf32>
    %339 = tpu.concatenate %331, %336 in 0 : vector<8x128xf32>, vector<3x128xf32> -> vector<11x128xf32>
    %340 = tpu.concatenate %334, %338 in 0 : vector<8x128xf32>, vector<3x128xf32> -> vector<11x128xf32>
    %341 = vector.broadcast %325 : vector<1x128xf32> to vector<11x128xf32>
    %342 = arith.mulf %339, %341 : vector<11x128xf32>
    %cst_178 = arith.constant dense<0.000000e+00> : vector<11x4xf32>
    %343 = tpu.matmul %342, %0, %cst_178 {dimension_numbers = #tpu.dot_dimension_numbers<[1], [0], [0], [1], [0, 0, 1, 1], [], []>} : vector<11x128xf32>, vector<128x4xf32>, vector<11x4xf32> -> vector<11x4xf32>
    %cst_179 = arith.constant 0.176776692 : f32
    %344 = vector.broadcast %cst_179 : f32 to vector<11x4xf32>
    %345 = arith.mulf %343, %344 : vector<11x4xf32>
    %cst_180 = arith.constant dense<0xFF800000> : vector<4xf32>
    %346 = vector.multi_reduction <maximumf>, %345, %cst_180 [0] : vector<11x4xf32> to vector<4xf32>
    %347 = vector.shape_cast %346 : vector<4xf32> to vector<1x4xf32>
    %348 = vector.broadcast %347 : vector<1x4xf32> to vector<11x4xf32>
    %349 = arith.subf %345, %348 : vector<11x4xf32>
    %350 = math.exp %349 : vector<11x4xf32>
    %cst_181 = arith.constant dense<0.000000e+00> : vector<4xf32>
    %351 = vector.multi_reduction <add>, %350, %cst_181 [0] : vector<11x4xf32> to vector<4xf32>
    %352 = vector.shape_cast %351 : vector<4xf32> to vector<1x4xf32>
    %353 = tpu.reciprocal %352 {approx = true} : vector<1x4xf32> -> vector<1x4xf32>
    %354 = vector.broadcast %353 : vector<1x4xf32> to vector<11x4xf32>
    %355 = arith.mulf %350, %354 : vector<11x4xf32>
    %cst_182 = arith.constant dense<0.000000e+00> : vector<11x128xf32>
    %356 = tpu.matmul %355, %1, %cst_182 {dimension_numbers = #tpu.dot_dimension_numbers<[1], [0], [0], [1], [0, 0, 1, 1], [], []>} : vector<11x4xf32>, vector<4x128xf32>, vector<11x128xf32> -> vector<11x128xf32>
    %357 = arith.mulf %356, %340 : vector<11x128xf32>
    %cst_183 = arith.constant dense<0.000000e+00> : vector<128xf32>
    %358 = vector.multi_reduction <add>, %357, %cst_183 [0] : vector<11x128xf32> to vector<128xf32>
    %359 = vector.shape_cast %358 : vector<128xf32> to vector<1x128xf32>
    %c3_184 = arith.constant 3 : index
    %c0_185 = arith.constant 0 : index
    %c0_186 = arith.constant 0 : index
    %360 = vector.load %arg14[%c3_184, %c0_185, %c0_186] : memref<4x128x32xf32, #tpu.memory_space<vmem>>, vector<1x128x32xf32>
    %361 = vector.shape_cast %360 : vector<1x128x32xf32> to vector<128x32xf32>
    %cst_187 = arith.constant dense<0.000000e+00> : vector<1x32xf32>
    %362 = tpu.matmul %359, %361, %cst_187 {dimension_numbers = #tpu.dot_dimension_numbers<[1], [0], [0], [1], [0, 0, 1, 1], [], []>} : vector<1x128xf32>, vector<128x32xf32>, vector<1x32xf32> -> vector<1x32xf32>
    %c3_188 = arith.constant 3 : index
    %c0_189 = arith.constant 0 : index
    %c0_190 = arith.constant 0 : index
    %363 = vector.load %arg15[%c3_188, %c0_189, %c0_190] : memref<4x1x32xf32, #tpu.memory_space<vmem>>, vector<1x1x32xf32>
    %364 = vector.shape_cast %363 : vector<1x1x32xf32> to vector<1x32xf32>
    %365 = arith.addf %362, %364 : vector<1x32xf32>
    %366 = arith.addf %14, %365 : vector<1x32xf32>
    %367 = tpu.concatenate %231, %234 in 0 : vector<1x32xf32>, vector<1x32xf32> -> vector<2x32xf32>
    %c0_191 = arith.constant 0 : index
    %c0_192 = arith.constant 0 : index
    %c0_193 = arith.constant 0 : index
    %368 = vector.load %arg27[%c0_191, %c0_192, %c0_193] : memref<1x2x32xf32, #tpu.memory_space<vmem>>, vector<1x2x32xf32>
    %369 = vector.shape_cast %368 : vector<1x2x32xf32> to vector<2x32xf32>
    %370 = vector.shape_cast %367 : vector<2x32xf32> to vector<1x2x32xf32>
    tpu.vector_store %arg27[%c0_191, %c0_192, %c0_193], %370 {strides = array<i32>} : memref<1x2x32xf32, #tpu.memory_space<vmem>>, vector<1x2x32xf32>,
    %371 = vector.shape_cast %122 : vector<1x32xf32> to vector<1x32xf32>
    %372 = vector.broadcast %371 : vector<1x32xf32> to vector<8x32xf32>
    %373 = arith.select %4, %372, %6 : vector<8x32xi1>, vector<8x32xf32>
    %374 = vector.shape_cast %125 : vector<1x32xf32> to vector<1x32xf32>
    %375 = vector.broadcast %374 : vector<1x32xf32> to vector<8x32xf32>
    %376 = arith.select %4, %375, %8 : vector<8x32xi1>, vector<8x32xf32>
    %377 = vector.shape_cast %300 : vector<1x32xf32> to vector<1x32xf32>
    %378 = vector.broadcast %377 : vector<1x32xf32> to vector<8x32xf32>
    %379 = arith.select %4, %378, %6 : vector<8x32xi1>, vector<8x32xf32>
    %380 = vector.shape_cast %366 : vector<1x32xf32> to vector<1x32xf32>
    %381 = vector.broadcast %380 : vector<1x32xf32> to vector<8x32xf32>
    %382 = arith.select %4, %381, %8 : vector<8x32xi1>, vector<8x32xf32>
    %383 = tpu.concatenate %373, %376, %379, %382 in 1 : vector<8x32xf32>, vector<8x32xf32>, vector<8x32xf32>, vector<8x32xf32> -> vector<8x128xf32>
    %c0_194 = arith.constant 0 : index
    %c0_195 = arith.constant 0 : index
    %384 = vector.load %arg16[%c0_194, %c0_195] : memref<1x128xf32, #tpu.memory_space<vmem>>, vector<1x128xf32>
    %c0_196 = arith.constant 0 : index
    %c0_197 = arith.constant 0 : index
    %385 = vector.load %arg17[%c0_196, %c0_197] : memref<1x128xf32, #tpu.memory_space<vmem>>, vector<1x128xf32>
    %cst_198 = arith.constant dense<0.000000e+00> : vector<8xf32>
    %386 = vector.multi_reduction <add>, %383, %cst_198 [1] : vector<8x128xf32> to vector<8xf32>
    %387 = vector.shape_cast %386 : vector<8xf32> to vector<8x1xf32>
    %cst_199 = arith.constant 1.280000e+02 : f32
    %388 = vector.broadcast %cst_199 : f32 to vector<8x1xf32>
    %389 = arith.divf %387, %388 : vector<8x1xf32>
    %390 = vector.broadcast %389 : vector<8x1xf32> to vector<8x128xf32>
    %391 = arith.subf %383, %390 : vector<8x128xf32>
    %392 = arith.mulf %391, %391 : vector<8x128xf32>
    %cst_200 = arith.constant dense<0.000000e+00> : vector<8xf32>
    %393 = vector.multi_reduction <add>, %392, %cst_200 [1] : vector<8x128xf32> to vector<8xf32>
    %394 = vector.shape_cast %393 : vector<8xf32> to vector<8x1xf32>
    %cst_201 = arith.constant 1.280000e+02 : f32
    %395 = vector.broadcast %cst_201 : f32 to vector<8x1xf32>
    %396 = arith.divf %394, %395 : vector<8x1xf32>
    %cst_202 = arith.constant 9.99999974E-6 : f32
    %397 = vector.broadcast %cst_202 : f32 to vector<8x1xf32>
    %398 = arith.addf %396, %397 : vector<8x1xf32>
    %399 = math.rsqrt %398 : vector<8x1xf32>
    %400 = vector.broadcast %399 : vector<8x1xf32> to vector<8x128xf32>
    %401 = arith.mulf %391, %400 : vector<8x128xf32>
    %402 = vector.broadcast %384 : vector<1x128xf32> to vector<8x128xf32>
    %403 = arith.mulf %401, %402 : vector<8x128xf32>
    %404 = vector.broadcast %385 : vector<1x128xf32> to vector<8x128xf32>
    %405 = arith.addf %403, %404 : vector<8x128xf32>
    %c0_203 = arith.constant 0 : index
    %c0_204 = arith.constant 0 : index
    %406 = vector.load %arg18[%c0_203, %c0_204] : memref<128x128xf32, #tpu.memory_space<vmem>>, vector<128x128xf32>
    %cst_205 = arith.constant dense<0.000000e+00> : vector<8x128xf32>
    %407 = tpu.matmul %405, %406, %cst_205 {dimension_numbers = #tpu.dot_dimension_numbers<[1], [0], [0], [1], [0, 0, 1, 1], [], []>} : vector<8x128xf32>, vector<128x128xf32>, vector<8x128xf32> -> vector<8x128xf32>
    %c0_206 = arith.constant 0 : index
    %c0_207 = arith.constant 0 : index
    %408 = vector.load %arg19[%c0_206, %c0_207] : memref<1x128xf32, #tpu.memory_space<vmem>>, vector<1x128xf32>
    %409 = vector.broadcast %408 : vector<1x128xf32> to vector<8x128xf32>
    %410 = arith.addf %407, %409 : vector<8x128xf32>
    %411 = arith.addf %410, %383 : vector<8x128xf32>
    %c0_208 = arith.constant 0 : index
    %c0_209 = arith.constant 0 : index
    %412 = vector.load %arg20[%c0_208, %c0_209] : memref<1x128xf32, #tpu.memory_space<vmem>>, vector<1x128xf32>
    %c0_210 = arith.constant 0 : index
    %c0_211 = arith.constant 0 : index
    %413 = vector.load %arg21[%c0_210, %c0_211] : memref<1x128xf32, #tpu.memory_space<vmem>>, vector<1x128xf32>
    %cst_212 = arith.constant dense<0.000000e+00> : vector<8xf32>
    %414 = vector.multi_reduction <add>, %411, %cst_212 [1] : vector<8x128xf32> to vector<8xf32>
    %415 = vector.shape_cast %414 : vector<8xf32> to vector<8x1xf32>
    %cst_213 = arith.constant 1.280000e+02 : f32
    %416 = vector.broadcast %cst_213 : f32 to vector<8x1xf32>
    %417 = arith.divf %415, %416 : vector<8x1xf32>
    %418 = vector.broadcast %417 : vector<8x1xf32> to vector<8x128xf32>
    %419 = arith.subf %411, %418 : vector<8x128xf32>
    %420 = arith.mulf %419, %419 : vector<8x128xf32>
    %cst_214 = arith.constant dense<0.000000e+00> : vector<8xf32>
    %421 = vector.multi_reduction <add>, %420, %cst_214 [1] : vector<8x128xf32> to vector<8xf32>
    %422 = vector.shape_cast %421 : vector<8xf32> to vector<8x1xf32>
    %cst_215 = arith.constant 1.280000e+02 : f32
    %423 = vector.broadcast %cst_215 : f32 to vector<8x1xf32>
    %424 = arith.divf %422, %423 : vector<8x1xf32>
    %cst_216 = arith.constant 9.99999974E-6 : f32
    %425 = vector.broadcast %cst_216 : f32 to vector<8x1xf32>
    %426 = arith.addf %424, %425 : vector<8x1xf32>
    %427 = math.rsqrt %426 : vector<8x1xf32>
    %428 = vector.broadcast %427 : vector<8x1xf32> to vector<8x128xf32>
    %429 = arith.mulf %419, %428 : vector<8x128xf32>
    %430 = vector.broadcast %412 : vector<1x128xf32> to vector<8x128xf32>
    %431 = arith.mulf %429, %430 : vector<8x128xf32>
    %432 = vector.broadcast %413 : vector<1x128xf32> to vector<8x128xf32>
    %433 = arith.addf %431, %432 : vector<8x128xf32>
    %c0_217 = arith.constant 0 : index
    %c0_218 = arith.constant 0 : index
    %434 = vector.load %arg22[%c0_217, %c0_218] : memref<128x256xf32, #tpu.memory_space<vmem>>, vector<128x256xf32>
    %cst_219 = arith.constant dense<0.000000e+00> : vector<8x256xf32>
    %435 = tpu.matmul %433, %434, %cst_219 {dimension_numbers = #tpu.dot_dimension_numbers<[1], [0], [0], [1], [0, 0, 1, 1], [], []>} : vector<8x128xf32>, vector<128x256xf32>, vector<8x256xf32> -> vector<8x256xf32>
    %c0_220 = arith.constant 0 : index
    %c0_221 = arith.constant 0 : index
    %436 = vector.load %arg23[%c0_220, %c0_221] : memref<1x256xf32, #tpu.memory_space<vmem>>, vector<1x256xf32>
    %437 = vector.broadcast %436 : vector<1x256xf32> to vector<8x256xf32>
    %438 = arith.addf %435, %437 : vector<8x256xf32>
    %439 = arith.mulf %438, %438 : vector<8x256xf32>
    %440 = arith.mulf %438, %439 : vector<8x256xf32>
    %cst_222 = arith.constant 4.471500e-02 : f32
    %441 = vector.broadcast %cst_222 : f32 to vector<8x256xf32>
    %442 = arith.mulf %441, %440 : vector<8x256xf32>
    %443 = arith.addf %438, %442 : vector<8x256xf32>
    %cst_223 = arith.constant 0.797884583 : f32
    %444 = vector.broadcast %cst_223 : f32 to vector<8x256xf32>
    %445 = arith.mulf %444, %443 : vector<8x256xf32>
    %446 = math.tanh %445 : vector<8x256xf32>
    %cst_224 = arith.constant 1.000000e+00 : f32
    %447 = vector.broadcast %cst_224 : f32 to vector<8x256xf32>
    %448 = arith.addf %447, %446 : vector<8x256xf32>
    %cst_225 = arith.constant 5.000000e-01 : f32
    %449 = vector.broadcast %cst_225 : f32 to vector<8x256xf32>
    %450 = arith.mulf %449, %448 : vector<8x256xf32>
    %451 = arith.mulf %438, %450 : vector<8x256xf32>
    %c0_226 = arith.constant 0 : index
    %c0_227 = arith.constant 0 : index
    %452 = vector.load %arg24[%c0_226, %c0_227] : memref<256x128xf32, #tpu.memory_space<vmem>>, vector<256x128xf32>
    %cst_228 = arith.constant dense<0.000000e+00> : vector<8x128xf32>
    %453 = tpu.matmul %451, %452, %cst_228 {dimension_numbers = #tpu.dot_dimension_numbers<[1], [0], [0], [1], [0, 0, 1, 1], [], []>} : vector<8x256xf32>, vector<256x128xf32>, vector<8x128xf32> -> vector<8x128xf32>
    %c0_229 = arith.constant 0 : index
    %c0_230 = arith.constant 0 : index
    %454 = vector.load %arg25[%c0_229, %c0_230] : memref<1x128xf32, #tpu.memory_space<vmem>>, vector<1x128xf32>
    %455 = vector.broadcast %454 : vector<1x128xf32> to vector<8x128xf32>
    %456 = arith.addf %453, %455 : vector<8x128xf32>
    %457 = arith.addf %456, %411 : vector<8x128xf32>
    %c0_231 = arith.constant 0 : index
    %c0_232 = arith.constant 0 : index
    %c0_233 = arith.constant 0 : index
    %458 = vector.load %arg26[%c0_231, %c0_232, %c0_233] : memref<1x8x128xf32, #tpu.memory_space<vmem>>, vector<1x8x128xf32>
    %459 = vector.shape_cast %458 : vector<1x8x128xf32> to vector<8x128xf32>
    %460 = vector.shape_cast %457 : vector<8x128xf32> to vector<1x8x128xf32>
    tpu.vector_store %arg26[%c0_231, %c0_232, %c0_233], %460 {strides = array<i32>} : memref<1x8x128xf32, #tpu.memory_space<vmem>>, vector<1x8x128xf32>,
    return
  }
  func.func @transform_0(%arg0: i32) -> (i32, i32, i32) {
    %c0_i32 = arith.constant 0 : i32
    %c0_i32_0 = arith.constant 0 : i32
    %c0_i32_1 = arith.constant 0 : i32
    return %arg0, %c0_i32, %c0_i32_0 : i32, i32, i32
  }
  func.func @transform_1(%arg0: i32) -> (i32, i32, i32) {
    %c0_i32 = arith.constant 0 : i32
    %c0_i32_0 = arith.constant 0 : i32
    %c0_i32_1 = arith.constant 0 : i32
    return %arg0, %c0_i32, %c0_i32_0 : i32, i32, i32
  }
  func.func @transform_2(%arg0: i32) -> (i32, i32, i32) {
    %c0_i32 = arith.constant 0 : i32
    %c0_i32_0 = arith.constant 0 : i32
    %c0_i32_1 = arith.constant 0 : i32
    return %arg0, %c0_i32, %c0_i32_0 : i32, i32, i32
  }
  func.func @transform_3(%arg0: i32) -> (i32, i32, i32) {
    %c0_i32 = arith.constant 0 : i32
    %c0_i32_0 = arith.constant 0 : i32
    %c0_i32_1 = arith.constant 0 : i32
    return %arg0, %c0_i32, %c0_i32_0 : i32, i32, i32
  }
  func.func @transform_4(%arg0: i32) -> (i32, i32) {
    %c0_i32 = arith.constant 0 : i32
    %c0_i32_0 = arith.constant 0 : i32
    %c0_i32_1 = arith.constant 0 : i32
    return %c0_i32, %c0_i32_0 : i32, i32
  }
  func.func @transform_5(%arg0: i32) -> (i32, i32) {
    %c0_i32 = arith.constant 0 : i32
    %c0_i32_0 = arith.constant 0 : i32
    %c0_i32_1 = arith.constant 0 : i32
    return %c0_i32, %c0_i32_0 : i32, i32
  }
  func.func @transform_6(%arg0: i32) -> (i32, i32, i32) {
    %c0_i32 = arith.constant 0 : i32
    %c0_i32_0 = arith.constant 0 : i32
    %c0_i32_1 = arith.constant 0 : i32
    %c0_i32_2 = arith.constant 0 : i32
    return %c0_i32, %c0_i32_0, %c0_i32_1 : i32, i32, i32
  }
  func.func @transform_7(%arg0: i32) -> (i32, i32, i32) {
    %c0_i32 = arith.constant 0 : i32
    %c0_i32_0 = arith.constant 0 : i32
    %c0_i32_1 = arith.constant 0 : i32
    %c0_i32_2 = arith.constant 0 : i32
    return %c0_i32, %c0_i32_0, %c0_i32_1 : i32, i32, i32
  }
  func.func @transform_8(%arg0: i32) -> (i32, i32, i32) {
    %c0_i32 = arith.constant 0 : i32
    %c0_i32_0 = arith.constant 0 : i32
    %c0_i32_1 = arith.constant 0 : i32
    %c0_i32_2 = arith.constant 0 : i32
    return %c0_i32, %c0_i32_0, %c0_i32_1 : i32, i32, i32
  }
  func.func @transform_9(%arg0: i32) -> (i32, i32, i32) {
    %c0_i32 = arith.constant 0 : i32
    %c0_i32_0 = arith.constant 0 : i32
    %c0_i32_1 = arith.constant 0 : i32
    %c0_i32_2 = arith.constant 0 : i32
    return %c0_i32, %c0_i32_0, %c0_i32_1 : i32, i32, i32
  }
  func.func @transform_10(%arg0: i32) -> (i32, i32, i32) {
    %c0_i32 = arith.constant 0 : i32
    %c0_i32_0 = arith.constant 0 : i32
    %c0_i32_1 = arith.constant 0 : i32
    %c0_i32_2 = arith.constant 0 : i32
    return %c0_i32, %c0_i32_0, %c0_i32_1 : i32, i32, i32
  }
  func.func @transform_11(%arg0: i32) -> (i32, i32, i32) {
    %c0_i32 = arith.constant 0 : i32
    %c0_i32_0 = arith.constant 0 : i32
    %c0_i32_1 = arith.constant 0 : i32
    %c0_i32_2 = arith.constant 0 : i32
    return %c0_i32, %c0_i32_0, %c0_i32_1 : i32, i32, i32
  }
  func.func @transform_12(%arg0: i32) -> (i32, i32, i32) {
    %c0_i32 = arith.constant 0 : i32
    %c0_i32_0 = arith.constant 0 : i32
    %c0_i32_1 = arith.constant 0 : i32
    %c0_i32_2 = arith.constant 0 : i32
    return %c0_i32, %c0_i32_0, %c0_i32_1 : i32, i32, i32
  }
  func.func @transform_13(%arg0: i32) -> (i32, i32, i32) {
    %c0_i32 = arith.constant 0 : i32
    %c0_i32_0 = arith.constant 0 : i32
    %c0_i32_1 = arith.constant 0 : i32
    %c0_i32_2 = arith.constant 0 : i32
    return %c0_i32, %c0_i32_0, %c0_i32_1 : i32, i32, i32
  }
  func.func @transform_14(%arg0: i32) -> (i32, i32, i32) {
    %c0_i32 = arith.constant 0 : i32
    %c0_i32_0 = arith.constant 0 : i32
    %c0_i32_1 = arith.constant 0 : i32
    %c0_i32_2 = arith.constant 0 : i32
    return %c0_i32, %c0_i32_0, %c0_i32_1 : i32, i32, i32
  }
  func.func @transform_15(%arg0: i32) -> (i32, i32) {
    %c0_i32 = arith.constant 0 : i32
    %c0_i32_0 = arith.constant 0 : i32
    %c0_i32_1 = arith.constant 0 : i32
    return %c0_i32, %c0_i32_0 : i32, i32
  }
  func.func @transform_16(%arg0: i32) -> (i32, i32) {
    %c0_i32 = arith.constant 0 : i32
    %c0_i32_0 = arith.constant 0 : i32
    %c0_i32_1 = arith.constant 0 : i32
    return %c0_i32, %c0_i32_0 : i32, i32
  }
  func.func @transform_17(%arg0: i32) -> (i32, i32) {
    %c0_i32 = arith.constant 0 : i32
    %c0_i32_0 = arith.constant 0 : i32
    %c0_i32_1 = arith.constant 0 : i32
    return %c0_i32, %c0_i32_0 : i32, i32
  }
  func.func @transform_18(%arg0: i32) -> (i32, i32) {
    %c0_i32 = arith.constant 0 : i32
    %c0_i32_0 = arith.constant 0 : i32
    %c0_i32_1 = arith.constant 0 : i32
    return %c0_i32, %c0_i32_0 : i32, i32
  }
  func.func @transform_19(%arg0: i32) -> (i32, i32) {
    %c0_i32 = arith.constant 0 : i32
    %c0_i32_0 = arith.constant 0 : i32
    %c0_i32_1 = arith.constant 0 : i32
    return %c0_i32, %c0_i32_0 : i32, i32
  }
  func.func @transform_20(%arg0: i32) -> (i32, i32) {
    %c0_i32 = arith.constant 0 : i32
    %c0_i32_0 = arith.constant 0 : i32
    %c0_i32_1 = arith.constant 0 : i32
    return %c0_i32, %c0_i32_0 : i32, i32
  }
  func.func @transform_21(%arg0: i32) -> (i32, i32) {
    %c0_i32 = arith.constant 0 : i32
    %c0_i32_0 = arith.constant 0 : i32
    %c0_i32_1 = arith.constant 0 : i32
    return %c0_i32, %c0_i32_0 : i32, i32
  }
  func.func @transform_22(%arg0: i32) -> (i32, i32) {
    %c0_i32 = arith.constant 0 : i32
    %c0_i32_0 = arith.constant 0 : i32
    %c0_i32_1 = arith.constant 0 : i32
    return %c0_i32, %c0_i32_0 : i32, i32
  }
  func.func @transform_23(%arg0: i32) -> (i32, i32) {
    %c0_i32 = arith.constant 0 : i32
    %c0_i32_0 = arith.constant 0 : i32
    %c0_i32_1 = arith.constant 0 : i32
    return %c0_i32, %c0_i32_0 : i32, i32
  }
  func.func @transform_24(%arg0: i32) -> (i32, i32) {
    %c0_i32 = arith.constant 0 : i32
    %c0_i32_0 = arith.constant 0 : i32
    %c0_i32_1 = arith.constant 0 : i32
    return %c0_i32, %c0_i32_0 : i32, i32
  }
  func.func @transform_25(%arg0: i32) -> (i32, i32, i32) {
    %c0_i32 = arith.constant 0 : i32
    %c0_i32_0 = arith.constant 0 : i32
    %c0_i32_1 = arith.constant 0 : i32
    return %arg0, %c0_i32, %c0_i32_0 : i32, i32, i32
  }
  func.func @transform_26(%arg0: i32) -> (i32, i32, i32) {
    %c0_i32 = arith.constant 0 : i32
    %c0_i32_0 = arith.constant 0 : i32
    %c0_i32_1 = arith.constant 0 : i32
    return %arg0, %c0_i32, %c0_i32_0 : i32, i32, i32
  }
}

</mosaic_0001>

<llo_original>
// kernel: tpu_custom_call.1
$region0: #{tpu_custom_call.1}
  #allocation0 [shape = 'u32[]', space=smem, size = 0x4, offset = 0x4, fixed_abs, tag = 'smem constant byte address 0x4 - core index']
  #allocation1 [shape = 'u32[72,128]{1,0:T(1,128)}', space=vmem, size = 0x9000, scoped, tag = 'internal scratch']
  %s0 = inlined_call_operand.vmem [shape: f32[2,8,32], index: 0, kind: input, shape index: {}]
  %s1 = inlined_call_operand.vmem [shape: f32[2,8,32], index: 1, kind: input, shape index: {}]
  %s2 = inlined_call_operand.vmem [shape: f32[2,8,32], index: 2, kind: input, shape index: {}]
  %s3 = inlined_call_operand.vmem [shape: f32[2,8,32], index: 3, kind: input, shape index: {}]
  %s4 = inlined_call_operand.vmem [shape: f32[128,4], index: 4, kind: input, shape index: {}]
  %s5 = inlined_call_operand.vmem [shape: f32[4,128], index: 5, kind: input, shape index: {}]
  %s6 = inlined_call_operand.vmem [shape: f32[4,1,32], index: 6, kind: input, shape index: {}]
  %s7 = inlined_call_operand.hbm [shape: f32[4,1,32], index: 7, kind: input, shape index: {}]
  %s8 = inlined_call_operand.vmem [shape: f32[4,32,128], index: 8, kind: input, shape index: {}]
  %s9 = inlined_call_operand.hbm [shape: f32[4,32,128], index: 9, kind: input, shape index: {}]
  %s10 = inlined_call_operand.hbm [shape: f32[4,32,128], index: 10, kind: input, shape index: {}]
  %s11 = inlined_call_operand.vmem [shape: f32[4,3,128], index: 11, kind: input, shape index: {}]
  %s12 = inlined_call_operand.vmem [shape: f32[4,3,128], index: 12, kind: input, shape index: {}]
  %s13 = inlined_call_operand.vmem [shape: f32[4,128,32], index: 13, kind: input, shape index: {}]
  %s14 = inlined_call_operand.hbm [shape: f32[4,1,32], index: 14, kind: input, shape index: {}]
  %s15 = inlined_call_operand.hbm [shape: f32[1,128], index: 15, kind: input, shape index: {}]
  %s16 = inlined_call_operand.hbm [shape: f32[1,128], index: 16, kind: input, shape index: {}]
  %s17 = inlined_call_operand.hbm [shape: f32[128,128], index: 17, kind: input, shape index: {}]
  %s18 = inlined_call_operand.vmem [shape: f32[1,128], index: 18, kind: input, shape index: {}]
  %s19 = inlined_call_operand.vmem [shape: f32[1,128], index: 19, kind: input, shape index: {}]
  %s20 = inlined_call_operand.vmem [shape: f32[1,128], index: 20, kind: input, shape index: {}]
  %s21 = inlined_call_operand.vmem [shape: f32[128,256], index: 21, kind: input, shape index: {}]
  %s22 = inlined_call_operand.vmem [shape: f32[1,256], index: 22, kind: input, shape index: {}]
  %s23 = inlined_call_operand.vmem [shape: f32[256,128], index: 23, kind: input, shape index: {}]
  %s24 = inlined_call_operand.hbm [shape: f32[1,128], index: 24, kind: input, shape index: {}]
  %s25 = inlined_call_operand.hbm [shape: f32[2,8,128], index: 25, kind: output, shape index: {0}]
  %s26 = inlined_call_operand.hbm [shape: f32[2,2,32], index: 26, kind: output, shape index: {1}]
  %27 = xla_tuple %s25, %s26
  %s28 = sld [smem:[#allocation0]]
  $region173: #{tpu_custom_call.1} parent=0
    _
  %s30 = ssub.s32 1, %s28
  %s31 = scalar_select 0, %s30, %s28
  $region1: #{tpu_custom_call.1} parent=0
    #allocation2 [shape = 'u8[2048]{0}', space=vmem, size = 0x800, scoped, tag = 'input window, operand 7, single buffered']
    #allocation3 [shape = 's32[2]{0}', space=sflag, size = 0x8, scoped, tag = 'scoped memory for tpu_custom_call.1']
    #allocation4 [shape = 's32[2]{0}', space=sflag, size = 0x8, scoped, tag = 'scoped memory for tpu_custom_call.1']
    #allocation5 [shape = 'u8[65536]{0}', space=vmem, size = 0x10000, scoped, tag = 'input window, operand 9, single buffered']
    #allocation6 [shape = 's32[1]{0}', space=sflag, size = 0x4, scoped, tag = 'scoped memory for tpu_custom_call.1']
    #allocation7 [shape = 'u8[65536]{0}', space=vmem, size = 0x10000, scoped, tag = 'input window, operand 10, single buffered']
    #allocation8 [shape = 'u8[2048]{0}', space=vmem, size = 0x800, scoped, tag = 'input window, operand 14, single buffered']
    #allocation9 [shape = 's32[1]{0}', space=sflag, size = 0x4, scoped, tag = 'scoped memory for tpu_custom_call.1']
    #allocation10 [shape = 'u8[512]{0}', space=vmem, size = 0x400, scoped, tag = 'input window, operand 15, single buffered']
    #allocation11 [shape = 'u8[512]{0}', space=vmem, size = 0x400, scoped, tag = 'input window, operand 16, single buffered']
    #allocation12 [shape = 's32[1]{0}', space=sflag, size = 0x4, scoped, tag = 'scoped memory for tpu_custom_call.1']
    #allocation13 [shape = 'u8[65536]{0}', space=vmem, size = 0x10000, scoped, tag = 'input window, operand 17, single buffered']
    #allocation14 [shape = 'u8[512]{0}', space=vmem, size = 0x400, scoped, tag = 'input window, operand 24, single buffered']
    #allocation15 [shape = 's32[1]{0}', space=sflag, size = 0x4, scoped, tag = 'scoped memory for tpu_custom_call.1']
    #allocation16 [shape = 'u8[8192]{0}', space=vmem, size = 0x2000, scoped, tag = 'output window, operand 0']
    #allocation17 [shape = 'u8[2048]{0}', space=vmem, size = 0x800, scoped, tag = 'output window, operand 1']
    #allocation18 [shape = 's32[2]{0}', space=sflag, size = 0x8, scoped, tag = 'scoped memory for tpu_custom_call.1']
    %32 = vsyncpa [#allocation3], 0
    %33 = vsyncpa [#allocation6], 0
    %34 = vsyncpa [#allocation9], 0
    %35 = vsyncpa [#allocation12], 0
    %36 = vsyncpa [#allocation15], 0
    %37 = vsyncpa [#allocation4], 0
    %s38 = scalar_lea.sflag [#allocation4], 1
    %39 = vsyncpa %s38, 0
    %40 = vsyncpa [#allocation18], 0
    %s41 = scalar_lea.sflag [#allocation18], 1
    %42 = vsyncpa %s41, 0
    loop: start=0, step=1, limit=4
    $region2: #{tpu_custom_call.1} parent=1 // loop_pre_header
      _
    $region3: #{tpu_custom_call.1} parent=1 // loop_header
      %s44 = sphi 0, %s48
      %p45 = scmp.ge.s32.totalorder %s44, 4
      %s54 = sphi 0, %s56
      %s57 = sphi 0, %s54
      %s58 = sphi 0, %s57
      %s74 = sphi 0, %s58
      %s80 = sphi 0, %s82
      %s83 = sphi 0, %s80
      %s84 = sphi 0, %s83
      %s100 = sphi 0, %s84
      %s106 = sphi 0, %s108
      %s109 = sphi 0, %s106
      %s110 = sphi 0, %s109
      %s126 = sphi 0, %s110
      %s132 = sphi 0, %s134
      %s135 = sphi 0, %s132
      %s136 = sphi 0, %s135
      %s152 = sphi 0, %s136
      %s156 = sphi 0, %s156
      %s158 = sphi 0, %s156
      %s159 = sphi 0, %s158
      %s173 = sphi 0, %s159
      %s177 = sphi 0, %s177
      %s179 = sphi 0, %s177
      %s180 = sphi 0, %s179
      %s194 = sphi 0, %s180
      %s198 = sphi 0, %s198
      %s200 = sphi 0, %s198
      %s201 = sphi 0, %s200
      %s215 = sphi 0, %s201
      %s219 = sphi 0, %s219
      %s221 = sphi 0, %s219
      %s222 = sphi 0, %s221
      %s236 = sphi 0, %s222
      %s240 = sphi 0, %s240
      %s242 = sphi 0, %s240
      %s243 = sphi 0, %s242
      %s257 = sphi 0, %s243
      %s261 = sphi 0, %s261
      %s263 = sphi 0, %s261
      %s264 = sphi 0, %s263
      %s278 = sphi 0, %s264
      %s282 = sphi 0, %s282
      %s284 = sphi 0, %s282
      %s285 = sphi 0, %s284
      %s299 = sphi 0, %s285
      %s303 = sphi 0, %s303
      %s305 = sphi 0, %s303
      %s306 = sphi 0, %s305
      %s320 = sphi 0, %s306
      %s324 = sphi 0, %s324
      %s326 = sphi 0, %s324
      %s327 = sphi 0, %s326
      %s341 = sphi 0, %s327
      %s345 = sphi 0, %s345
      %s347 = sphi 0, %s345
      %s348 = sphi 0, %s347
      %s362 = sphi 0, %s348
      %s366 = sphi 0, %s366
      %s368 = sphi 0, %s366
      %s369 = sphi 0, %s368
      %s383 = sphi 0, %s369
      %s387 = sphi 0, %s387
      %s389 = sphi 0, %s387
      %s390 = sphi 0, %s389
      %s404 = sphi 0, %s390
      %s408 = sphi 0, %s408
      %s410 = sphi 0, %s408
      %s411 = sphi 0, %s410
      %s425 = sphi 0, %s411
      %s429 = sphi 0, %s429
      %s431 = sphi 0, %s429
      %s432 = sphi 0, %s431
      %s446 = sphi 0, %s432
      %s450 = sphi 0, %s450
      %s452 = sphi 0, %s450
      %s453 = sphi 0, %s452
      %s467 = sphi 0, %s453
      %s471 = sphi 0, %s471
      %s473 = sphi 0, %s471
      %s474 = sphi 0, %s473
      %s488 = sphi 0, %s474
      %s492 = sphi 0, %s492
      %s494 = sphi 0, %s492
      %s495 = sphi 0, %s494
      %s509 = sphi 0, %s495
      %s513 = sphi 0, %s513
      %s515 = sphi 0, %s513
      %s516 = sphi 0, %s515
      %s530 = sphi 0, %s516
      %s534 = sphi 0, %s534
      %s536 = sphi 0, %s534
      %s537 = sphi 0, %s536
      %s551 = sphi 0, %s537
      %s555 = sphi 0, %s555
      %s557 = sphi 0, %s555
      %s558 = sphi 0, %s557
      %s572 = sphi 0, %s558
      %s576 = sphi 0, %s576
      %s578 = sphi 0, %s576
      %s579 = sphi 0, %s578
      %s593 = sphi 0, %s579
      %s599 = sphi 0, %s601
      %s602 = sphi 0, %s599
      %s603 = sphi 0, %s602
      %s619 = sphi 0, %s603
      %s625 = sphi 0, %s627
      %s628 = sphi 0, %s625
      %s629 = sphi 0, %s628
      %s645 = sphi 0, %s629
    $region4: #{tpu_custom_call.1} parent=1 // loop_header_branch
      %47 = sbr.rel (%p45) target = $region8
    $region5: #{tpu_custom_call.1} parent=1 // loop_body
      %s49 = ssub.s32 %s44, 1
      %s50 = ssub.s32 %s44, 2
      %s51 = sadd.s32 %s44, 1
      %s52 = ssub.s32 %s44, %s51
      %p53 = scmp.eq.s32.totalorder %s52, 0
      %s55 = sadd.s32 %s54, 1
      %s56 = scalar_select %p53, %s54, %s55
      %p59 = pneg %p53
      %p60 = scmp.eq.s32.totalorder %s44, 1
      %p61 = por %p59, %p60
      %p62 = scmp.ne.s32.totalorder %s54, %s57
      %p63 = scmp.eq.s32.totalorder %s44, 0
      %p64 = por %p62, %p63
      %p65 = scmp.ne.s32.totalorder %s54, %s57
      %p66 = scmp.eq.s32.totalorder %s49, 1
      %p67 = por %p65, %p66
      %p68 = scmp.ne.s32.totalorder %s57, %s58
      %p69 = scmp.eq.s32.totalorder %s49, 0
      %p70 = por %p68, %p69
      %p71 = scmp.ne.s32.totalorder %s57, %s58
      %p72 = scmp.eq.s32.totalorder %s50, 1
      %p73 = por %p71, %p72
      %p75 = scmp.ne.s32.totalorder %s58, %s74
      %p76 = scmp.eq.s32.totalorder %s50, 0
      %p77 = por %p75, %p76
      %s78 = ssub.s32 %s44, %s51
      %p79 = scmp.eq.s32.totalorder %s78, 0
      %s81 = sadd.s32 %s80, 1
      %s82 = scalar_select %p79, %s80, %s81
      %p85 = pneg %p79
      %p86 = scmp.eq.s32.totalorder %s44, 1
      %p87 = por %p85, %p86
      %p88 = scmp.ne.s32.totalorder %s80, %s83
      %p89 = scmp.eq.s32.totalorder %s44, 0
      %p90 = por %p88, %p89
      %p91 = scmp.ne.s32.totalorder %s80, %s83
      %p92 = scmp.eq.s32.totalorder %s49, 1
      %p93 = por %p91, %p92
      %p94 = scmp.ne.s32.totalorder %s83, %s84
      %p95 = scmp.eq.s32.totalorder %s49, 0
      %p96 = por %p94, %p95
      %p97 = scmp.ne.s32.totalorder %s83, %s84
      %p98 = scmp.eq.s32.totalorder %s50, 1
      %p99 = por %p97, %p98
      %p101 = scmp.ne.s32.totalorder %s84, %s100
      %p102 = scmp.eq.s32.totalorder %s50, 0
      %p103 = por %p101, %p102
      %s104 = ssub.s32 %s44, %s51
      %p105 = scmp.eq.s32.totalorder %s104, 0
      %s107 = sadd.s32 %s106, 1
      %s108 = scalar_select %p105, %s106, %s107
      %p111 = pneg %p105
      %p112 = scmp.eq.s32.totalorder %s44, 1
      %p113 = por %p111, %p112
      %p114 = scmp.ne.s32.totalorder %s106, %s109
      %p115 = scmp.eq.s32.totalorder %s44, 0
      %p116 = por %p114, %p115
      %p117 = scmp.ne.s32.totalorder %s106, %s109
      %p118 = scmp.eq.s32.totalorder %s49, 1
      %p119 = por %p117, %p118
      %p120 = scmp.ne.s32.totalorder %s109, %s110
      %p121 = scmp.eq.s32.totalorder %s49, 0
      %p122 = por %p120, %p121
      %p123 = scmp.ne.s32.totalorder %s109, %s110
      %p124 = scmp.eq.s32.totalorder %s50, 1
      %p125 = por %p123, %p124
      %p127 = scmp.ne.s32.totalorder %s110, %s126
      %p128 = scmp.eq.s32.totalorder %s50, 0
      %p129 = por %p127, %p128
      %s130 = ssub.s32 %s44, %s51
      %p131 = scmp.eq.s32.totalorder %s130, 0
      %s133 = sadd.s32 %s132, 1
      %s134 = scalar_select %p131, %s132, %s133
      %p137 = pneg %p131
      %p138 = scmp.eq.s32.totalorder %s44, 1
      %p139 = por %p137, %p138
      %p140 = scmp.ne.s32.totalorder %s132, %s135
      %p141 = scmp.eq.s32.totalorder %s44, 0
      %p142 = por %p140, %p141
      %p143 = scmp.ne.s32.totalorder %s132, %s135
      %p144 = scmp.eq.s32.totalorder %s49, 1
      %p145 = por %p143, %p144
      %p146 = scmp.ne.s32.totalorder %s135, %s136
      %p147 = scmp.eq.s32.totalorder %s49, 0
      %p148 = por %p146, %p147
      %p149 = scmp.ne.s32.totalorder %s135, %s136
      %p150 = scmp.eq.s32.totalorder %s50, 1
      %p151 = por %p149, %p150
      %p153 = scmp.ne.s32.totalorder %s136, %s152
      %p154 = scmp.eq.s32.totalorder %s50, 0
      %p155 = por %p153, %p154
      %s157 = sadd.s32 %s156, 1
      %p160 = scmp.eq.s32.totalorder %s44, 1
      %p161 = scmp.ne.s32.totalorder %s156, %s158
      %p162 = scmp.eq.s32.totalorder %s44, 0
      %p163 = por %p161, %p162
      %p164 = scmp.ne.s32.totalorder %s156, %s158
      %p165 = scmp.eq.s32.totalorder %s49, 1
      %p166 = por %p164, %p165
      %p167 = scmp.ne.s32.totalorder %s158, %s159
      %p168 = scmp.eq.s32.totalorder %s49, 0
      %p169 = por %p167, %p168
      %p170 = scmp.ne.s32.totalorder %s158, %s159
      %p171 = scmp.eq.s32.totalorder %s50, 1
      %p172 = por %p170, %p171
      %p174 = scmp.ne.s32.totalorder %s159, %s173
      %p175 = scmp.eq.s32.totalorder %s50, 0
      %p176 = por %p174, %p175
      %s178 = sadd.s32 %s177, 1
      %p181 = scmp.eq.s32.totalorder %s44, 1
      %p182 = scmp.ne.s32.totalorder %s177, %s179
      %p183 = scmp.eq.s32.totalorder %s44, 0
      %p184 = por %p182, %p183
      %p185 = scmp.ne.s32.totalorder %s177, %s179
      %p186 = scmp.eq.s32.totalorder %s49, 1
      %p187 = por %p185, %p186
      %p188 = scmp.ne.s32.totalorder %s179, %s180
      %p189 = scmp.eq.s32.totalorder %s49, 0
      %p190 = por %p188, %p189
      %p191 = scmp.ne.s32.totalorder %s179, %s180
      %p192 = scmp.eq.s32.totalorder %s50, 1
      %p193 = por %p191, %p192
      %p195 = scmp.ne.s32.totalorder %s180, %s194
      %p196 = scmp.eq.s32.totalorder %s50, 0
      %p197 = por %p195, %p196
      %s199 = sadd.s32 %s198, 1
      %p202 = scmp.eq.s32.totalorder %s44, 1
      %p203 = scmp.ne.s32.totalorder %s198, %s200
      %p204 = scmp.eq.s32.totalorder %s44, 0
      %p205 = por %p203, %p204
      %p206 = scmp.ne.s32.totalorder %s198, %s200
      %p207 = scmp.eq.s32.totalorder %s49, 1
      %p208 = por %p206, %p207
      %p209 = scmp.ne.s32.totalorder %s200, %s201
      %p210 = scmp.eq.s32.totalorder %s49, 0
      %p211 = por %p209, %p210
      %p212 = scmp.ne.s32.totalorder %s200, %s201
      %p213 = scmp.eq.s32.totalorder %s50, 1
      %p214 = por %p212, %p213
      %p216 = scmp.ne.s32.totalorder %s201, %s215
      %p217 = scmp.eq.s32.totalorder %s50, 0
      %p218 = por %p216, %p217
      %s220 = sadd.s32 %s219, 1
      %p223 = scmp.eq.s32.totalorder %s44, 1
      %p224 = scmp.ne.s32.totalorder %s219, %s221
      %p225 = scmp.eq.s32.totalorder %s44, 0
      %p226 = por %p224, %p225
      %p227 = scmp.ne.s32.totalorder %s219, %s221
      %p228 = scmp.eq.s32.totalorder %s49, 1
      %p229 = por %p227, %p228
      %p230 = scmp.ne.s32.totalorder %s221, %s222
      %p231 = scmp.eq.s32.totalorder %s49, 0
      %p232 = por %p230, %p231
      %p233 = scmp.ne.s32.totalorder %s221, %s222
      %p234 = scmp.eq.s32.totalorder %s50, 1
      %p235 = por %p233, %p234
      %p237 = scmp.ne.s32.totalorder %s222, %s236
      %p238 = scmp.eq.s32.totalorder %s50, 0
      %p239 = por %p237, %p238
      %s241 = sadd.s32 %s240, 1
      %p244 = scmp.eq.s32.totalorder %s44, 1
      %p245 = scmp.ne.s32.totalorder %s240, %s242
      %p246 = scmp.eq.s32.totalorder %s44, 0
      %p247 = por %p245, %p246
      %p248 = scmp.ne.s32.totalorder %s240, %s242
      %p249 = scmp.eq.s32.totalorder %s49, 1
      %p250 = por %p248, %p249
      %p251 = scmp.ne.s32.totalorder %s242, %s243
      %p252 = scmp.eq.s32.totalorder %s49, 0
      %p253 = por %p251, %p252
      %p254 = scmp.ne.s32.totalorder %s242, %s243
      %p255 = scmp.eq.s32.totalorder %s50, 1
      %p256 = por %p254, %p255
      %p258 = scmp.ne.s32.totalorder %s243, %s257
      %p259 = scmp.eq.s32.totalorder %s50, 0
      %p260 = por %p258, %p259
      %s262 = sadd.s32 %s261, 1
      %p265 = scmp.eq.s32.totalorder %s44, 1
      %p266 = scmp.ne.s32.totalorder %s261, %s263
      %p267 = scmp.eq.s32.totalorder %s44, 0
      %p268 = por %p266, %p267
      %p269 = scmp.ne.s32.totalorder %s261, %s263
      %p270 = scmp.eq.s32.totalorder %s49, 1
      %p271 = por %p269, %p270
      %p272 = scmp.ne.s32.totalorder %s263, %s264
      %p273 = scmp.eq.s32.totalorder %s49, 0
      %p274 = por %p272, %p273
      %p275 = scmp.ne.s32.totalorder %s263, %s264
      %p276 = scmp.eq.s32.totalorder %s50, 1
      %p277 = por %p275, %p276
      %p279 = scmp.ne.s32.totalorder %s264, %s278
      %p280 = scmp.eq.s32.totalorder %s50, 0
      %p281 = por %p279, %p280
      %s283 = sadd.s32 %s282, 1
      %p286 = scmp.eq.s32.totalorder %s44, 1
      %p287 = scmp.ne.s32.totalorder %s282, %s284
      %p288 = scmp.eq.s32.totalorder %s44, 0
      %p289 = por %p287, %p288
      %p290 = scmp.ne.s32.totalorder %s282, %s284
      %p291 = scmp.eq.s32.totalorder %s49, 1
      %p292 = por %p290, %p291
      %p293 = scmp.ne.s32.totalorder %s284, %s285
      %p294 = scmp.eq.s32.totalorder %s49, 0
      %p295 = por %p293, %p294
      %p296 = scmp.ne.s32.totalorder %s284, %s285
      %p297 = scmp.eq.s32.totalorder %s50, 1
      %p298 = por %p296, %p297
      %p300 = scmp.ne.s32.totalorder %s285, %s299
      %p301 = scmp.eq.s32.totalorder %s50, 0
      %p302 = por %p300, %p301
      %s304 = sadd.s32 %s303, 1
      %p307 = scmp.eq.s32.totalorder %s44, 1
      %p308 = scmp.ne.s32.totalorder %s303, %s305
      %p309 = scmp.eq.s32.totalorder %s44, 0
      %p310 = por %p308, %p309
      %p311 = scmp.ne.s32.totalorder %s303, %s305
      %p312 = scmp.eq.s32.totalorder %s49, 1
      %p313 = por %p311, %p312
      %p314 = scmp.ne.s32.totalorder %s305, %s306
      %p315 = scmp.eq.s32.totalorder %s49, 0
      %p316 = por %p314, %p315
      %p317 = scmp.ne.s32.totalorder %s305, %s306
      %p318 = scmp.eq.s32.totalorder %s50, 1
      %p319 = por %p317, %p318
      %p321 = scmp.ne.s32.totalorder %s306, %s320
      %p322 = scmp.eq.s32.totalorder %s50, 0
      %p323 = por %p321, %p322
      %s325 = sadd.s32 %s324, 1
      %p328 = scmp.eq.s32.totalorder %s44, 1
      %p329 = scmp.ne.s32.totalorder %s324, %s326
      %p330 = scmp.eq.s32.totalorder %s44, 0
      %p331 = por %p329, %p330
      %p332 = scmp.ne.s32.totalorder %s324, %s326
      %p333 = scmp.eq.s32.totalorder %s49, 1
      %p334 = por %p332, %p333
      %p335 = scmp.ne.s32.totalorder %s326, %s327
      %p336 = scmp.eq.s32.totalorder %s49, 0
      %p337 = por %p335, %p336
      %p338 = scmp.ne.s32.totalorder %s326, %s327
      %p339 = scmp.eq.s32.totalorder %s50, 1
      %p340 = por %p338, %p339
      %p342 = scmp.ne.s32.totalorder %s327, %s341
      %p343 = scmp.eq.s32.totalorder %s50, 0
      %p344 = por %p342, %p343
      %s346 = sadd.s32 %s345, 1
      %p349 = scmp.eq.s32.totalorder %s44, 1
      %p350 = scmp.ne.s32.totalorder %s345, %s347
      %p351 = scmp.eq.s32.totalorder %s44, 0
      %p352 = por %p350, %p351
      %p353 = scmp.ne.s32.totalorder %s345, %s347
      %p354 = scmp.eq.s32.totalorder %s49, 1
      %p355 = por %p353, %p354
      %p356 = scmp.ne.s32.totalorder %s347, %s348
      %p357 = scmp.eq.s32.totalorder %s49, 0
      %p358 = por %p356, %p357
      %p359 = scmp.ne.s32.totalorder %s347, %s348
      %p360 = scmp.eq.s32.totalorder %s50, 1
      %p361 = por %p359, %p360
      %p363 = scmp.ne.s32.totalorder %s348, %s362
      %p364 = scmp.eq.s32.totalorder %s50, 0
      %p365 = por %p363, %p364
      %s367 = sadd.s32 %s366, 1
      %p370 = scmp.eq.s32.totalorder %s44, 1
      %p371 = scmp.ne.s32.totalorder %s366, %s368
      %p372 = scmp.eq.s32.totalorder %s44, 0
      %p373 = por %p371, %p372
      %p374 = scmp.ne.s32.totalorder %s366, %s368
      %p375 = scmp.eq.s32.totalorder %s49, 1
      %p376 = por %p374, %p375
      %p377 = scmp.ne.s32.totalorder %s368, %s369
      %p378 = scmp.eq.s32.totalorder %s49, 0
      %p379 = por %p377, %p378
      %p380 = scmp.ne.s32.totalorder %s368, %s369
      %p381 = scmp.eq.s32.totalorder %s50, 1
      %p382 = por %p380, %p381
      %p384 = scmp.ne.s32.totalorder %s369, %s383
      %p385 = scmp.eq.s32.totalorder %s50, 0
      %p386 = por %p384, %p385
      %s388 = sadd.s32 %s387, 1
      %p391 = scmp.eq.s32.totalorder %s44, 1
      %p392 = scmp.ne.s32.totalorder %s387, %s389
      %p393 = scmp.eq.s32.totalorder %s44, 0
      %p394 = por %p392, %p393
      %p395 = scmp.ne.s32.totalorder %s387, %s389
      %p396 = scmp.eq.s32.totalorder %s49, 1
      %p397 = por %p395, %p396
      %p398 = scmp.ne.s32.totalorder %s389, %s390
      %p399 = scmp.eq.s32.totalorder %s49, 0
      %p400 = por %p398, %p399
      %p401 = scmp.ne.s32.totalorder %s389, %s390
      %p402 = scmp.eq.s32.totalorder %s50, 1
      %p403 = por %p401, %p402
      %p405 = scmp.ne.s32.totalorder %s390, %s404
      %p406 = scmp.eq.s32.totalorder %s50, 0
      %p407 = por %p405, %p406
      %s409 = sadd.s32 %s408, 1
      %p412 = scmp.eq.s32.totalorder %s44, 1
      %p413 = scmp.ne.s32.totalorder %s408, %s410
      %p414 = scmp.eq.s32.totalorder %s44, 0
      %p415 = por %p413, %p414
      %p416 = scmp.ne.s32.totalorder %s408, %s410
      %p417 = scmp.eq.s32.totalorder %s49, 1
      %p418 = por %p416, %p417
      %p419 = scmp.ne.s32.totalorder %s410, %s411
      %p420 = scmp.eq.s32.totalorder %s49, 0
      %p421 = por %p419, %p420
      %p422 = scmp.ne.s32.totalorder %s410, %s411
      %p423 = scmp.eq.s32.totalorder %s50, 1
      %p424 = por %p422, %p423
      %p426 = scmp.ne.s32.totalorder %s411, %s425
      %p427 = scmp.eq.s32.totalorder %s50, 0
      %p428 = por %p426, %p427
      %s430 = sadd.s32 %s429, 1
      %p433 = scmp.eq.s32.totalorder %s44, 1
      %p434 = scmp.ne.s32.totalorder %s429, %s431
      %p435 = scmp.eq.s32.totalorder %s44, 0
      %p436 = por %p434, %p435
      %p437 = scmp.ne.s32.totalorder %s429, %s431
      %p438 = scmp.eq.s32.totalorder %s49, 1
      %p439 = por %p437, %p438
      %p440 = scmp.ne.s32.totalorder %s431, %s432
      %p441 = scmp.eq.s32.totalorder %s49, 0
      %p442 = por %p440, %p441
      %p443 = scmp.ne.s32.totalorder %s431, %s432
      %p444 = scmp.eq.s32.totalorder %s50, 1
      %p445 = por %p443, %p444
      %p447 = scmp.ne.s32.totalorder %s432, %s446
      %p448 = scmp.eq.s32.totalorder %s50, 0
      %p449 = por %p447, %p448
      %s451 = sadd.s32 %s450, 1
      %p454 = scmp.eq.s32.totalorder %s44, 1
      %p455 = scmp.ne.s32.totalorder %s450, %s452
      %p456 = scmp.eq.s32.totalorder %s44, 0
      %p457 = por %p455, %p456
      %p458 = scmp.ne.s32.totalorder %s450, %s452
      %p459 = scmp.eq.s32.totalorder %s49, 1
      %p460 = por %p458, %p459
      %p461 = scmp.ne.s32.totalorder %s452, %s453
      %p462 = scmp.eq.s32.totalorder %s49, 0
      %p463 = por %p461, %p462
      %p464 = scmp.ne.s32.totalorder %s452, %s453
      %p465 = scmp.eq.s32.totalorder %s50, 1
      %p466 = por %p464, %p465
      %p468 = scmp.ne.s32.totalorder %s453, %s467
      %p469 = scmp.eq.s32.totalorder %s50, 0
      %p470 = por %p468, %p469
      %s472 = sadd.s32 %s471, 1
      %p475 = scmp.eq.s32.totalorder %s44, 1
      %p476 = scmp.ne.s32.totalorder %s471, %s473
      %p477 = scmp.eq.s32.totalorder %s44, 0
      %p478 = por %p476, %p477
      %p479 = scmp.ne.s32.totalorder %s471, %s473
      %p480 = scmp.eq.s32.totalorder %s49, 1
      %p481 = por %p479, %p480
      %p482 = scmp.ne.s32.totalorder %s473, %s474
      %p483 = scmp.eq.s32.totalorder %s49, 0
      %p484 = por %p482, %p483
      %p485 = scmp.ne.s32.totalorder %s473, %s474
      %p486 = scmp.eq.s32.totalorder %s50, 1
      %p487 = por %p485, %p486
      %p489 = scmp.ne.s32.totalorder %s474, %s488
      %p490 = scmp.eq.s32.totalorder %s50, 0
      %p491 = por %p489, %p490
      %s493 = sadd.s32 %s492, 1
      %p496 = scmp.eq.s32.totalorder %s44, 1
      %p497 = scmp.ne.s32.totalorder %s492, %s494
      %p498 = scmp.eq.s32.totalorder %s44, 0
      %p499 = por %p497, %p498
      %p500 = scmp.ne.s32.totalorder %s492, %s494
      %p501 = scmp.eq.s32.totalorder %s49, 1
      %p502 = por %p500, %p501
      %p503 = scmp.ne.s32.totalorder %s494, %s495
      %p504 = scmp.eq.s32.totalorder %s49, 0
      %p505 = por %p503, %p504
      %p506 = scmp.ne.s32.totalorder %s494, %s495
      %p507 = scmp.eq.s32.totalorder %s50, 1
      %p508 = por %p506, %p507
      %p510 = scmp.ne.s32.totalorder %s495, %s509
      %p511 = scmp.eq.s32.totalorder %s50, 0
      %p512 = por %p510, %p511
      %s514 = sadd.s32 %s513, 1
      %p517 = scmp.eq.s32.totalorder %s44, 1
      %p518 = scmp.ne.s32.totalorder %s513, %s515
      %p519 = scmp.eq.s32.totalorder %s44, 0
      %p520 = por %p518, %p519
      %p521 = scmp.ne.s32.totalorder %s513, %s515
      %p522 = scmp.eq.s32.totalorder %s49, 1
      %p523 = por %p521, %p522
      %p524 = scmp.ne.s32.totalorder %s515, %s516
      %p525 = scmp.eq.s32.totalorder %s49, 0
      %p526 = por %p524, %p525
      %p527 = scmp.ne.s32.totalorder %s515, %s516
      %p528 = scmp.eq.s32.totalorder %s50, 1
      %p529 = por %p527, %p528
      %p531 = scmp.ne.s32.totalorder %s516, %s530
      %p532 = scmp.eq.s32.totalorder %s50, 0
      %p533 = por %p531, %p532
      %s535 = sadd.s32 %s534, 1
      %p538 = scmp.eq.s32.totalorder %s44, 1
      %p539 = scmp.ne.s32.totalorder %s534, %s536
      %p540 = scmp.eq.s32.totalorder %s44, 0
      %p541 = por %p539, %p540
      %p542 = scmp.ne.s32.totalorder %s534, %s536
      %p543 = scmp.eq.s32.totalorder %s49, 1
      %p544 = por %p542, %p543
      %p545 = scmp.ne.s32.totalorder %s536, %s537
      %p546 = scmp.eq.s32.totalorder %s49, 0
      %p547 = por %p545, %p546
      %p548 = scmp.ne.s32.totalorder %s536, %s537
      %p549 = scmp.eq.s32.totalorder %s50, 1
      %p550 = por %p548, %p549
      %p552 = scmp.ne.s32.totalorder %s537, %s551
      %p553 = scmp.eq.s32.totalorder %s50, 0
      %p554 = por %p552, %p553
      %s556 = sadd.s32 %s555, 1
      %p559 = scmp.eq.s32.totalorder %s44, 1
      %p560 = scmp.ne.s32.totalorder %s555, %s557
      %p561 = scmp.eq.s32.totalorder %s44, 0
      %p562 = por %p560, %p561
      %p563 = scmp.ne.s32.totalorder %s555, %s557
      %p564 = scmp.eq.s32.totalorder %s49, 1
      %p565 = por %p563, %p564
      %p566 = scmp.ne.s32.totalorder %s557, %s558
      %p567 = scmp.eq.s32.totalorder %s49, 0
      %p568 = por %p566, %p567
      %p569 = scmp.ne.s32.totalorder %s557, %s558
      %p570 = scmp.eq.s32.totalorder %s50, 1
      %p571 = por %p569, %p570
      %p573 = scmp.ne.s32.totalorder %s558, %s572
      %p574 = scmp.eq.s32.totalorder %s50, 0
      %p575 = por %p573, %p574
      %s577 = sadd.s32 %s576, 1
      %p580 = scmp.eq.s32.totalorder %s44, 1
      %p581 = scmp.ne.s32.totalorder %s576, %s578
      %p582 = scmp.eq.s32.totalorder %s44, 0
      %p583 = por %p581, %p582
      %p584 = scmp.ne.s32.totalorder %s576, %s578
      %p585 = scmp.eq.s32.totalorder %s49, 1
      %p586 = por %p584, %p585
      %p587 = scmp.ne.s32.totalorder %s578, %s579
      %p588 = scmp.eq.s32.totalorder %s49, 0
      %p589 = por %p587, %p588
      %p590 = scmp.ne.s32.totalorder %s578, %s579
      %p591 = scmp.eq.s32.totalorder %s50, 1
      %p592 = por %p590, %p591
      %p594 = scmp.ne.s32.totalorder %s579, %s593
      %p595 = scmp.eq.s32.totalorder %s50, 0
      %p596 = por %p594, %p595
      %s597 = ssub.s32 %s44, %s51
      %p598 = scmp.eq.s32.totalorder %s597, 0
      %s600 = sadd.s32 %s599, 1
      %s601 = scalar_select %p598, %s599, %s600
      %p604 = pneg %p598
      %p605 = scmp.eq.s32.totalorder %s44, 1
      %p606 = por %p604, %p605
      %p607 = scmp.ne.s32.totalorder %s599, %s602
      %p608 = scmp.eq.s32.totalorder %s44, 0
      %p609 = por %p607, %p608
      %p610 = scmp.ne.s32.totalorder %s599, %s602
      %p611 = scmp.eq.s32.totalorder %s49, 1
      %p612 = por %p610, %p611
      %p613 = scmp.ne.s32.totalorder %s602, %s603
      %p614 = scmp.eq.s32.totalorder %s49, 0
      %p615 = por %p613, %p614
      %p616 = scmp.ne.s32.totalorder %s602, %s603
      %p617 = scmp.eq.s32.totalorder %s50, 1
      %p618 = por %p616, %p617
      %p620 = scmp.ne.s32.totalorder %s603, %s619
      %p621 = scmp.eq.s32.totalorder %s50, 0
      %p622 = por %p620, %p621
      %s623 = ssub.s32 %s44, %s51
      %p624 = scmp.eq.s32.totalorder %s623, 0
      %s626 = sadd.s32 %s625, 1
      %s627 = scalar_select %p624, %s625, %s626
      %p630 = pneg %p624
      %p631 = scmp.eq.s32.totalorder %s44, 1
      %p632 = por %p630, %p631
      %p633 = scmp.ne.s32.totalorder %s625, %s628
      %p634 = scmp.eq.s32.totalorder %s44, 0
      %p635 = por %p633, %p634
      %p636 = scmp.ne.s32.totalorder %s625, %s628
      %p637 = scmp.eq.s32.totalorder %s49, 1
      %p638 = por %p636, %p637
      %p639 = scmp.ne.s32.totalorder %s628, %s629
      %p640 = scmp.eq.s32.totalorder %s49, 0
      %p641 = por %p639, %p640
      %p642 = scmp.ne.s32.totalorder %s628, %s629
      %p643 = scmp.eq.s32.totalorder %s50, 1
      %p644 = por %p642, %p643
      %p646 = scmp.ne.s32.totalorder %s629, %s645
      %p647 = scmp.eq.s32.totalorder %s50, 0
      %p648 = por %p646, %p647
      %p649 = scmp.le.s32.totalorder 1, %s44
      %p650 = scmp.lt.s32.totalorder %s44, 3
      %p651 = pnand %p649, %p650
      %p652 = pneg %p651
      // Predicated region
      $region9: #{tpu_custom_call.1} parent=5 // pred_check
        _
      $region10: #{tpu_custom_call.1} parent=5 // pred_check_branch
        %654 = sbr.rel (%p651) target = $region12
      $region11: #{tpu_custom_call.1} parent=5 // pred_region
        %s655 = ssub.s32 %s44, 1
        // Predicated region
        $region13: #{tpu_custom_call.1} parent=11 // pred_check
          %p656 = pneg %p169
        $region14: #{tpu_custom_call.1} parent=11 // pred_check_branch
          %658 = sbr.rel (%p656) target = $region16
        $region15: #{tpu_custom_call.1} parent=11 // pred_region
          _
        $region16: #{tpu_custom_call.1} parent=11 // pred_fallthru
          _
        // Predicated region
        $region17: #{tpu_custom_call.1} parent=11 // pred_check
          %p659 = pneg %p190
        $region18: #{tpu_custom_call.1} parent=11 // pred_check_branch
          %661 = sbr.rel (%p659) target = $region20
        $region19: #{tpu_custom_call.1} parent=11 // pred_region
          _
        $region20: #{tpu_custom_call.1} parent=11 // pred_fallthru
          _
        // Predicated region
        $region21: #{tpu_custom_call.1} parent=11 // pred_check
          %p662 = pneg %p211
        $region22: #{tpu_custom_call.1} parent=11 // pred_check_branch
          %664 = sbr.rel (%p662) target = $region24
        $region23: #{tpu_custom_call.1} parent=11 // pred_region
          _
        $region24: #{tpu_custom_call.1} parent=11 // pred_fallthru
          _
        // Predicated region
        $region25: #{tpu_custom_call.1} parent=11 // pred_check
          %p665 = pneg %p232
        $region26: #{tpu_custom_call.1} parent=11 // pred_check_branch
          %667 = sbr.rel (%p665) target = $region28
        $region27: #{tpu_custom_call.1} parent=11 // pred_region
          %669 = vsyncadd [#allocation3], 0
          %s670 = sshll.u32 %s7, 4
          %s671 = int_to_ptr.hbm [resolvable:$true] %s670
          %s672 = sshll.u32 [#allocation2], 4
          %s673 = int_to_ptr.vmem [resolvable:$true] %s672
          %678 = dma.hbm_to_vmem [thread:$0]  %s671, 64, %s673, [#allocation3], 16, 16, 1
        $region28: #{tpu_custom_call.1} parent=11 // pred_fallthru
          _
        // Predicated region
        $region29: #{tpu_custom_call.1} parent=11 // pred_check
          %p679 = pneg %p253
        $region30: #{tpu_custom_call.1} parent=11 // pred_check_branch
          %681 = sbr.rel (%p679) target = $region32
        $region31: #{tpu_custom_call.1} parent=11 // pred_region
          _
        $region32: #{tpu_custom_call.1} parent=11 // pred_fallthru
          _
        // Predicated region
        $region33: #{tpu_custom_call.1} parent=11 // pred_check
          %p682 = pneg %p274
        $region34: #{tpu_custom_call.1} parent=11 // pred_check_branch
          %684 = sbr.rel (%p682) target = $region36
        $region35: #{tpu_custom_call.1} parent=11 // pred_region
          %686 = vsyncadd [#allocation6], 0
          %s687 = sshll.u32 %s9, 4
          %s688 = int_to_ptr.hbm [resolvable:$true] %s687
          %s689 = sshll.u32 [#allocation5], 4
          %s690 = int_to_ptr.vmem [resolvable:$true] %s689
          %695 = dma.hbm_to_vmem [thread:$0]  %s688, 2048, %s690, [#allocation6], 128, 128, 8
        $region36: #{tpu_custom_call.1} parent=11 // pred_fallthru
          _
        // Predicated region
        $region37: #{tpu_custom_call.1} parent=11 // pred_check
          %p696 = pneg %p295
        $region38: #{tpu_custom_call.1} parent=11 // pred_check_branch
          %698 = sbr.rel (%p696) target = $region40
        $region39: #{tpu_custom_call.1} parent=11 // pred_region
          %700 = vsyncadd [#allocation6], 0
          %s701 = sshll.u32 %s10, 4
          %s702 = int_to_ptr.hbm [resolvable:$true] %s701
          %s703 = sshll.u32 [#allocation7], 4
          %s704 = int_to_ptr.vmem [resolvable:$true] %s703
          %709 = dma.hbm_to_vmem [thread:$0]  %s702, 2048, %s704, [#allocation6], 128, 128, 8
        $region40: #{tpu_custom_call.1} parent=11 // pred_fallthru
          _
        // Predicated region
        $region41: #{tpu_custom_call.1} parent=11 // pred_check
          %p710 = pneg %p316
        $region42: #{tpu_custom_call.1} parent=11 // pred_check_branch
          %712 = sbr.rel (%p710) target = $region44
        $region43: #{tpu_custom_call.1} parent=11 // pred_region
          _
        $region44: #{tpu_custom_call.1} parent=11 // pred_fallthru
          _
        // Predicated region
        $region45: #{tpu_custom_call.1} parent=11 // pred_check
          %p713 = pneg %p337
        $region46: #{tpu_custom_call.1} parent=11 // pred_check_branch
          %715 = sbr.rel (%p713) target = $region48
        $region47: #{tpu_custom_call.1} parent=11 // pred_region
          _
        $region48: #{tpu_custom_call.1} parent=11 // pred_fallthru
          _
        // Predicated region
        $region49: #{tpu_custom_call.1} parent=11 // pred_check
          %p716 = pneg %p358
        $region50: #{tpu_custom_call.1} parent=11 // pred_check_branch
          %718 = sbr.rel (%p716) target = $region52
        $region51: #{tpu_custom_call.1} parent=11 // pred_region
          _
        $region52: #{tpu_custom_call.1} parent=11 // pred_fallthru
          _
        // Predicated region
        $region53: #{tpu_custom_call.1} parent=11 // pred_check
          %p719 = pneg %p379
        $region54: #{tpu_custom_call.1} parent=11 // pred_check_branch
          %721 = sbr.rel (%p719) target = $region56
        $region55: #{tpu_custom_call.1} parent=11 // pred_region
          %723 = vsyncadd [#allocation9], 0
          %s724 = sshll.u32 %s14, 4
          %s725 = int_to_ptr.hbm [resolvable:$true] %s724
          %s726 = sshll.u32 [#allocation8], 4
          %s727 = int_to_ptr.vmem [resolvable:$true] %s726
          %732 = dma.hbm_to_vmem [thread:$0]  %s725, 64, %s727, [#allocation9], 16, 16, 1
        $region56: #{tpu_custom_call.1} parent=11 // pred_fallthru
          _
        // Predicated region
        $region57: #{tpu_custom_call.1} parent=11 // pred_check
          %p733 = pneg %p400
        $region58: #{tpu_custom_call.1} parent=11 // pred_check_branch
          %735 = sbr.rel (%p733) target = $region60
        $region59: #{tpu_custom_call.1} parent=11 // pred_region
          %737 = vsyncadd [#allocation9], 0
          %s739 = sshll.u32 %s15, 4
          %s740 = int_to_ptr.hbm [resolvable:$true] %s739
          %s741 = sshll.u32 [#allocation10], 4
          %s742 = int_to_ptr.vmem [resolvable:$true] %s741
          %744 = dma.hbm_to_vmem [thread:$0]  %s740, 16, %s742, [#allocation9]
        $region60: #{tpu_custom_call.1} parent=11 // pred_fallthru
          _
        // Predicated region
        $region61: #{tpu_custom_call.1} parent=11 // pred_check
          %p745 = pneg %p421
        $region62: #{tpu_custom_call.1} parent=11 // pred_check_branch
          %747 = sbr.rel (%p745) target = $region64
        $region63: #{tpu_custom_call.1} parent=11 // pred_region
          %749 = vsyncadd [#allocation12], 0
          %s751 = sshll.u32 %s16, 4
          %s752 = int_to_ptr.hbm [resolvable:$true] %s751
          %s753 = sshll.u32 [#allocation11], 4
          %s754 = int_to_ptr.vmem [resolvable:$true] %s753
          %756 = dma.hbm_to_vmem [thread:$0]  %s752, 16, %s754, [#allocation12]
        $region64: #{tpu_custom_call.1} parent=11 // pred_fallthru
          _
        // Predicated region
        $region65: #{tpu_custom_call.1} parent=11 // pred_check
          %p757 = pneg %p442
        $region66: #{tpu_custom_call.1} parent=11 // pred_check_branch
          %759 = sbr.rel (%p757) target = $region68
        $region67: #{tpu_custom_call.1} parent=11 // pred_region
          %761 = vsyncadd [#allocation12], 0
          %s762 = sshll.u32 %s17, 4
          %s763 = int_to_ptr.hbm [resolvable:$true] %s762
          %s764 = sshll.u32 [#allocation13], 4
          %s765 = int_to_ptr.vmem [resolvable:$true] %s764
          %770 = dma.hbm_to_vmem [thread:$0]  %s763, 2048, %s765, [#allocation12], 128, 128, 8
        $region68: #{tpu_custom_call.1} parent=11 // pred_fallthru
          _
        // Predicated region
        $region69: #{tpu_custom_call.1} parent=11 // pred_check
          %p771 = pneg %p463
        $region70: #{tpu_custom_call.1} parent=11 // pred_check_branch
          %773 = sbr.rel (%p771) target = $region72
        $region71: #{tpu_custom_call.1} parent=11 // pred_region
          _
        $region72: #{tpu_custom_call.1} parent=11 // pred_fallthru
          _
        // Predicated region
        $region73: #{tpu_custom_call.1} parent=11 // pred_check
          %p774 = pneg %p484
        $region74: #{tpu_custom_call.1} parent=11 // pred_check_branch
          %776 = sbr.rel (%p774) target = $region76
        $region75: #{tpu_custom_call.1} parent=11 // pred_region
          _
        $region76: #{tpu_custom_call.1} parent=11 // pred_fallthru
          _
        // Predicated region
        $region77: #{tpu_custom_call.1} parent=11 // pred_check
          %p777 = pneg %p505
        $region78: #{tpu_custom_call.1} parent=11 // pred_check_branch
          %779 = sbr.rel (%p777) target = $region80
        $region79: #{tpu_custom_call.1} parent=11 // pred_region
          _
        $region80: #{tpu_custom_call.1} parent=11 // pred_fallthru
          _
        // Predicated region
        $region81: #{tpu_custom_call.1} parent=11 // pred_check
          %p780 = pneg %p526
        $region82: #{tpu_custom_call.1} parent=11 // pred_check_branch
          %782 = sbr.rel (%p780) target = $region84
        $region83: #{tpu_custom_call.1} parent=11 // pred_region
          _
        $region84: #{tpu_custom_call.1} parent=11 // pred_fallthru
          _
        // Predicated region
        $region85: #{tpu_custom_call.1} parent=11 // pred_check
          %p783 = pneg %p547
        $region86: #{tpu_custom_call.1} parent=11 // pred_check_branch
          %785 = sbr.rel (%p783) target = $region88
        $region87: #{tpu_custom_call.1} parent=11 // pred_region
          _
        $region88: #{tpu_custom_call.1} parent=11 // pred_fallthru
          _
        // Predicated region
        $region89: #{tpu_custom_call.1} parent=11 // pred_check
          %p786 = pneg %p568
        $region90: #{tpu_custom_call.1} parent=11 // pred_check_branch
          %788 = sbr.rel (%p786) target = $region92
        $region91: #{tpu_custom_call.1} parent=11 // pred_region
          _
        $region92: #{tpu_custom_call.1} parent=11 // pred_fallthru
          _
        // Predicated region
        $region93: #{tpu_custom_call.1} parent=11 // pred_check
          %p789 = pneg %p589
        $region94: #{tpu_custom_call.1} parent=11 // pred_check_branch
          %791 = sbr.rel (%p789) target = $region96
        $region95: #{tpu_custom_call.1} parent=11 // pred_region
          %793 = vsyncadd [#allocation15], 0
          %s795 = sshll.u32 %s24, 4
          %s796 = int_to_ptr.hbm [resolvable:$true] %s795
          %s797 = sshll.u32 [#allocation14], 4
          %s798 = int_to_ptr.vmem [resolvable:$true] %s797
          %800 = dma.hbm_to_vmem [thread:$0]  %s796, 16, %s798, [#allocation15]
        $region96: #{tpu_custom_call.1} parent=11 // pred_fallthru
          _
      $region12: #{tpu_custom_call.1} parent=5 // pred_fallthru
        _
      %p801 = scmp.lt.s32.totalorder %s44, 2
      // Predicated region
      $region97: #{tpu_custom_call.1} parent=5 // pred_check
        %p802 = pneg %p801
      $region98: #{tpu_custom_call.1} parent=5 // pred_check_branch
        %804 = sbr.rel (%p802) target = $region100
      $region99: #{tpu_custom_call.1} parent=5 // pred_region
        // Predicated region
        $region101: #{tpu_custom_call.1} parent=99 // pred_check
          %p805 = pneg %p64
        $region102: #{tpu_custom_call.1} parent=99 // pred_check_branch
          %807 = sbr.rel (%p805) target = $region104
        $region103: #{tpu_custom_call.1} parent=99 // pred_region
          %p808 = scmp.lt.s32.totalorder %s44, 1
          %s809 = scalar_select %p808, %s44, 1
          %s810 = smul.addr %s809, 8
          %s811 = scalar_lea.vmem %s0, %s810
        $region104: #{tpu_custom_call.1} parent=99 // pred_fallthru
          _
        // Predicated region
        $region105: #{tpu_custom_call.1} parent=99 // pred_check
          %p812 = pneg %p90
        $region106: #{tpu_custom_call.1} parent=99 // pred_check_branch
          %814 = sbr.rel (%p812) target = $region108
        $region107: #{tpu_custom_call.1} parent=99 // pred_region
          %p815 = scmp.lt.s32.totalorder %s44, 1
          %s816 = scalar_select %p815, %s44, 1
          %s817 = smul.addr %s816, 8
          %s818 = scalar_lea.vmem %s1, %s817
        $region108: #{tpu_custom_call.1} parent=99 // pred_fallthru
          _
        // Predicated region
        $region109: #{tpu_custom_call.1} parent=99 // pred_check
          %p819 = pneg %p116
        $region110: #{tpu_custom_call.1} parent=99 // pred_check_branch
          %821 = sbr.rel (%p819) target = $region112
        $region111: #{tpu_custom_call.1} parent=99 // pred_region
          %p822 = scmp.lt.s32.totalorder %s44, 1
          %s823 = scalar_select %p822, %s44, 1
          %s824 = smul.addr %s823, 8
          %s825 = scalar_lea.vmem %s2, %s824
        $region112: #{tpu_custom_call.1} parent=99 // pred_fallthru
          _
        // Predicated region
        $region113: #{tpu_custom_call.1} parent=99 // pred_check
          %p826 = pneg %p142
        $region114: #{tpu_custom_call.1} parent=99 // pred_check_branch
          %828 = sbr.rel (%p826) target = $region116
        $region115: #{tpu_custom_call.1} parent=99 // pred_region
          %p829 = scmp.lt.s32.totalorder %s44, 1
          %s830 = scalar_select %p829, %s44, 1
          %s831 = smul.addr %s830, 8
          %s832 = scalar_lea.vmem %s3, %s831
        $region116: #{tpu_custom_call.1} parent=99 // pred_fallthru
          _
      $region100: #{tpu_custom_call.1} parent=5 // pred_fallthru
        _
      %p833 = scmp.le.s32.totalorder 1, %s44
      %p834 = scmp.lt.s32.totalorder %s44, 3
      %p835 = pnand %p833, %p834
      %p836 = pneg %p835
      // Predicated region
      $region117: #{tpu_custom_call.1} parent=5 // pred_check
        _
      $region118: #{tpu_custom_call.1} parent=5 // pred_check_branch
        %838 = sbr.rel (%p835) target = $region120
      $region119: #{tpu_custom_call.1} parent=5 // pred_region
        %s839 = ssub.s32 %s44, 1
        // Predicated region
        $region121: #{tpu_custom_call.1} parent=119 // pred_check
          %p840 = pneg %p232
        $region122: #{tpu_custom_call.1} parent=119 // pred_check_branch
          %842 = sbr.rel (%p840) target = $region124
        $region123: #{tpu_custom_call.1} parent=119 // pred_region
          %844 = dma.done [#allocation3], 64
        $region124: #{tpu_custom_call.1} parent=119 // pred_fallthru
          _
        // Predicated region
        $region125: #{tpu_custom_call.1} parent=119 // pred_check
          %p845 = pneg %p274
        $region126: #{tpu_custom_call.1} parent=119 // pred_check_branch
          %847 = sbr.rel (%p845) target = $region128
        $region127: #{tpu_custom_call.1} parent=119 // pred_region
          %849 = dma.done [#allocation6], 2048
        $region128: #{tpu_custom_call.1} parent=119 // pred_fallthru
          _
        // Predicated region
        $region129: #{tpu_custom_call.1} parent=119 // pred_check
          %p850 = pneg %p295
        $region130: #{tpu_custom_call.1} parent=119 // pred_check_branch
          %852 = sbr.rel (%p850) target = $region132
        $region131: #{tpu_custom_call.1} parent=119 // pred_region
          %854 = dma.done [#allocation6], 2048
        $region132: #{tpu_custom_call.1} parent=119 // pred_fallthru
          _
        // Predicated region
        $region133: #{tpu_custom_call.1} parent=119 // pred_check
          %p855 = pneg %p379
        $region134: #{tpu_custom_call.1} parent=119 // pred_check_branch
          %857 = sbr.rel (%p855) target = $region136
        $region135: #{tpu_custom_call.1} parent=119 // pred_region
          %859 = dma.done [#allocation9], 64
        $region136: #{tpu_custom_call.1} parent=119 // pred_fallthru
          _
        // Predicated region
        $region137: #{tpu_custom_call.1} parent=119 // pred_check
          %p860 = pneg %p400
        $region138: #{tpu_custom_call.1} parent=119 // pred_check_branch
          %862 = sbr.rel (%p860) target = $region140
        $region139: #{tpu_custom_call.1} parent=119 // pred_region
          %864 = dma.done [#allocation9], 16
        $region140: #{tpu_custom_call.1} parent=119 // pred_fallthru
          _
        // Predicated region
        $region141: #{tpu_custom_call.1} parent=119 // pred_check
          %p865 = pneg %p421
        $region142: #{tpu_custom_call.1} parent=119 // pred_check_branch
          %867 = sbr.rel (%p865) target = $region144
        $region143: #{tpu_custom_call.1} parent=119 // pred_region
          %869 = dma.done [#allocation12], 16
        $region144: #{tpu_custom_call.1} parent=119 // pred_fallthru
          _
        // Predicated region
        $region145: #{tpu_custom_call.1} parent=119 // pred_check
          %p870 = pneg %p442
        $region146: #{tpu_custom_call.1} parent=119 // pred_check_branch
          %872 = sbr.rel (%p870) target = $region148
        $region147: #{tpu_custom_call.1} parent=119 // pred_region
          %874 = dma.done [#allocation12], 2048
        $region148: #{tpu_custom_call.1} parent=119 // pred_fallthru
          _
        // Predicated region
        $region149: #{tpu_custom_call.1} parent=119 // pred_check
          %p875 = pneg %p589
        $region150: #{tpu_custom_call.1} parent=119 // pred_check_branch
          %877 = sbr.rel (%p875) target = $region152
        $region151: #{tpu_custom_call.1} parent=119 // pred_region
          %879 = dma.done [#allocation15], 16
        $region152: #{tpu_custom_call.1} parent=119 // pred_fallthru
          _
        %p880 = scmp.lt.s32.totalorder %s49, 1
        %s881 = scalar_select %p880, %s49, 1
        %s882 = smul.addr %s881, 8
        %s883 = scalar_lea.vmem %s0, %s882
        %p884 = pneg %p70
        %p885 = pneg %p67
        %p886 = scmp.lt.s32.totalorder %s49, 1
        %s887 = scalar_select %p886, %s49, 1
        %s888 = smul.addr %s887, 8
        %s889 = scalar_lea.vmem %s1, %s888
        %p890 = pneg %p96
        %p891 = pneg %p93
        %p892 = scmp.lt.s32.totalorder %s49, 1
        %s893 = scalar_select %p892, %s49, 1
        %s894 = smul.addr %s893, 8
        %s895 = scalar_lea.vmem %s2, %s894
        %p896 = pneg %p122
        %p897 = pneg %p119
        %p898 = scmp.lt.s32.totalorder %s49, 1
        %s899 = scalar_select %p898, %s49, 1
        %s900 = smul.addr %s899, 8
        %s901 = scalar_lea.vmem %s3, %s900
        %p902 = pneg %p148
        %p903 = pneg %p145
        %p904 = pneg %p169
        %p905 = pneg %p166
        %p906 = pneg %p190
        %p907 = pneg %p187
        %p908 = pneg %p211
        %p909 = pneg %p208
        %p910 = pneg %p232
        %p911 = pneg %p229
        %p912 = pneg %p253
        %p913 = pneg %p250
        %p914 = pneg %p274
        %p915 = pneg %p271
        %p916 = pneg %p295
        %p917 = pneg %p292
        %p918 = pneg %p316
        %p919 = pneg %p313
        %p920 = pneg %p337
        %p921 = pneg %p334
        %p922 = pneg %p358
        %p923 = pneg %p355
        %p924 = pneg %p379
        %p925 = pneg %p376
        %p926 = pneg %p400
        %p927 = pneg %p397
        %p928 = pneg %p421
        %p929 = pneg %p418
        %p930 = pneg %p442
        %p931 = pneg %p439
        %p932 = pneg %p463
        %p933 = pneg %p460
        %p934 = pneg %p484
        %p935 = pneg %p481
        %p936 = pneg %p505
        %p937 = pneg %p502
        %p938 = pneg %p526
        %p939 = pneg %p523
        %p940 = pneg %p547
        %p941 = pneg %p544
        %p942 = pneg %p568
        %p943 = pneg %p565
        %p944 = pneg %p589
        %p945 = pneg %p586
        %p946 = pneg %p615
        %p947 = pneg %p612
        %s948 = sand.u32 %s602, 1
        %s949 = scalar_lea.sflag [#allocation4], %s948
        %s950 = sand.u32 %s602, 1
        %s951 = smul.addr %s950, 8
        %s952 = scalar_lea.vmem [#allocation16], %s951
        %p953 = pneg %p641
        %p954 = pneg %p638
        %s955 = sand.u32 %s628, 1
        %s956 = scalar_lea.sflag [#allocation18], %s955
        %s957 = sand.u32 %s628, 1
        %s958 = smul.addr %s957, 2
        %s959 = scalar_lea.vmem [#allocation17], %s958
        %p960 = scmp.lt.s32.totalorder %s49, 1
        %s961 = scalar_select %p960, %s49, 1
        %s962 = smul.addr %s961, 8
        %s963 = scalar_lea.vmem %s0, %s962
        %p964 = scmp.lt.s32.totalorder %s49, 1
        %s965 = scalar_select %p964, %s49, 1
        %s966 = smul.addr %s965, 8
        %s967 = scalar_lea.vmem %s1, %s966
        %p968 = scmp.lt.s32.totalorder %s49, 1
        %s969 = scalar_select %p968, %s49, 1
        %s970 = smul.addr %s969, 8
        %s971 = scalar_lea.vmem %s2, %s970
        %p972 = scmp.lt.s32.totalorder %s49, 1
        %s973 = scalar_select %p972, %s49, 1
        %s974 = smul.addr %s973, 8
        %s975 = scalar_lea.vmem %s3, %s974
        %v976 = vld [vmem:[%s4] sm:$0xff]
        %v977 = vld [vmem:[%s4 + $0x8] sm:$0xff]
        %v978 = vld [vmem:[%s4 + $0x10] sm:$0xff]
        %v979 = vld [vmem:[%s4 + $0x18] sm:$0xff]
        %v980 = vld [vmem:[%s4 + $0x20] sm:$0xff]
        %v981 = vld [vmem:[%s4 + $0x28] sm:$0xff]
        %v982 = vld [vmem:[%s4 + $0x30] sm:$0xff]
        %v983 = vld [vmem:[%s4 + $0x38] sm:$0xff]
        %v984 = vld [vmem:[%s4 + $0x40] sm:$0xff]
        %v985 = vld [vmem:[%s4 + $0x48] sm:$0xff]
        %v986 = vld [vmem:[%s4 + $0x50] sm:$0xff]
        %v987 = vld [vmem:[%s4 + $0x58] sm:$0xff]
        %v988 = vld [vmem:[%s4 + $0x60] sm:$0xff]
        %v989 = vld [vmem:[%s4 + $0x68] sm:$0xff]
        %v990 = vld [vmem:[%s4 + $0x70] sm:$0xff]
        %v991 = vld [vmem:[%s4 + $0x78] sm:$0xff]
        %v992 = vld [vmem:[%s5] sm:$0xf]
        %v993 = vlaneseq
        %v994 = vshrl.u32 %v993, 7
        %vm995 = vcmp.eq.s32.totalorder %v994, 0
        %v996 = vld [vmem:[%s963] sm:$0xff]
        %v997 = vld [vmem:[%s967] sm:$0xff]
        %v998 = vld [vmem:[%s971] sm:$0xff]
        %v999 = vld [vmem:[%s975] sm:$0xff]
        %v1001 = vrot.slane %v997, 7
        %vm1003 = vcmask 1040384
        %v1004 = vsel %vm1003, %v996, %v1001
        %v1005 = vld [vmem:[%s6] sm:$0x1]
        %v1006 = vld [vmem:[#allocation2] sm:$0x1]
        %vm1007 = vcmask 254976
        %v1008 = vsel %vm1007, %v1004, 0.0
        %1009 = vadd.xlane.f32.xlu0 %v1008
        %v1010 = vpop.xlane.xlu0 %1009
        %v1011 = vrcp.pop 32.0
        %v1012 = vmul.f32 32.0, %v1011
        %v1013 = vsub.f32 1.0, %v1012
        %v1014 = vmul.f32 %v1011, %v1013
        %v1015 = vadd.f32 %v1011, %v1014
        %vm1016 = vweird.f32 %v1011
        %v1017 = vsel %vm1016, %v1011, %v1015
        %v1018 = vmul.f32 %v1010, %v1017
        %v1019 = vsub.f32 %v1004, %v1018
        %v1020 = vmul.f32 %v1019, %v1019
        %v1021 = vsel %vm1007, %v1020, 0.0
        %1022 = vadd.xlane.f32.xlu0 %v1021
        %v1023 = vpop.xlane.xlu0 %1022
        %v1024 = vmul.f32 %v1023, %v1017
        %v1025 = vadd.f32 %v1024, 1e-05
        %v1026 = vrsqrt.pop %v1025
        %v1027 = vmul.f32 %v1026, %v1025
        %v1028 = vmul.f32 %v1027, %v1026
        %v1029 = vmul.f32 0.5, %v1028
        %v1030 = vsub.f32 1.5, %v1029
        %v1031 = vmul.f32 %v1026, %v1030
        %vm1032 = vweird.f32 %v1025
        %vm1033 = vweird.f32 %v1026
        %vm1034 = vmor %vm1032, %vm1033
        %v1035 = vsel %vm1034, %v1026, %v1031
        %v1036 = vmul.f32 %v1019, %v1035
        %v1038 = vperm.slane %v1005, 0
        %v1040 = vmul.f32 %v1036, %v1038
        %v1042 = vperm.slane %v1006, 0
        %v1044 = vadd.f32 %v1040, %v1042
        %v1045 = vld [vmem:[%s8] sm:$0xff]
        %v1046 = vld [vmem:[%s8 + $0x8] sm:$0xff]
        %v1047 = vld [vmem:[%s8 + $0x10] sm:$0xff]
        %v1048 = vld [vmem:[%s8 + $0x18] sm:$0xff]
        %vm1049 = vcmask 261120
        %v1051 = vsel %vm1049, %v1044, 0
        %1053 = vmatpush.msra.mxu0 0.0
        %1054 = vmatpush.msra.mxu0 0.0
        %1055 = vmatpush.msra.mxu0 0.0
        %1056 = vmatpush.msra.mxu0 0.0
        %1057 = vmatpush.msra.mxu0 0.0
        %1058 = vmatpush.msra.mxu0 0.0
        %1059 = vmatpush.msra.mxu0 0.0
        %1060 = vmatpush.msra.mxu0 0.0
        %1061 = vmatpush.msra.mxu0 0.0
        %1062 = vmatpush.msra.mxu0 0.0
        %1063 = vmatpush.msra.mxu0 0.0
        %1064 = vmatpush.msra.mxu0 0.0
        %1065 = vmatpush.msra.mxu0 %v1048
        %1066 = vmatpush.msra.mxu0 %v1047
        %1067 = vmatpush.msra.mxu0 %v1046
        %1068 = vmatpush.msra.mxu0 %v1045
        %1069 = vmatmul.f32.gmra.mxu0 %v1051
        %v1070 = vpop.f32.mrf.mxu0
        %v1071 = vadd.f32 0.0, %v1070
        %1072 = vdwg.mxu0
        %v1073 = vperm.slane %v1044, 0
        %v1074 = vsel %vm995, %v1073, %v998
        %v1075 = vperm.slane %v1044, 1
        %v1076 = vsel %vm995, %v1075, %v999
        %v1077 = vld [vmem:[#allocation5] sm:$0xff]
        %v1078 = vld [vmem:[#allocation5 + $0x8] sm:$0xff]
        %v1079 = vld [vmem:[#allocation5 + $0x10] sm:$0xff]
        %v1080 = vld [vmem:[#allocation5 + $0x18] sm:$0xff]
        %v1082 = vsel %vm1049, %v1074, 0
        %v1085 = vsel %vm1049, %v1076, 0
        %1087 = vmatpush.msra.mxu0 0.0
        %1088 = vmatpush.msra.mxu0 0.0
        %1089 = vmatpush.msra.mxu0 0.0
        %1090 = vmatpush.msra.mxu0 0.0
        %1091 = vmatpush.msra.mxu0 0.0
        %1092 = vmatpush.msra.mxu0 0.0
        %1093 = vmatpush.msra.mxu0 0.0
        %1094 = vmatpush.msra.mxu0 0.0
        %1095 = vmatpush.msra.mxu0 0.0
        %1096 = vmatpush.msra.mxu0 0.0
        %1097 = vmatpush.msra.mxu0 0.0
        %1098 = vmatpush.msra.mxu0 0.0
        %1099 = vmatpush.msra.mxu0 %v1080
        %1100 = vmatpush.msra.mxu0 %v1079
        %1101 = vmatpush.msra.mxu0 %v1078
        %1102 = vmatpush.msra.mxu0 %v1077
        %1103 = vmatmul.f32.gmra.mxu0 %v1082
        %v1104 = vpop.f32.mrf.mxu0
        %v1105 = vadd.f32 0.0, %v1104
        %1106 = vmatmul.f32.gmra.mxu0 %v1085
        %v1107 = vpop.f32.mrf.mxu0
        %v1108 = vadd.f32 0.0, %v1107
        %1109 = vdwg.mxu0
        %v1110 = vld [vmem:[#allocation7] sm:$0xff]
        %v1111 = vld [vmem:[#allocation7 + $0x8] sm:$0xff]
        %v1112 = vld [vmem:[#allocation7 + $0x10] sm:$0xff]
        %v1113 = vld [vmem:[#allocation7 + $0x18] sm:$0xff]
        %1114 = vmatpush.msra.mxu0 0.0
        %1115 = vmatpush.msra.mxu0 0.0
        %1116 = vmatpush.msra.mxu0 0.0
        %1117 = vmatpush.msra.mxu0 0.0
        %1118 = vmatpush.msra.mxu0 0.0
        %1119 = vmatpush.msra.mxu0 0.0
        %1120 = vmatpush.msra.mxu0 0.0
        %1121 = vmatpush.msra.mxu0 0.0
        %1122 = vmatpush.msra.mxu0 0.0
        %1123 = vmatpush.msra.mxu0 0.0
        %1124 = vmatpush.msra.mxu0 0.0
        %1125 = vmatpush.msra.mxu0 0.0
        %1126 = vmatpush.msra.mxu0 %v1113
        %1127 = vmatpush.msra.mxu0 %v1112
        %1128 = vmatpush.msra.mxu0 %v1111
        %1129 = vmatpush.msra.mxu0 %v1110
        %1130 = vmatmul.f32.gmra.mxu0 %v1082
        %v1131 = vpop.f32.mrf.mxu0
        %v1132 = vadd.f32 0.0, %v1131
        %1133 = vmatmul.f32.gmra.mxu0 %v1085
        %v1134 = vpop.f32.mrf.mxu0
        %v1135 = vadd.f32 0.0, %v1134
        %1136 = vdwg.mxu0
        %v1137 = vld [vmem:[%s11] sm:$0x7]
        %v1138 = vld [vmem:[%s12] sm:$0x7]
        %v1139 = vperm.slane %v1071, 0
        %v1140 = vmul.f32 %v1105, %v1139
        %v1141 = vmul.f32 %v1137, %v1139
        %1142 = vmatpush.msra.mxu0 %v991
        %1143 = vmatpush.msra.mxu0 %v990
        %1144 = vmatpush.msra.mxu0 %v989
        %1145 = vmatpush.msra.mxu0 %v988
        %1146 = vmatpush.msra.mxu0 %v987
        %1147 = vmatpush.msra.mxu0 %v986
        %1148 = vmatpush.msra.mxu0 %v985
        %1149 = vmatpush.msra.mxu0 %v984
        %1150 = vmatpush.msra.mxu0 %v983
        %1151 = vmatpush.msra.mxu0 %v982
        %1152 = vmatpush.msra.mxu0 %v981
        %1153 = vmatpush.msra.mxu0 %v980
        %1154 = vmatpush.msra.mxu0 %v979
        %1155 = vmatpush.msra.mxu0 %v978
        %1156 = vmatpush.msra.mxu0 %v977
        %1157 = vmatpush.msra.mxu0 %v976
        %1158 = vmatmul.f32.gmra.mxu0 %v1140
        %v1159 = vpop.f32.mrf.mxu0
        %v1160 = vadd.f32 0.0, %v1159
        %1161 = vmatmul.f32.gmra.mxu0 %v1141
        %v1162 = vpop.f32.mrf.mxu0
        %v1163 = vadd.f32 0.0, %v1162
        %1164 = vdwg.mxu0
        %v1165 = vmul.f32 %v1160, 0.17677669
        %v1166 = vmul.f32 %v1163, 0.17677669
        %vm1167 = vcmask 31744
        %v1168 = vsel %vm1167, %v1165, -inf
        %vm1169 = vcmask 26624
        %v1170 = vsel %vm1169, %v1166, -inf
        %v1171 = vmax.f32 %v1168, %v1170
        %v1172 = vrot.slane %v1171, 4
        %v1173 = vmax.f32 %v1171, %v1172
        %v1174 = vrot.slane %v1173, 2
        %v1175 = vmax.f32 %v1173, %v1174
        %v1176 = vrot.slane %v1175, 1
        %v1177 = vmax.f32 %v1175, %v1176
        %v1178 = vsub.f32 %v1165, %v1177
        %v1179 = vsub.f32 %v1166, %v1177
        %v1180 = vmul.f32 %v1178, 1.442695
        %v1181 = vpow.pop %v1180
        %v1182 = vmul.f32 %v1179, 1.442695
        %v1183 = vpow.pop %v1182
        %v1184 = vsel %vm1167, %v1181, 0.0
        %v1185 = vsel %vm1169, %v1183, 0.0
        %v1186 = vadd.f32 %v1184, %v1185
        %v1187 = vrot.slane %v1186, 4
        %v1188 = vadd.f32 %v1186, %v1187
        %v1189 = vrot.slane %v1188, 2
        %v1190 = vadd.f32 %v1188, %v1189
        %v1191 = vrot.slane %v1190, 1
        %v1192 = vadd.f32 %v1190, %v1191
        %v1193 = vrcp.pop %v1192
        %v1194 = vmul.f32 %v1181, %v1193
        %v1195 = vmul.f32 %v1183, %v1193
        %v1197 = vsel %vm1167, %v1194, 0
        %v1200 = vsel %vm1167, %v1195, 0
        %vm1202 = vcmask 1043456
        %v1204 = vsel %vm1202, %v992, 0
        %1206 = vmatpush.msra.mxu0 0.0
        %1207 = vmatpush.msra.mxu0 0.0
        %1208 = vmatpush.msra.mxu0 0.0
        %1209 = vmatpush.msra.mxu0 0.0
        %1210 = vmatpush.msra.mxu0 0.0
        %1211 = vmatpush.msra.mxu0 0.0
        %1212 = vmatpush.msra.mxu0 0.0
        %1213 = vmatpush.msra.mxu0 0.0
        %1214 = vmatpush.msra.mxu0 0.0
        %1215 = vmatpush.msra.mxu0 0.0
        %1216 = vmatpush.msra.mxu0 0.0
        %1217 = vmatpush.msra.mxu0 0.0
        %1218 = vmatpush.msra.mxu0 0.0
        %1219 = vmatpush.msra.mxu0 0.0
        %1220 = vmatpush.msra.mxu0 0.0
        %1221 = vmatpush.msra.mxu0 %v1204
        %1222 = vmatmul.f32.gmra.mxu0 %v1197
        %v1223 = vpop.f32.mrf.mxu0
        %v1224 = vadd.f32 0.0, %v1223
        %1225 = vmatmul.f32.gmra.mxu0 %v1200
        %v1226 = vpop.f32.mrf.mxu0
        %v1227 = vadd.f32 0.0, %v1226
        %1228 = vdwg.mxu0
        %v1229 = vmul.f32 %v1224, %v1132
        %v1230 = vmul.f32 %v1227, %v1138
        %vm1231 = vcmask 1042432
        %v1232 = vsel %vm1231, %v1230, 0.0
        %v1233 = vadd.f32 %v1229, %v1232
        %v1234 = vrot.slane %v1233, 4
        %v1235 = vadd.f32 %v1233, %v1234
        %v1236 = vrot.slane %v1235, 2
        %v1237 = vadd.f32 %v1235, %v1236
        %v1238 = vrot.slane %v1237, 1
        %v1239 = vadd.f32 %v1237, %v1238
        %v1240 = vperm.slane %v1071, 1
        %v1241 = vmul.f32 %v1108, %v1240
        %v1242 = vmul.f32 %v1137, %v1240
        %1243 = vmatpush.msra.mxu0 %v991
        %1244 = vmatpush.msra.mxu0 %v990
        %1245 = vmatpush.msra.mxu0 %v989
        %1246 = vmatpush.msra.mxu0 %v988
        %1247 = vmatpush.msra.mxu0 %v987
        %1248 = vmatpush.msra.mxu0 %v986
        %1249 = vmatpush.msra.mxu0 %v985
        %1250 = vmatpush.msra.mxu0 %v984
        %1251 = vmatpush.msra.mxu0 %v983
        %1252 = vmatpush.msra.mxu0 %v982
        %1253 = vmatpush.msra.mxu0 %v981
        %1254 = vmatpush.msra.mxu0 %v980
        %1255 = vmatpush.msra.mxu0 %v979
        %1256 = vmatpush.msra.mxu0 %v978
        %1257 = vmatpush.msra.mxu0 %v977
        %1258 = vmatpush.msra.mxu0 %v976
        %1259 = vmatmul.f32.gmra.mxu0 %v1241
        %v1260 = vpop.f32.mrf.mxu0
        %v1261 = vadd.f32 0.0, %v1260
        %1262 = vmatmul.f32.gmra.mxu0 %v1242
        %v1263 = vpop.f32.mrf.mxu0
        %v1264 = vadd.f32 0.0, %v1263
        %1265 = vdwg.mxu0
        %v1266 = vmul.f32 %v1261, 0.17677669
        %v1267 = vmul.f32 %v1264, 0.17677669
        %v1268 = vsel %vm1167, %v1266, -inf
        %v1269 = vsel %vm1169, %v1267, -inf
        %v1270 = vmax.f32 %v1268, %v1269
        %v1271 = vrot.slane %v1270, 4
        %v1272 = vmax.f32 %v1270, %v1271
        %v1273 = vrot.slane %v1272, 2
        %v1274 = vmax.f32 %v1272, %v1273
        %v1275 = vrot.slane %v1274, 1
        %v1276 = vmax.f32 %v1274, %v1275
        %v1277 = vsub.f32 %v1266, %v1276
        %v1278 = vsub.f32 %v1267, %v1276
        %v1279 = vmul.f32 %v1277, 1.442695
        %v1280 = vpow.pop %v1279
        %v1281 = vmul.f32 %v1278, 1.442695
        %v1282 = vpow.pop %v1281
        %v1283 = vsel %vm1167, %v1280, 0.0
        %v1284 = vsel %vm1169, %v1282, 0.0
        %v1285 = vadd.f32 %v1283, %v1284
        %v1286 = vrot.slane %v1285, 4
        %v1287 = vadd.f32 %v1285, %v1286
        %v1288 = vrot.slane %v1287, 2
        %v1289 = vadd.f32 %v1287, %v1288
        %v1290 = vrot.slane %v1289, 1
        %v1291 = vadd.f32 %v1289, %v1290
        %v1292 = vrcp.pop %v1291
        %v1293 = vmul.f32 %v1280, %v1292
        %v1294 = vmul.f32 %v1282, %v1292
        %v1296 = vsel %vm1167, %v1293, 0
        %v1299 = vsel %vm1167, %v1294, 0
        %1301 = vmatpush.msra.mxu0 0.0
        %1302 = vmatpush.msra.mxu0 0.0
        %1303 = vmatpush.msra.mxu0 0.0
        %1304 = vmatpush.msra.mxu0 0.0
        %1305 = vmatpush.msra.mxu0 0.0
        %1306 = vmatpush.msra.mxu0 0.0
        %1307 = vmatpush.msra.mxu0 0.0
        %1308 = vmatpush.msra.mxu0 0.0
        %1309 = vmatpush.msra.mxu0 0.0
        %1310 = vmatpush.msra.mxu0 0.0
        %1311 = vmatpush.msra.mxu0 0.0
        %1312 = vmatpush.msra.mxu0 0.0
        %1313 = vmatpush.msra.mxu0 0.0
        %1314 = vmatpush.msra.mxu0 0.0
        %1315 = vmatpush.msra.mxu0 0.0
        %1316 = vmatpush.msra.mxu0 %v1204
        %1317 = vmatmul.f32.gmra.mxu0 %v1296
        %v1318 = vpop.f32.mrf.mxu0
        %v1319 = vadd.f32 0.0, %v1318
        %1320 = vmatmul.f32.gmra.mxu0 %v1299
        %v1321 = vpop.f32.mrf.mxu0
        %v1322 = vadd.f32 0.0, %v1321
        %1323 = vdwg.mxu0
        %v1324 = vmul.f32 %v1319, %v1135
        %v1325 = vmul.f32 %v1322, %v1138
        %v1326 = vsel %vm1231, %v1325, 0.0
        %v1327 = vadd.f32 %v1324, %v1326
        %v1328 = vrot.slane %v1327, 4
        %v1329 = vadd.f32 %v1327, %v1328
        %v1330 = vrot.slane %v1329, 2
        %v1331 = vadd.f32 %v1329, %v1330
        %v1332 = vrot.slane %v1331, 1
        %v1333 = vadd.f32 %v1331, %v1332
        %v1334 = vsel %vm1003, %v1239, %v1333
        %v1335 = vld [vmem:[%s13] sm:$0xff]
        %v1336 = vld [vmem:[%s13 + $0x8] sm:$0xff]
        %v1337 = vld [vmem:[%s13 + $0x10] sm:$0xff]
        %v1338 = vld [vmem:[%s13 + $0x18] sm:$0xff]
        %v1339 = vld [vmem:[%s13 + $0x20] sm:$0xff]
        %v1340 = vld [vmem:[%s13 + $0x28] sm:$0xff]
        %v1341 = vld [vmem:[%s13 + $0x30] sm:$0xff]
        %v1342 = vld [vmem:[%s13 + $0x38] sm:$0xff]
        %v1343 = vld [vmem:[%s13 + $0x40] sm:$0xff]
        %v1344 = vld [vmem:[%s13 + $0x48] sm:$0xff]
        %v1345 = vld [vmem:[%s13 + $0x50] sm:$0xff]
        %v1346 = vld [vmem:[%s13 + $0x58] sm:$0xff]
        %v1347 = vld [vmem:[%s13 + $0x60] sm:$0xff]
        %v1348 = vld [vmem:[%s13 + $0x68] sm:$0xff]
        %v1349 = vld [vmem:[%s13 + $0x70] sm:$0xff]
        %v1350 = vld [vmem:[%s13 + $0x78] sm:$0xff]
        %v1351 = vld [vmem:[#allocation8] sm:$0x1]
        %v1353 = vperm.slane %v1351, 0
        %1355 = vmatpush.msra.mxu0 %v1350
        %1356 = vmatpush.msra.mxu0 %v1349
        %1357 = vmatpush.msra.mxu0 %v1348
        %1358 = vmatpush.msra.mxu0 %v1347
        %1359 = vmatpush.msra.mxu0 %v1346
        %1360 = vmatpush.msra.mxu0 %v1345
        %1361 = vmatpush.msra.mxu0 %v1344
        %1362 = vmatpush.msra.mxu0 %v1343
        %1363 = vmatpush.msra.mxu0 %v1342
        %1364 = vmatpush.msra.mxu0 %v1341
        %1365 = vmatpush.msra.mxu0 %v1340
        %1366 = vmatpush.msra.mxu0 %v1339
        %1367 = vmatpush.msra.mxu0 %v1338
        %1368 = vmatpush.msra.mxu0 %v1337
        %1369 = vmatpush.msra.mxu0 %v1336
        %1370 = vmatpush.msra.mxu0 %v1335
        %1371 = vmatmul.f32.gmra.mxu0 %v1334
        %v1372 = vpop.f32.mrf.mxu0
        %v1373 = vadd.f32 %v1353, %v1372
        %1374 = vdwg.mxu0
        %v1375 = vadd.f32 %v1004, %v1373
        %v1377 = vrot.slane %v999, 7
        %v1379 = vsel %vm1003, %v998, %v1377
        %s1380 = scalar_lea.vmem %s6, 1
        %v1381 = vld [vmem:[%s1380] sm:$0x1]
        %s1382 = scalar_lea.vmem [#allocation2], 1
        %v1383 = vld [vmem:[%s1382] sm:$0x1]
        %v1384 = vsel %vm1007, %v1379, 0.0
        %1385 = vadd.xlane.f32.xlu0 %v1384
        %v1386 = vpop.xlane.xlu0 %1385
        %v1387 = vmul.f32 %v1386, %v1017
        %v1388 = vsub.f32 %v1379, %v1387
        %v1389 = vmul.f32 %v1388, %v1388
        %v1390 = vsel %vm1007, %v1389, 0.0
        %1391 = vadd.xlane.f32.xlu0 %v1390
        %v1392 = vpop.xlane.xlu0 %1391
        %v1393 = vmul.f32 %v1392, %v1017
        %v1394 = vadd.f32 %v1393, 1e-05
        %v1395 = vrsqrt.pop %v1394
        %v1396 = vmul.f32 %v1395, %v1394
        %v1397 = vmul.f32 %v1396, %v1395
        %v1398 = vmul.f32 0.5, %v1397
        %v1399 = vsub.f32 1.5, %v1398
        %v1400 = vmul.f32 %v1395, %v1399
        %vm1401 = vweird.f32 %v1394
        %vm1402 = vweird.f32 %v1395
        %vm1403 = vmor %vm1401, %vm1402
        %v1404 = vsel %vm1403, %v1395, %v1400
        %v1405 = vmul.f32 %v1388, %v1404
        %v1407 = vperm.slane %v1381, 0
        %v1409 = vmul.f32 %v1405, %v1407
        %v1411 = vperm.slane %v1383, 0
        %v1413 = vadd.f32 %v1409, %v1411
        %s1414 = scalar_lea.vmem %s8, 32
        %v1415 = vld [vmem:[%s1414] sm:$0xff]
        %v1416 = vld [vmem:[%s1414 + $0x8] sm:$0xff]
        %v1417 = vld [vmem:[%s1414 + $0x10] sm:$0xff]
        %v1418 = vld [vmem:[%s1414 + $0x18] sm:$0xff]
        %v1420 = vsel %vm1049, %v1413, 0
        %1422 = vmatpush.msra.mxu0 0.0
        %1423 = vmatpush.msra.mxu0 0.0
        %1424 = vmatpush.msra.mxu0 0.0
        %1425 = vmatpush.msra.mxu0 0.0
        %1426 = vmatpush.msra.mxu0 0.0
        %1427 = vmatpush.msra.mxu0 0.0
        %1428 = vmatpush.msra.mxu0 0.0
        %1429 = vmatpush.msra.mxu0 0.0
        %1430 = vmatpush.msra.mxu0 0.0
        %1431 = vmatpush.msra.mxu0 0.0
        %1432 = vmatpush.msra.mxu0 0.0
        %1433 = vmatpush.msra.mxu0 0.0
        %1434 = vmatpush.msra.mxu0 %v1418
        %1435 = vmatpush.msra.mxu0 %v1417
        %1436 = vmatpush.msra.mxu0 %v1416
        %1437 = vmatpush.msra.mxu0 %v1415
        %1438 = vmatmul.f32.gmra.mxu0 %v1420
        %v1439 = vpop.f32.mrf.mxu0
        %v1440 = vadd.f32 0.0, %v1439
        %1441 = vdwg.mxu0
        %v1442 = vperm.slane %v1413, 0
        %v1443 = vsel %vm995, %v1442, %v996
        %v1444 = vperm.slane %v1413, 1
        %v1445 = vsel %vm995, %v1444, %v997
        %s1446 = scalar_lea.vmem [#allocation5], 32
        %v1447 = vld [vmem:[%s1446] sm:$0xff]
        %v1448 = vld [vmem:[%s1446 + $0x8] sm:$0xff]
        %v1449 = vld [vmem:[%s1446 + $0x10] sm:$0xff]
        %v1450 = vld [vmem:[%s1446 + $0x18] sm:$0xff]
        %v1452 = vsel %vm1049, %v1443, 0
        %v1455 = vsel %vm1049, %v1445, 0
        %1457 = vmatpush.msra.mxu0 0.0
        %1458 = vmatpush.msra.mxu0 0.0
        %1459 = vmatpush.msra.mxu0 0.0
        %1460 = vmatpush.msra.mxu0 0.0
        %1461 = vmatpush.msra.mxu0 0.0
        %1462 = vmatpush.msra.mxu0 0.0
        %1463 = vmatpush.msra.mxu0 0.0
        %1464 = vmatpush.msra.mxu0 0.0
        %1465 = vmatpush.msra.mxu0 0.0
        %1466 = vmatpush.msra.mxu0 0.0
        %1467 = vmatpush.msra.mxu0 0.0
        %1468 = vmatpush.msra.mxu0 0.0
        %1469 = vmatpush.msra.mxu0 %v1450
        %1470 = vmatpush.msra.mxu0 %v1449
        %1471 = vmatpush.msra.mxu0 %v1448
        %1472 = vmatpush.msra.mxu0 %v1447
        %1473 = vmatmul.f32.gmra.mxu0 %v1452
        %v1474 = vpop.f32.mrf.mxu0
        %v1475 = vadd.f32 0.0, %v1474
        %1476 = vmatmul.f32.gmra.mxu0 %v1455
        %v1477 = vpop.f32.mrf.mxu0
        %v1478 = vadd.f32 0.0, %v1477
        %1479 = vdwg.mxu0
        %s1480 = scalar_lea.vmem [#allocation7], 32
        %v1481 = vld [vmem:[%s1480] sm:$0xff]
        %v1482 = vld [vmem:[%s1480 + $0x8] sm:$0xff]
        %v1483 = vld [vmem:[%s1480 + $0x10] sm:$0xff]
        %v1484 = vld [vmem:[%s1480 + $0x18] sm:$0xff]
        %1485 = vmatpush.msra.mxu0 0.0
        %1486 = vmatpush.msra.mxu0 0.0
        %1487 = vmatpush.msra.mxu0 0.0
        %1488 = vmatpush.msra.mxu0 0.0
        %1489 = vmatpush.msra.mxu0 0.0
        %1490 = vmatpush.msra.mxu0 0.0
        %1491 = vmatpush.msra.mxu0 0.0
        %1492 = vmatpush.msra.mxu0 0.0
        %1493 = vmatpush.msra.mxu0 0.0
        %1494 = vmatpush.msra.mxu0 0.0
        %1495 = vmatpush.msra.mxu0 0.0
        %1496 = vmatpush.msra.mxu0 0.0
        %1497 = vmatpush.msra.mxu0 %v1484
        %1498 = vmatpush.msra.mxu0 %v1483
        %1499 = vmatpush.msra.mxu0 %v1482
        %1500 = vmatpush.msra.mxu0 %v1481
        %1501 = vmatmul.f32.gmra.mxu0 %v1452
        %v1502 = vpop.f32.mrf.mxu0
        %v1503 = vadd.f32 0.0, %v1502
        %1504 = vmatmul.f32.gmra.mxu0 %v1455
        %v1505 = vpop.f32.mrf.mxu0
        %v1506 = vadd.f32 0.0, %v1505
        %1507 = vdwg.mxu0
        %s1508 = scalar_lea.vmem %s11, 4
        %v1509 = vld [vmem:[%s1508] sm:$0x7]
        %s1510 = scalar_lea.vmem %s12, 4
        %v1511 = vld [vmem:[%s1510] sm:$0x7]
        %v1512 = vperm.slane %v1440, 0
        %v1513 = vmul.f32 %v1475, %v1512
        %v1514 = vmul.f32 %v1509, %v1512
        %1515 = vmatpush.msra.mxu0 %v991
        %1516 = vmatpush.msra.mxu0 %v990
        %1517 = vmatpush.msra.mxu0 %v989
        %1518 = vmatpush.msra.mxu0 %v988
        %1519 = vmatpush.msra.mxu0 %v987
        %1520 = vmatpush.msra.mxu0 %v986
        %1521 = vmatpush.msra.mxu0 %v985
        %1522 = vmatpush.msra.mxu0 %v984
        %1523 = vmatpush.msra.mxu0 %v983
        %1524 = vmatpush.msra.mxu0 %v982
        %1525 = vmatpush.msra.mxu0 %v981
        %1526 = vmatpush.msra.mxu0 %v980
        %1527 = vmatpush.msra.mxu0 %v979
        %1528 = vmatpush.msra.mxu0 %v978
        %1529 = vmatpush.msra.mxu0 %v977
        %1530 = vmatpush.msra.mxu0 %v976
        %1531 = vmatmul.f32.gmra.mxu0 %v1513
        %v1532 = vpop.f32.mrf.mxu0
        %v1533 = vadd.f32 0.0, %v1532
        %1534 = vmatmul.f32.gmra.mxu0 %v1514
        %v1535 = vpop.f32.mrf.mxu0
        %v1536 = vadd.f32 0.0, %v1535
        %1537 = vdwg.mxu0
        %v1538 = vmul.f32 %v1533, 0.17677669
        %v1539 = vmul.f32 %v1536, 0.17677669
        %v1540 = vsel %vm1167, %v1538, -inf
        %v1541 = vsel %vm1169, %v1539, -inf
        %v1542 = vmax.f32 %v1540, %v1541
        %v1543 = vrot.slane %v1542, 4
        %v1544 = vmax.f32 %v1542, %v1543
        %v1545 = vrot.slane %v1544, 2
        %v1546 = vmax.f32 %v1544, %v1545
        %v1547 = vrot.slane %v1546, 1
        %v1548 = vmax.f32 %v1546, %v1547
        %v1549 = vsub.f32 %v1538, %v1548
        %v1550 = vsub.f32 %v1539, %v1548
        %v1551 = vmul.f32 %v1549, 1.442695
        %v1552 = vpow.pop %v1551
        %v1553 = vmul.f32 %v1550, 1.442695
        %v1554 = vpow.pop %v1553
        %v1555 = vsel %vm1167, %v1552, 0.0
        %v1556 = vsel %vm1169, %v1554, 0.0
        %v1557 = vadd.f32 %v1555, %v1556
        %v1558 = vrot.slane %v1557, 4
        %v1559 = vadd.f32 %v1557, %v1558
        %v1560 = vrot.slane %v1559, 2
        %v1561 = vadd.f32 %v1559, %v1560
        %v1562 = vrot.slane %v1561, 1
        %v1563 = vadd.f32 %v1561, %v1562
        %v1564 = vrcp.pop %v1563
        %v1565 = vmul.f32 %v1552, %v1564
        %v1566 = vmul.f32 %v1554, %v1564
        %v1568 = vsel %vm1167, %v1565, 0
        %v1571 = vsel %vm1167, %v1566, 0
        %1573 = vmatpush.msra.mxu0 0.0
        %1574 = vmatpush.msra.mxu0 0.0
        %1575 = vmatpush.msra.mxu0 0.0
        %1576 = vmatpush.msra.mxu0 0.0
        %1577 = vmatpush.msra.mxu0 0.0
        %1578 = vmatpush.msra.mxu0 0.0
        %1579 = vmatpush.msra.mxu0 0.0
        %1580 = vmatpush.msra.mxu0 0.0
        %1581 = vmatpush.msra.mxu0 0.0
        %1582 = vmatpush.msra.mxu0 0.0
        %1583 = vmatpush.msra.mxu0 0.0
        %1584 = vmatpush.msra.mxu0 0.0
        %1585 = vmatpush.msra.mxu0 0.0
        %1586 = vmatpush.msra.mxu0 0.0
        %1587 = vmatpush.msra.mxu0 0.0
        %1588 = vmatpush.msra.mxu0 %v1204
        %1589 = vmatmul.f32.gmra.mxu0 %v1568
        %v1590 = vpop.f32.mrf.mxu0
        %v1591 = vadd.f32 0.0, %v1590
        %1592 = vmatmul.f32.gmra.mxu0 %v1571
        %v1593 = vpop.f32.mrf.mxu0
        %v1594 = vadd.f32 0.0, %v1593
        %1595 = vdwg.mxu0
        %v1596 = vmul.f32 %v1591, %v1503
        %v1597 = vmul.f32 %v1594, %v1511
        %v1598 = vsel %vm1231, %v1597, 0.0
        %v1599 = vadd.f32 %v1596, %v1598
        %v1600 = vrot.slane %v1599, 4
        %v1601 = vadd.f32 %v1599, %v1600
        %v1602 = vrot.slane %v1601, 2
        %v1603 = vadd.f32 %v1601, %v1602
        %v1604 = vrot.slane %v1603, 1
        %v1605 = vadd.f32 %v1603, %v1604
        %v1606 = vperm.slane %v1440, 1
        %v1607 = vmul.f32 %v1478, %v1606
        %v1608 = vmul.f32 %v1509, %v1606
        %1609 = vmatpush.msra.mxu0 %v991
        %1610 = vmatpush.msra.mxu0 %v990
        %1611 = vmatpush.msra.mxu0 %v989
        %1612 = vmatpush.msra.mxu0 %v988
        %1613 = vmatpush.msra.mxu0 %v987
        %1614 = vmatpush.msra.mxu0 %v986
        %1615 = vmatpush.msra.mxu0 %v985
        %1616 = vmatpush.msra.mxu0 %v984
        %1617 = vmatpush.msra.mxu0 %v983
        %1618 = vmatpush.msra.mxu0 %v982
        %1619 = vmatpush.msra.mxu0 %v981
        %1620 = vmatpush.msra.mxu0 %v980
        %1621 = vmatpush.msra.mxu0 %v979
        %1622 = vmatpush.msra.mxu0 %v978
        %1623 = vmatpush.msra.mxu0 %v977
        %1624 = vmatpush.msra.mxu0 %v976
        %1625 = vmatmul.f32.gmra.mxu0 %v1607
        %v1626 = vpop.f32.mrf.mxu0
        %v1627 = vadd.f32 0.0, %v1626
        %1628 = vmatmul.f32.gmra.mxu0 %v1608
        %v1629 = vpop.f32.mrf.mxu0
        %v1630 = vadd.f32 0.0, %v1629
        %1631 = vdwg.mxu0
        %v1632 = vmul.f32 %v1627, 0.17677669
        %v1633 = vmul.f32 %v1630, 0.17677669
        %v1634 = vsel %vm1167, %v1632, -inf
        %v1635 = vsel %vm1169, %v1633, -inf
        %v1636 = vmax.f32 %v1634, %v1635
        %v1637 = vrot.slane %v1636, 4
        %v1638 = vmax.f32 %v1636, %v1637
        %v1639 = vrot.slane %v1638, 2
        %v1640 = vmax.f32 %v1638, %v1639
        %v1641 = vrot.slane %v1640, 1
        %v1642 = vmax.f32 %v1640, %v1641
        %v1643 = vsub.f32 %v1632, %v1642
        %v1644 = vsub.f32 %v1633, %v1642
        %v1645 = vmul.f32 %v1643, 1.442695
        %v1646 = vpow.pop %v1645
        %v1647 = vmul.f32 %v1644, 1.442695
        %v1648 = vpow.pop %v1647
        %v1649 = vsel %vm1167, %v1646, 0.0
        %v1650 = vsel %vm1169, %v1648, 0.0
        %v1651 = vadd.f32 %v1649, %v1650
        %v1652 = vrot.slane %v1651, 4
        %v1653 = vadd.f32 %v1651, %v1652
        %v1654 = vrot.slane %v1653, 2
        %v1655 = vadd.f32 %v1653, %v1654
        %v1656 = vrot.slane %v1655, 1
        %v1657 = vadd.f32 %v1655, %v1656
        %v1658 = vrcp.pop %v1657
        %v1659 = vmul.f32 %v1646, %v1658
        %v1660 = vmul.f32 %v1648, %v1658
        %v1662 = vsel %vm1167, %v1659, 0
        %v1665 = vsel %vm1167, %v1660, 0
        %1667 = vmatpush.msra.mxu0 0.0
        %1668 = vmatpush.msra.mxu0 0.0
        %1669 = vmatpush.msra.mxu0 0.0
        %1670 = vmatpush.msra.mxu0 0.0
        %1671 = vmatpush.msra.mxu0 0.0
        %1672 = vmatpush.msra.mxu0 0.0
        %1673 = vmatpush.msra.mxu0 0.0
        %1674 = vmatpush.msra.mxu0 0.0
        %1675 = vmatpush.msra.mxu0 0.0
        %1676 = vmatpush.msra.mxu0 0.0
        %1677 = vmatpush.msra.mxu0 0.0
        %1678 = vmatpush.msra.mxu0 0.0
        %1679 = vmatpush.msra.mxu0 0.0
        %1680 = vmatpush.msra.mxu0 0.0
        %1681 = vmatpush.msra.mxu0 0.0
        %1682 = vmatpush.msra.mxu0 %v1204
        %1683 = vmatmul.f32.gmra.mxu0 %v1662
        %v1684 = vpop.f32.mrf.mxu0
        %v1685 = vadd.f32 0.0, %v1684
        %1686 = vmatmul.f32.gmra.mxu0 %v1665
        %v1687 = vpop.f32.mrf.mxu0
        %v1688 = vadd.f32 0.0, %v1687
        %1689 = vdwg.mxu0
        %v1690 = vmul.f32 %v1685, %v1506
        %v1691 = vmul.f32 %v1688, %v1511
        %v1692 = vsel %vm1231, %v1691, 0.0
        %v1693 = vadd.f32 %v1690, %v1692
        %v1694 = vrot.slane %v1693, 4
        %v1695 = vadd.f32 %v1693, %v1694
        %v1696 = vrot.slane %v1695, 2
        %v1697 = vadd.f32 %v1695, %v1696
        %v1698 = vrot.slane %v1697, 1
        %v1699 = vadd.f32 %v1697, %v1698
        %v1700 = vsel %vm1003, %v1605, %v1699
        %s1701 = scalar_lea.vmem %s13, 128
        %v1702 = vld [vmem:[%s1701] sm:$0xff]
        %v1703 = vld [vmem:[%s1701 + $0x8] sm:$0xff]
        %v1704 = vld [vmem:[%s1701 + $0x10] sm:$0xff]
        %v1705 = vld [vmem:[%s1701 + $0x18] sm:$0xff]
        %v1706 = vld [vmem:[%s1701 + $0x20] sm:$0xff]
        %v1707 = vld [vmem:[%s1701 + $0x28] sm:$0xff]
        %v1708 = vld [vmem:[%s1701 + $0x30] sm:$0xff]
        %v1709 = vld [vmem:[%s1701 + $0x38] sm:$0xff]
        %v1710 = vld [vmem:[%s1701 + $0x40] sm:$0xff]
        %v1711 = vld [vmem:[%s1701 + $0x48] sm:$0xff]
        %v1712 = vld [vmem:[%s1701 + $0x50] sm:$0xff]
        %v1713 = vld [vmem:[%s1701 + $0x58] sm:$0xff]
        %v1714 = vld [vmem:[%s1701 + $0x60] sm:$0xff]
        %v1715 = vld [vmem:[%s1701 + $0x68] sm:$0xff]
        %v1716 = vld [vmem:[%s1701 + $0x70] sm:$0xff]
        %v1717 = vld [vmem:[%s1701 + $0x78] sm:$0xff]
        %s1718 = scalar_lea.vmem [#allocation8], 1
        %v1719 = vld [vmem:[%s1718] sm:$0x1]
        %v1721 = vperm.slane %v1719, 0
        %1723 = vmatpush.msra.mxu0 %v1717
        %1724 = vmatpush.msra.mxu0 %v1716
        %1725 = vmatpush.msra.mxu0 %v1715
        %1726 = vmatpush.msra.mxu0 %v1714
        %1727 = vmatpush.msra.mxu0 %v1713
        %1728 = vmatpush.msra.mxu0 %v1712
        %1729 = vmatpush.msra.mxu0 %v1711
        %1730 = vmatpush.msra.mxu0 %v1710
        %1731 = vmatpush.msra.mxu0 %v1709
        %1732 = vmatpush.msra.mxu0 %v1708
        %1733 = vmatpush.msra.mxu0 %v1707
        %1734 = vmatpush.msra.mxu0 %v1706
        %1735 = vmatpush.msra.mxu0 %v1705
        %1736 = vmatpush.msra.mxu0 %v1704
        %1737 = vmatpush.msra.mxu0 %v1703
        %1738 = vmatpush.msra.mxu0 %v1702
        %1739 = vmatmul.f32.gmra.mxu0 %v1700
        %v1740 = vpop.f32.mrf.mxu0
        %v1741 = vadd.f32 %v1721, %v1740
        %1742 = vdwg.mxu0
        %v1743 = vadd.f32 %v1379, %v1741
        %s1744 = scalar_lea.vmem %s6, 2
        %v1745 = vld [vmem:[%s1744] sm:$0x1]
        %s1746 = scalar_lea.vmem [#allocation2], 2
        %v1747 = vld [vmem:[%s1746] sm:$0x1]
        %vm1748 = vcmask 253952
        %v1749 = vsel %vm1748, %v996, 0.0
        %1750 = vadd.xlane.f32.xlu0 %v1749
        %v1751 = vpop.xlane.xlu0 %1750
        %v1752 = vmul.f32 %v1751, %v1017
        %v1753 = vsub.f32 %v996, %v1752
        %v1754 = vmul.f32 %v1753, %v1753
        %v1755 = vsel %vm1748, %v1754, 0.0
        %1756 = vadd.xlane.f32.xlu0 %v1755
        %v1757 = vpop.xlane.xlu0 %1756
        %v1758 = vmul.f32 %v1757, %v1017
        %v1759 = vadd.f32 %v1758, 1e-05
        %v1760 = vrsqrt.pop %v1759
        %v1761 = vmul.f32 %v1760, %v1759
        %v1762 = vmul.f32 %v1761, %v1760
        %v1763 = vmul.f32 0.5, %v1762
        %v1764 = vsub.f32 1.5, %v1763
        %v1765 = vmul.f32 %v1760, %v1764
        %vm1766 = vweird.f32 %v1759
        %vm1767 = vweird.f32 %v1760
        %vm1768 = vmor %vm1766, %vm1767
        %v1769 = vsel %vm1768, %v1760, %v1765
        %v1770 = vmul.f32 %v1753, %v1769
        %v1771 = vmul.f32 %v1770, %v1745
        %v1772 = vadd.f32 %v1771, %v1747
        %s1773 = scalar_lea.vmem %s8, 64
        %v1774 = vld [vmem:[%s1773] sm:$0xff]
        %v1775 = vld [vmem:[%s1773 + $0x8] sm:$0xff]
        %v1776 = vld [vmem:[%s1773 + $0x10] sm:$0xff]
        %v1777 = vld [vmem:[%s1773 + $0x18] sm:$0xff]
        %v1779 = vsel %vm1049, %v1772, 0
        %1781 = vmatpush.msra.mxu0 0.0
        %1782 = vmatpush.msra.mxu0 0.0
        %1783 = vmatpush.msra.mxu0 0.0
        %1784 = vmatpush.msra.mxu0 0.0
        %1785 = vmatpush.msra.mxu0 0.0
        %1786 = vmatpush.msra.mxu0 0.0
        %1787 = vmatpush.msra.mxu0 0.0
        %1788 = vmatpush.msra.mxu0 0.0
        %1789 = vmatpush.msra.mxu0 0.0
        %1790 = vmatpush.msra.mxu0 0.0
        %1791 = vmatpush.msra.mxu0 0.0
        %1792 = vmatpush.msra.mxu0 0.0
        %1793 = vmatpush.msra.mxu0 %v1777
        %1794 = vmatpush.msra.mxu0 %v1776
        %1795 = vmatpush.msra.mxu0 %v1775
        %1796 = vmatpush.msra.mxu0 %v1774
        %1797 = vmatmul.f32.gmra.mxu0 %v1779
        %v1798 = vpop.f32.mrf.mxu0
        %v1799 = vadd.f32 0.0, %v1798
        %1800 = vdwg.mxu0
        %v1801 = vperm.slane %v1772, 0
        %v1802 = vsel %vm995, %v1801, %v997
        %s1803 = scalar_lea.vmem [#allocation5], 64
        %v1804 = vld [vmem:[%s1803] sm:$0xff]
        %v1805 = vld [vmem:[%s1803 + $0x8] sm:$0xff]
        %v1806 = vld [vmem:[%s1803 + $0x10] sm:$0xff]
        %v1807 = vld [vmem:[%s1803 + $0x18] sm:$0xff]
        %v1809 = vsel %vm1049, %v1802, 0
        %1811 = vmatpush.msra.mxu0 0.0
        %1812 = vmatpush.msra.mxu0 0.0
        %1813 = vmatpush.msra.mxu0 0.0
        %1814 = vmatpush.msra.mxu0 0.0
        %1815 = vmatpush.msra.mxu0 0.0
        %1816 = vmatpush.msra.mxu0 0.0
        %1817 = vmatpush.msra.mxu0 0.0
        %1818 = vmatpush.msra.mxu0 0.0
        %1819 = vmatpush.msra.mxu0 0.0
        %1820 = vmatpush.msra.mxu0 0.0
        %1821 = vmatpush.msra.mxu0 0.0
        %1822 = vmatpush.msra.mxu0 0.0
        %1823 = vmatpush.msra.mxu0 %v1807
        %1824 = vmatpush.msra.mxu0 %v1806
        %1825 = vmatpush.msra.mxu0 %v1805
        %1826 = vmatpush.msra.mxu0 %v1804
        %1827 = vmatmul.f32.gmra.mxu0 %v1809
        %v1828 = vpop.f32.mrf.mxu0
        %v1829 = vadd.f32 0.0, %v1828
        %1830 = vdwg.mxu0
        %s1831 = scalar_lea.vmem [#allocation7], 64
        %v1832 = vld [vmem:[%s1831] sm:$0xff]
        %v1833 = vld [vmem:[%s1831 + $0x8] sm:$0xff]
        %v1834 = vld [vmem:[%s1831 + $0x10] sm:$0xff]
        %v1835 = vld [vmem:[%s1831 + $0x18] sm:$0xff]
        %1836 = vmatpush.msra.mxu0 0.0
        %1837 = vmatpush.msra.mxu0 0.0
        %1838 = vmatpush.msra.mxu0 0.0
        %1839 = vmatpush.msra.mxu0 0.0
        %1840 = vmatpush.msra.mxu0 0.0
        %1841 = vmatpush.msra.mxu0 0.0
        %1842 = vmatpush.msra.mxu0 0.0
        %1843 = vmatpush.msra.mxu0 0.0
        %1844 = vmatpush.msra.mxu0 0.0
        %1845 = vmatpush.msra.mxu0 0.0
        %1846 = vmatpush.msra.mxu0 0.0
        %1847 = vmatpush.msra.mxu0 0.0
        %1848 = vmatpush.msra.mxu0 %v1835
        %1849 = vmatpush.msra.mxu0 %v1834
        %1850 = vmatpush.msra.mxu0 %v1833
        %1851 = vmatpush.msra.mxu0 %v1832
        %1852 = vmatmul.f32.gmra.mxu0 %v1809
        %v1853 = vpop.f32.mrf.mxu0
        %v1854 = vadd.f32 0.0, %v1853
        %1855 = vdwg.mxu0
        %s1856 = scalar_lea.vmem %s11, 8
        %v1857 = vld [vmem:[%s1856] sm:$0x7]
        %s1858 = scalar_lea.vmem %s12, 8
        %v1859 = vld [vmem:[%s1858] sm:$0x7]
        %v1860 = vperm.slane %v1799, 0
        %v1861 = vmul.f32 %v1829, %v1860
        %v1862 = vmul.f32 %v1857, %v1860
        %1863 = vmatpush.msra.mxu0 %v991
        %1864 = vmatpush.msra.mxu0 %v990
        %1865 = vmatpush.msra.mxu0 %v989
        %1866 = vmatpush.msra.mxu0 %v988
        %1867 = vmatpush.msra.mxu0 %v987
        %1868 = vmatpush.msra.mxu0 %v986
        %1869 = vmatpush.msra.mxu0 %v985
        %1870 = vmatpush.msra.mxu0 %v984
        %1871 = vmatpush.msra.mxu0 %v983
        %1872 = vmatpush.msra.mxu0 %v982
        %1873 = vmatpush.msra.mxu0 %v981
        %1874 = vmatpush.msra.mxu0 %v980
        %1875 = vmatpush.msra.mxu0 %v979
        %1876 = vmatpush.msra.mxu0 %v978
        %1877 = vmatpush.msra.mxu0 %v977
        %1878 = vmatpush.msra.mxu0 %v976
        %1879 = vmatmul.f32.gmra.mxu0 %v1861
        %v1880 = vpop.f32.mrf.mxu0
        %v1881 = vadd.f32 0.0, %v1880
        %1882 = vmatmul.f32.gmra.mxu0 %v1862
        %v1883 = vpop.f32.mrf.mxu0
        %v1884 = vadd.f32 0.0, %v1883
        %1885 = vdwg.mxu0
        %v1886 = vmul.f32 %v1881, 0.17677669
        %v1887 = vmul.f32 %v1884, 0.17677669
        %v1888 = vsel %vm1167, %v1886, -inf
        %v1889 = vsel %vm1169, %v1887, -inf
        %v1890 = vmax.f32 %v1888, %v1889
        %v1891 = vrot.slane %v1890, 4
        %v1892 = vmax.f32 %v1890, %v1891
        %v1893 = vrot.slane %v1892, 2
        %v1894 = vmax.f32 %v1892, %v1893
        %v1895 = vrot.slane %v1894, 1
        %v1896 = vmax.f32 %v1894, %v1895
        %v1897 = vsub.f32 %v1886, %v1896
        %v1898 = vsub.f32 %v1887, %v1896
        %v1899 = vmul.f32 %v1897, 1.442695
        %v1900 = vpow.pop %v1899
        %v1901 = vmul.f32 %v1898, 1.442695
        %v1902 = vpow.pop %v1901
        %v1903 = vsel %vm1167, %v1900, 0.0
        %v1904 = vsel %vm1169, %v1902, 0.0
        %v1905 = vadd.f32 %v1903, %v1904
        %v1906 = vrot.slane %v1905, 4
        %v1907 = vadd.f32 %v1905, %v1906
        %v1908 = vrot.slane %v1907, 2
        %v1909 = vadd.f32 %v1907, %v1908
        %v1910 = vrot.slane %v1909, 1
        %v1911 = vadd.f32 %v1909, %v1910
        %v1912 = vrcp.pop %v1911
        %v1913 = vmul.f32 %v1900, %v1912
        %v1914 = vmul.f32 %v1902, %v1912
        %v1916 = vsel %vm1167, %v1913, 0
        %v1919 = vsel %vm1167, %v1914, 0
        %1921 = vmatpush.msra.mxu0 0.0
        %1922 = vmatpush.msra.mxu0 0.0
        %1923 = vmatpush.msra.mxu0 0.0
        %1924 = vmatpush.msra.mxu0 0.0
        %1925 = vmatpush.msra.mxu0 0.0
        %1926 = vmatpush.msra.mxu0 0.0
        %1927 = vmatpush.msra.mxu0 0.0
        %1928 = vmatpush.msra.mxu0 0.0
        %1929 = vmatpush.msra.mxu0 0.0
        %1930 = vmatpush.msra.mxu0 0.0
        %1931 = vmatpush.msra.mxu0 0.0
        %1932 = vmatpush.msra.mxu0 0.0
        %1933 = vmatpush.msra.mxu0 0.0
        %1934 = vmatpush.msra.mxu0 0.0
        %1935 = vmatpush.msra.mxu0 0.0
        %1936 = vmatpush.msra.mxu0 %v1204
        %1937 = vmatmul.f32.gmra.mxu0 %v1916
        %v1938 = vpop.f32.mrf.mxu0
        %v1939 = vadd.f32 0.0, %v1938
        %1940 = vmatmul.f32.gmra.mxu0 %v1919
        %v1941 = vpop.f32.mrf.mxu0
        %v1942 = vadd.f32 0.0, %v1941
        %1943 = vdwg.mxu0
        %v1944 = vmul.f32 %v1939, %v1854
        %v1945 = vmul.f32 %v1942, %v1859
        %v1946 = vsel %vm1231, %v1945, 0.0
        %v1947 = vadd.f32 %v1944, %v1946
        %v1948 = vrot.slane %v1947, 4
        %v1949 = vadd.f32 %v1947, %v1948
        %v1950 = vrot.slane %v1949, 2
        %v1951 = vadd.f32 %v1949, %v1950
        %v1952 = vrot.slane %v1951, 1
        %v1953 = vadd.f32 %v1951, %v1952
        %s1954 = scalar_lea.vmem %s13, 256
        %v1955 = vld [vmem:[%s1954] sm:$0xff]
        %v1956 = vld [vmem:[%s1954 + $0x8] sm:$0xff]
        %v1957 = vld [vmem:[%s1954 + $0x10] sm:$0xff]
        %v1958 = vld [vmem:[%s1954 + $0x18] sm:$0xff]
        %v1959 = vld [vmem:[%s1954 + $0x20] sm:$0xff]
        %v1960 = vld [vmem:[%s1954 + $0x28] sm:$0xff]
        %v1961 = vld [vmem:[%s1954 + $0x30] sm:$0xff]
        %v1962 = vld [vmem:[%s1954 + $0x38] sm:$0xff]
        %v1963 = vld [vmem:[%s1954 + $0x40] sm:$0xff]
        %v1964 = vld [vmem:[%s1954 + $0x48] sm:$0xff]
        %v1965 = vld [vmem:[%s1954 + $0x50] sm:$0xff]
        %v1966 = vld [vmem:[%s1954 + $0x58] sm:$0xff]
        %v1967 = vld [vmem:[%s1954 + $0x60] sm:$0xff]
        %v1968 = vld [vmem:[%s1954 + $0x68] sm:$0xff]
        %v1969 = vld [vmem:[%s1954 + $0x70] sm:$0xff]
        %v1970 = vld [vmem:[%s1954 + $0x78] sm:$0xff]
        %s1971 = scalar_lea.vmem [#allocation8], 2
        %v1972 = vld [vmem:[%s1971] sm:$0x1]
        %1973 = vmatpush.msra.mxu0 %v1970
        %1974 = vmatpush.msra.mxu0 %v1969
        %1975 = vmatpush.msra.mxu0 %v1968
        %1976 = vmatpush.msra.mxu0 %v1967
        %1977 = vmatpush.msra.mxu0 %v1966
        %1978 = vmatpush.msra.mxu0 %v1965
        %1979 = vmatpush.msra.mxu0 %v1964
        %1980 = vmatpush.msra.mxu0 %v1963
        %1981 = vmatpush.msra.mxu0 %v1962
        %1982 = vmatpush.msra.mxu0 %v1961
        %1983 = vmatpush.msra.mxu0 %v1960
        %1984 = vmatpush.msra.mxu0 %v1959
        %1985 = vmatpush.msra.mxu0 %v1958
        %1986 = vmatpush.msra.mxu0 %v1957
        %1987 = vmatpush.msra.mxu0 %v1956
        %1988 = vmatpush.msra.mxu0 %v1955
        %1989 = vmatmul.f32.gmra.mxu0 %v1953
        %v1990 = vpop.f32.mrf.mxu0
        %v1991 = vadd.f32 %v1972, %v1990
        %1992 = vdwg.mxu0
        %v1993 = vadd.f32 %v996, %v1991
        %s1994 = scalar_lea.vmem %s6, 3
        %v1995 = vld [vmem:[%s1994] sm:$0x1]
        %s1996 = scalar_lea.vmem [#allocation2], 3
        %v1997 = vld [vmem:[%s1996] sm:$0x1]
        %v1998 = vsel %vm1748, %v997, 0.0
        %1999 = vadd.xlane.f32.xlu0 %v1998
        %v2000 = vpop.xlane.xlu0 %1999
        %v2001 = vmul.f32 %v2000, %v1017
        %v2002 = vsub.f32 %v997, %v2001
        %v2003 = vmul.f32 %v2002, %v2002
        %v2004 = vsel %vm1748, %v2003, 0.0
        %2005 = vadd.xlane.f32.xlu0 %v2004
        %v2006 = vpop.xlane.xlu0 %2005
        %v2007 = vmul.f32 %v2006, %v1017
        %v2008 = vadd.f32 %v2007, 1e-05
        %v2009 = vrsqrt.pop %v2008
        %v2010 = vmul.f32 %v2009, %v2008
        %v2011 = vmul.f32 %v2010, %v2009
        %v2012 = vmul.f32 0.5, %v2011
        %v2013 = vsub.f32 1.5, %v2012
        %v2014 = vmul.f32 %v2009, %v2013
        %vm2015 = vweird.f32 %v2008
        %vm2016 = vweird.f32 %v2009
        %vm2017 = vmor %vm2015, %vm2016
        %v2018 = vsel %vm2017, %v2009, %v2014
        %v2019 = vmul.f32 %v2002, %v2018
        %v2020 = vmul.f32 %v2019, %v1995
        %v2021 = vadd.f32 %v2020, %v1997
        %s2022 = scalar_lea.vmem %s8, 96
        %v2023 = vld [vmem:[%s2022] sm:$0xff]
        %v2024 = vld [vmem:[%s2022 + $0x8] sm:$0xff]
        %v2025 = vld [vmem:[%s2022 + $0x10] sm:$0xff]
        %v2026 = vld [vmem:[%s2022 + $0x18] sm:$0xff]
        %v2028 = vsel %vm1049, %v2021, 0
        %2030 = vmatpush.msra.mxu0 0.0
        %2031 = vmatpush.msra.mxu0 0.0
        %2032 = vmatpush.msra.mxu0 0.0
        %2033 = vmatpush.msra.mxu0 0.0
        %2034 = vmatpush.msra.mxu0 0.0
        %2035 = vmatpush.msra.mxu0 0.0
        %2036 = vmatpush.msra.mxu0 0.0
        %2037 = vmatpush.msra.mxu0 0.0
        %2038 = vmatpush.msra.mxu0 0.0
        %2039 = vmatpush.msra.mxu0 0.0
        %2040 = vmatpush.msra.mxu0 0.0
        %2041 = vmatpush.msra.mxu0 0.0
        %2042 = vmatpush.msra.mxu0 %v2026
        %2043 = vmatpush.msra.mxu0 %v2025
        %2044 = vmatpush.msra.mxu0 %v2024
        %2045 = vmatpush.msra.mxu0 %v2023
        %2046 = vmatmul.f32.gmra.mxu0 %v2028
        %v2047 = vpop.f32.mrf.mxu0
        %v2048 = vadd.f32 0.0, %v2047
        %2049 = vdwg.mxu0
        %v2050 = vperm.slane %v2021, 0
        %v2051 = vsel %vm995, %v2050, %v996
        %s2052 = scalar_lea.vmem [#allocation5], 96
        %v2053 = vld [vmem:[%s2052] sm:$0xff]
        %v2054 = vld [vmem:[%s2052 + $0x8] sm:$0xff]
        %v2055 = vld [vmem:[%s2052 + $0x10] sm:$0xff]
        %v2056 = vld [vmem:[%s2052 + $0x18] sm:$0xff]
        %v2058 = vsel %vm1049, %v2051, 0
        %2060 = vmatpush.msra.mxu0 0.0
        %2061 = vmatpush.msra.mxu0 0.0
        %2062 = vmatpush.msra.mxu0 0.0
        %2063 = vmatpush.msra.mxu0 0.0
        %2064 = vmatpush.msra.mxu0 0.0
        %2065 = vmatpush.msra.mxu0 0.0
        %2066 = vmatpush.msra.mxu0 0.0
        %2067 = vmatpush.msra.mxu0 0.0
        %2068 = vmatpush.msra.mxu0 0.0
        %2069 = vmatpush.msra.mxu0 0.0
        %2070 = vmatpush.msra.mxu0 0.0
        %2071 = vmatpush.msra.mxu0 0.0
        %2072 = vmatpush.msra.mxu0 %v2056
        %2073 = vmatpush.msra.mxu0 %v2055
        %2074 = vmatpush.msra.mxu0 %v2054
        %2075 = vmatpush.msra.mxu0 %v2053
        %2076 = vmatmul.f32.gmra.mxu0 %v2058
        %v2077 = vpop.f32.mrf.mxu0
        %v2078 = vadd.f32 0.0, %v2077
        %2079 = vdwg.mxu0
        %s2080 = scalar_lea.vmem [#allocation7], 96
        %v2081 = vld [vmem:[%s2080] sm:$0xff]
        %v2082 = vld [vmem:[%s2080 + $0x8] sm:$0xff]
        %v2083 = vld [vmem:[%s2080 + $0x10] sm:$0xff]
        %v2084 = vld [vmem:[%s2080 + $0x18] sm:$0xff]
        %2085 = vmatpush.msra.mxu0 0.0
        %2086 = vmatpush.msra.mxu0 0.0
        %2087 = vmatpush.msra.mxu0 0.0
        %2088 = vmatpush.msra.mxu0 0.0
        %2089 = vmatpush.msra.mxu0 0.0
        %2090 = vmatpush.msra.mxu0 0.0
        %2091 = vmatpush.msra.mxu0 0.0
        %2092 = vmatpush.msra.mxu0 0.0
        %2093 = vmatpush.msra.mxu0 0.0
        %2094 = vmatpush.msra.mxu0 0.0
        %2095 = vmatpush.msra.mxu0 0.0
        %2096 = vmatpush.msra.mxu0 0.0
        %2097 = vmatpush.msra.mxu0 %v2084
        %2098 = vmatpush.msra.mxu0 %v2083
        %2099 = vmatpush.msra.mxu0 %v2082
        %2100 = vmatpush.msra.mxu0 %v2081
        %2101 = vmatmul.f32.gmra.mxu0 %v2058
        %v2102 = vpop.f32.mrf.mxu0
        %v2103 = vadd.f32 0.0, %v2102
        %2104 = vdwg.mxu0
        %s2105 = scalar_lea.vmem %s11, 12
        %v2106 = vld [vmem:[%s2105] sm:$0x7]
        %s2107 = scalar_lea.vmem %s12, 12
        %v2108 = vld [vmem:[%s2107] sm:$0x7]
        %v2109 = vperm.slane %v2048, 0
        %v2110 = vmul.f32 %v2078, %v2109
        %v2111 = vmul.f32 %v2106, %v2109
        %2112 = vmatpush.msra.mxu0 %v991
        %2113 = vmatpush.msra.mxu0 %v990
        %2114 = vmatpush.msra.mxu0 %v989
        %2115 = vmatpush.msra.mxu0 %v988
        %2116 = vmatpush.msra.mxu0 %v987
        %2117 = vmatpush.msra.mxu0 %v986
        %2118 = vmatpush.msra.mxu0 %v985
        %2119 = vmatpush.msra.mxu0 %v984
        %2120 = vmatpush.msra.mxu0 %v983
        %2121 = vmatpush.msra.mxu0 %v982
        %2122 = vmatpush.msra.mxu0 %v981
        %2123 = vmatpush.msra.mxu0 %v980
        %2124 = vmatpush.msra.mxu0 %v979
        %2125 = vmatpush.msra.mxu0 %v978
        %2126 = vmatpush.msra.mxu0 %v977
        %2127 = vmatpush.msra.mxu0 %v976
        %2128 = vmatmul.f32.gmra.mxu0 %v2110
        %v2129 = vpop.f32.mrf.mxu0
        %v2130 = vadd.f32 0.0, %v2129
        %2131 = vmatmul.f32.gmra.mxu0 %v2111
        %v2132 = vpop.f32.mrf.mxu0
        %v2133 = vadd.f32 0.0, %v2132
        %2134 = vdwg.mxu0
        %v2135 = vmul.f32 %v2130, 0.17677669
        %v2136 = vmul.f32 %v2133, 0.17677669
        %v2137 = vsel %vm1167, %v2135, -inf
        %v2138 = vsel %vm1169, %v2136, -inf
        %v2139 = vmax.f32 %v2137, %v2138
        %v2140 = vrot.slane %v2139, 4
        %v2141 = vmax.f32 %v2139, %v2140
        %v2142 = vrot.slane %v2141, 2
        %v2143 = vmax.f32 %v2141, %v2142
        %v2144 = vrot.slane %v2143, 1
        %v2145 = vmax.f32 %v2143, %v2144
        %v2146 = vsub.f32 %v2135, %v2145
        %v2147 = vsub.f32 %v2136, %v2145
        %v2148 = vmul.f32 %v2146, 1.442695
        %v2149 = vpow.pop %v2148
        %v2150 = vmul.f32 %v2147, 1.442695
        %v2151 = vpow.pop %v2150
        %v2152 = vsel %vm1167, %v2149, 0.0
        %v2153 = vsel %vm1169, %v2151, 0.0
        %v2154 = vadd.f32 %v2152, %v2153
        %v2155 = vrot.slane %v2154, 4
        %v2156 = vadd.f32 %v2154, %v2155
        %v2157 = vrot.slane %v2156, 2
        %v2158 = vadd.f32 %v2156, %v2157
        %v2159 = vrot.slane %v2158, 1
        %v2160 = vadd.f32 %v2158, %v2159
        %v2161 = vrcp.pop %v2160
        %v2162 = vmul.f32 %v2149, %v2161
        %v2163 = vmul.f32 %v2151, %v2161
        %v2165 = vsel %vm1167, %v2162, 0
        %v2168 = vsel %vm1167, %v2163, 0
        %2170 = vmatpush.msra.mxu0 0.0
        %2171 = vmatpush.msra.mxu0 0.0
        %2172 = vmatpush.msra.mxu0 0.0
        %2173 = vmatpush.msra.mxu0 0.0
        %2174 = vmatpush.msra.mxu0 0.0
        %2175 = vmatpush.msra.mxu0 0.0
        %2176 = vmatpush.msra.mxu0 0.0
        %2177 = vmatpush.msra.mxu0 0.0
        %2178 = vmatpush.msra.mxu0 0.0
        %2179 = vmatpush.msra.mxu0 0.0
        %2180 = vmatpush.msra.mxu0 0.0
        %2181 = vmatpush.msra.mxu0 0.0
        %2182 = vmatpush.msra.mxu0 0.0
        %2183 = vmatpush.msra.mxu0 0.0
        %2184 = vmatpush.msra.mxu0 0.0
        %2185 = vmatpush.msra.mxu0 %v1204
        %2186 = vmatmul.f32.gmra.mxu0 %v2165
        %v2187 = vpop.f32.mrf.mxu0
        %v2188 = vadd.f32 0.0, %v2187
        %2189 = vmatmul.f32.gmra.mxu0 %v2168
        %v2190 = vpop.f32.mrf.mxu0
        %v2191 = vadd.f32 0.0, %v2190
        %2192 = vdwg.mxu0
        %v2193 = vmul.f32 %v2188, %v2103
        %v2194 = vmul.f32 %v2191, %v2108
        %v2195 = vsel %vm1231, %v2194, 0.0
        %v2196 = vadd.f32 %v2193, %v2195
        %v2197 = vrot.slane %v2196, 4
        %v2198 = vadd.f32 %v2196, %v2197
        %v2199 = vrot.slane %v2198, 2
        %v2200 = vadd.f32 %v2198, %v2199
        %v2201 = vrot.slane %v2200, 1
        %v2202 = vadd.f32 %v2200, %v2201
        %s2203 = scalar_lea.vmem %s13, 384
        %v2204 = vld [vmem:[%s2203] sm:$0xff]
        %v2205 = vld [vmem:[%s2203 + $0x8] sm:$0xff]
        %v2206 = vld [vmem:[%s2203 + $0x10] sm:$0xff]
        %v2207 = vld [vmem:[%s2203 + $0x18] sm:$0xff]
        %v2208 = vld [vmem:[%s2203 + $0x20] sm:$0xff]
        %v2209 = vld [vmem:[%s2203 + $0x28] sm:$0xff]
        %v2210 = vld [vmem:[%s2203 + $0x30] sm:$0xff]
        %v2211 = vld [vmem:[%s2203 + $0x38] sm:$0xff]
        %v2212 = vld [vmem:[%s2203 + $0x40] sm:$0xff]
        %v2213 = vld [vmem:[%s2203 + $0x48] sm:$0xff]
        %v2214 = vld [vmem:[%s2203 + $0x50] sm:$0xff]
        %v2215 = vld [vmem:[%s2203 + $0x58] sm:$0xff]
        %v2216 = vld [vmem:[%s2203 + $0x60] sm:$0xff]
        %v2217 = vld [vmem:[%s2203 + $0x68] sm:$0xff]
        %v2218 = vld [vmem:[%s2203 + $0x70] sm:$0xff]
        %v2219 = vld [vmem:[%s2203 + $0x78] sm:$0xff]
        %s2220 = scalar_lea.vmem [#allocation8], 3
        %v2221 = vld [vmem:[%s2220] sm:$0x1]
        %2222 = vmatpush.msra.mxu0 %v2219
        %2223 = vmatpush.msra.mxu0 %v2218
        %2224 = vmatpush.msra.mxu0 %v2217
        %2225 = vmatpush.msra.mxu0 %v2216
        %2226 = vmatpush.msra.mxu0 %v2215
        %2227 = vmatpush.msra.mxu0 %v2214
        %2228 = vmatpush.msra.mxu0 %v2213
        %2229 = vmatpush.msra.mxu0 %v2212
        %2230 = vmatpush.msra.mxu0 %v2211
        %2231 = vmatpush.msra.mxu0 %v2210
        %2232 = vmatpush.msra.mxu0 %v2209
        %2233 = vmatpush.msra.mxu0 %v2208
        %2234 = vmatpush.msra.mxu0 %v2207
        %2235 = vmatpush.msra.mxu0 %v2206
        %2236 = vmatpush.msra.mxu0 %v2205
        %2237 = vmatpush.msra.mxu0 %v2204
        %2238 = vmatmul.f32.gmra.mxu0 %v2202
        %v2239 = vpop.f32.mrf.mxu0
        %v2240 = vadd.f32 %v2221, %v2239
        %2241 = vdwg.mxu0
        %v2242 = vadd.f32 %v997, %v2240
        %2243 = vst.msk [vmem:[%s959] sm:$0x3] %vm1007, %v1743
        %v2244 = vperm.slane %v1375, 0
        %v2245 = vsel %vm995, %v2244, %v996
        %v2246 = vperm.slane %v1375, 1
        %v2247 = vsel %vm995, %v2246, %v997
        %v2248 = vperm.slane %v1993, 0
        %v2249 = vsel %vm995, %v2248, %v996
        %v2250 = vperm.slane %v2242, 0
        %v2251 = vsel %vm995, %v2250, %v997
        %2253 = vrot.lane.b32.xlu0 %v2247, 32
        %v2254 = vpop.permute.xlu0 %2253
        %2257 = vrot.lane.b32.xlu0 %v2249, 64
        %v2258 = vpop.permute.xlu0 %2257
        %2261 = vrot.lane.b32.xlu0 %v2251, 96
        %v2262 = vpop.permute.xlu0 %2261
        %v2264 = vsel %vm1049, %v2245, %v2254
        %vm2265 = vcmask 523264
        %v2266 = vsel %vm2265, %v2264, %v2258
        %vm2267 = vcmask 785408
        %v2268 = vsel %vm2267, %v2266, %v2262
        %v2269 = vld [vmem:[#allocation10] sm:$0x1]
        %v2270 = vld [vmem:[#allocation11] sm:$0x1]
        %2271 = vadd.xlane.f32.xlu0 %v2268
        %v2272 = vpop.xlane.xlu0 %2271
        %v2273 = vrcp.pop 128.0
        %v2274 = vmul.f32 128.0, %v2273
        %v2275 = vsub.f32 1.0, %v2274
        %v2276 = vmul.f32 %v2273, %v2275
        %v2277 = vadd.f32 %v2273, %v2276
        %vm2278 = vweird.f32 %v2273
        %v2279 = vsel %vm2278, %v2273, %v2277
        %v2280 = vmul.f32 %v2272, %v2279
        %v2281 = vsub.f32 %v2268, %v2280
        %v2282 = vmul.f32 %v2281, %v2281
        %2283 = vadd.xlane.f32.xlu0 %v2282
        %v2284 = vpop.xlane.xlu0 %2283
        %v2285 = vmul.f32 %v2284, %v2279
        %v2286 = vadd.f32 %v2285, 1e-05
        %v2287 = vrsqrt.pop %v2286
        %v2288 = vmul.f32 %v2287, %v2286
        %v2289 = vmul.f32 %v2288, %v2287
        %v2290 = vmul.f32 0.5, %v2289
        %v2291 = vsub.f32 1.5, %v2290
        %v2292 = vmul.f32 %v2287, %v2291
        %vm2293 = vweird.f32 %v2286
        %vm2294 = vweird.f32 %v2287
        %vm2295 = vmor %vm2293, %vm2294
        %v2296 = vsel %vm2295, %v2287, %v2292
        %v2297 = vmul.f32 %v2281, %v2296
        %v2299 = vperm.slane %v2269, 0
        %v2301 = vmul.f32 %v2297, %v2299
        %v2303 = vperm.slane %v2270, 0
        %v2305 = vadd.f32 %v2301, %v2303
        %v2306 = vld [vmem:[#allocation13] sm:$0xff]
        %v2307 = vld [vmem:[#allocation13 + $0x8] sm:$0xff]
        %v2308 = vld [vmem:[#allocation13 + $0x10] sm:$0xff]
        %v2309 = vld [vmem:[#allocation13 + $0x18] sm:$0xff]
        %v2310 = vld [vmem:[#allocation13 + $0x20] sm:$0xff]
        %v2311 = vld [vmem:[#allocation13 + $0x28] sm:$0xff]
        %v2312 = vld [vmem:[#allocation13 + $0x30] sm:$0xff]
        %v2313 = vld [vmem:[#allocation13 + $0x38] sm:$0xff]
        %v2314 = vld [vmem:[#allocation13 + $0x40] sm:$0xff]
        %v2315 = vld [vmem:[#allocation13 + $0x48] sm:$0xff]
        %v2316 = vld [vmem:[#allocation13 + $0x50] sm:$0xff]
        %v2317 = vld [vmem:[#allocation13 + $0x58] sm:$0xff]
        %v2318 = vld [vmem:[#allocation13 + $0x60] sm:$0xff]
        %v2319 = vld [vmem:[#allocation13 + $0x68] sm:$0xff]
        %v2320 = vld [vmem:[#allocation13 + $0x70] sm:$0xff]
        %v2321 = vld [vmem:[#allocation13 + $0x78] sm:$0xff]
        %v2322 = vld [vmem:[%s18] sm:$0x1]
        %v2324 = vperm.slane %v2322, 0
        %2326 = vmatpush.msra.mxu0 %v2321
        %2327 = vmatpush.msra.mxu0 %v2320
        %2328 = vmatpush.msra.mxu0 %v2319
        %2329 = vmatpush.msra.mxu0 %v2318
        %2330 = vmatpush.msra.mxu0 %v2317
        %2331 = vmatpush.msra.mxu0 %v2316
        %2332 = vmatpush.msra.mxu0 %v2315
        %2333 = vmatpush.msra.mxu0 %v2314
        %2334 = vmatpush.msra.mxu0 %v2313
        %2335 = vmatpush.msra.mxu0 %v2312
        %2336 = vmatpush.msra.mxu0 %v2311
        %2337 = vmatpush.msra.mxu0 %v2310
        %2338 = vmatpush.msra.mxu0 %v2309
        %2339 = vmatpush.msra.mxu0 %v2308
        %2340 = vmatpush.msra.mxu0 %v2307
        %2341 = vmatpush.msra.mxu0 %v2306
        %2342 = vmatmul.f32.gmra.mxu0 %v2305
        %v2343 = vpop.f32.mrf.mxu0
        %v2344 = vadd.f32 %v2324, %v2343
        %2345 = vdwg.mxu0
        %v2346 = vadd.f32 %v2344, %v2268
        %v2347 = vld [vmem:[%s19] sm:$0x1]
        %v2348 = vld [vmem:[%s20] sm:$0x1]
        %2349 = vadd.xlane.f32.xlu0 %v2346
        %v2350 = vpop.xlane.xlu0 %2349
        %v2351 = vmul.f32 %v2350, %v2279
        %v2352 = vsub.f32 %v2346, %v2351
        %v2353 = vmul.f32 %v2352, %v2352
        %2354 = vadd.xlane.f32.xlu0 %v2353
        %v2355 = vpop.xlane.xlu0 %2354
        %v2356 = vmul.f32 %v2355, %v2279
        %v2357 = vadd.f32 %v2356, 1e-05
        %v2358 = vrsqrt.pop %v2357
        %v2359 = vmul.f32 %v2358, %v2357
        %v2360 = vmul.f32 %v2359, %v2358
        %v2361 = vmul.f32 0.5, %v2360
        %v2362 = vsub.f32 1.5, %v2361
        %v2363 = vmul.f32 %v2358, %v2362
        %vm2364 = vweird.f32 %v2357
        %vm2365 = vweird.f32 %v2358
        %vm2366 = vmor %vm2364, %vm2365
        %v2367 = vsel %vm2366, %v2358, %v2363
        %v2368 = vmul.f32 %v2352, %v2367
        %v2370 = vperm.slane %v2347, 0
        %v2372 = vmul.f32 %v2368, %v2370
        %v2374 = vperm.slane %v2348, 0
        %v2376 = vadd.f32 %v2372, %v2374
        %v2377 = vld [vmem:[%s21] sm:$0xff]
        %v2378 = vld [vmem:[%s21 + $0x8] sm:$0xff]
        %v2379 = vld [vmem:[%s21 + $0x10] sm:$0xff]
        %v2380 = vld [vmem:[%s21 + $0x18] sm:$0xff]
        %v2381 = vld [vmem:[%s21 + $0x20] sm:$0xff]
        %v2382 = vld [vmem:[%s21 + $0x28] sm:$0xff]
        %v2383 = vld [vmem:[%s21 + $0x30] sm:$0xff]
        %v2384 = vld [vmem:[%s21 + $0x38] sm:$0xff]
        %v2385 = vld [vmem:[%s21 + $0x40] sm:$0xff]
        %v2386 = vld [vmem:[%s21 + $0x48] sm:$0xff]
        %v2387 = vld [vmem:[%s21 + $0x50] sm:$0xff]
        %v2388 = vld [vmem:[%s21 + $0x58] sm:$0xff]
        %v2389 = vld [vmem:[%s21 + $0x60] sm:$0xff]
        %v2390 = vld [vmem:[%s21 + $0x68] sm:$0xff]
        %v2391 = vld [vmem:[%s21 + $0x70] sm:$0xff]
        %v2392 = vld [vmem:[%s21 + $0x78] sm:$0xff]
        %v2393 = vld [vmem:[%s21 + $0x80] sm:$0xff]
        %v2394 = vld [vmem:[%s21 + $0x88] sm:$0xff]
        %v2395 = vld [vmem:[%s21 + $0x90] sm:$0xff]
        %v2396 = vld [vmem:[%s21 + $0x98] sm:$0xff]
        %v2397 = vld [vmem:[%s21 + $0xa0] sm:$0xff]
        %v2398 = vld [vmem:[%s21 + $0xa8] sm:$0xff]
        %v2399 = vld [vmem:[%s21 + $0xb0] sm:$0xff]
        %v2400 = vld [vmem:[%s21 + $0xb8] sm:$0xff]
        %v2401 = vld [vmem:[%s21 + $0xc0] sm:$0xff]
        %v2402 = vld [vmem:[%s21 + $0xc8] sm:$0xff]
        %v2403 = vld [vmem:[%s21 + $0xd0] sm:$0xff]
        %v2404 = vld [vmem:[%s21 + $0xd8] sm:$0xff]
        %v2405 = vld [vmem:[%s21 + $0xe0] sm:$0xff]
        %v2406 = vld [vmem:[%s21 + $0xe8] sm:$0xff]
        %v2407 = vld [vmem:[%s21 + $0xf0] sm:$0xff]
        %v2408 = vld [vmem:[%s21 + $0xf8] sm:$0xff]
        %v2409 = vld [vmem:[%s22] sm:$0x3]
        %v2411 = vperm.slane %v2409, 0
        %v2412 = vperm.slane %v2409, 1
        %2415 = vmatpush.msra.mxu0 %v2407
        %2416 = vmatpush.msra.mxu0 %v2405
        %2417 = vmatpush.msra.mxu0 %v2403
        %2418 = vmatpush.msra.mxu0 %v2401
        %2419 = vmatpush.msra.mxu0 %v2399
        %2420 = vmatpush.msra.mxu0 %v2397
        %2421 = vmatpush.msra.mxu0 %v2395
        %2422 = vmatpush.msra.mxu0 %v2393
        %2423 = vmatpush.msra.mxu0 %v2391
        %2424 = vmatpush.msra.mxu0 %v2389
        %2425 = vmatpush.msra.mxu0 %v2387
        %2426 = vmatpush.msra.mxu0 %v2385
        %2427 = vmatpush.msra.mxu0 %v2383
        %2428 = vmatpush.msra.mxu0 %v2381
        %2429 = vmatpush.msra.mxu0 %v2379
        %2430 = vmatpush.msra.mxu0 %v2377
        %2431 = vmatmul.f32.gmra.mxu0 %v2376
        %v2432 = vpop.f32.mrf.mxu0
        %v2433 = vadd.f32 %v2411, %v2432
        %2434 = vdwg.mxu0
        %2435 = vmatpush.msra.mxu0 %v2408
        %2436 = vmatpush.msra.mxu0 %v2406
        %2437 = vmatpush.msra.mxu0 %v2404
        %2438 = vmatpush.msra.mxu0 %v2402
        %2439 = vmatpush.msra.mxu0 %v2400
        %2440 = vmatpush.msra.mxu0 %v2398
        %2441 = vmatpush.msra.mxu0 %v2396
        %2442 = vmatpush.msra.mxu0 %v2394
        %2443 = vmatpush.msra.mxu0 %v2392
        %2444 = vmatpush.msra.mxu0 %v2390
        %2445 = vmatpush.msra.mxu0 %v2388
        %2446 = vmatpush.msra.mxu0 %v2386
        %2447 = vmatpush.msra.mxu0 %v2384
        %2448 = vmatpush.msra.mxu0 %v2382
        %2449 = vmatpush.msra.mxu0 %v2380
        %2450 = vmatpush.msra.mxu0 %v2378
        %2451 = vmatmul.f32.gmra.mxu0 %v2376
        %v2452 = vpop.f32.mrf.mxu0
        %v2453 = vadd.f32 %v2412, %v2452
        %2454 = vdwg.mxu0
        %v2455 = vmul.f32 %v2433, %v2433
        %v2456 = vmul.f32 %v2453, %v2453
        %v2457 = vmul.f32 %v2433, %v2455
        %v2458 = vmul.f32 %v2453, %v2456
        %v2459 = vmul.f32 %v2457, 0.044715
        %v2460 = vmul.f32 %v2458, 0.044715
        %v2461 = vadd.f32 %v2433, %v2459
        %v2462 = vadd.f32 %v2453, %v2460
        %v2463 = vmul.f32 %v2461, 0.7978846
        %v2464 = vmul.f32 %v2462, 0.7978846
        %v2465 = vtanh.pop %v2463
        %v2466 = vtanh.pop %v2464
        %v2467 = vadd.f32 %v2465, 1.0
        %v2468 = vadd.f32 %v2466, 1.0
        %v2469 = vmul.f32 %v2467, 0.5
        %v2470 = vmul.f32 %v2468, 0.5
        %v2471 = vmul.f32 %v2433, %v2469
        %v2472 = vmul.f32 %v2453, %v2470
        %v2473 = vld [vmem:[%s23] sm:$0xff]
        %v2474 = vld [vmem:[%s23 + $0x8] sm:$0xff]
        %v2475 = vld [vmem:[%s23 + $0x10] sm:$0xff]
        %v2476 = vld [vmem:[%s23 + $0x18] sm:$0xff]
        %v2477 = vld [vmem:[%s23 + $0x20] sm:$0xff]
        %v2478 = vld [vmem:[%s23 + $0x28] sm:$0xff]
        %v2479 = vld [vmem:[%s23 + $0x30] sm:$0xff]
        %v2480 = vld [vmem:[%s23 + $0x38] sm:$0xff]
        %v2481 = vld [vmem:[%s23 + $0x40] sm:$0xff]
        %v2482 = vld [vmem:[%s23 + $0x48] sm:$0xff]
        %v2483 = vld [vmem:[%s23 + $0x50] sm:$0xff]
        %v2484 = vld [vmem:[%s23 + $0x58] sm:$0xff]
        %v2485 = vld [vmem:[%s23 + $0x60] sm:$0xff]
        %v2486 = vld [vmem:[%s23 + $0x68] sm:$0xff]
        %v2487 = vld [vmem:[%s23 + $0x70] sm:$0xff]
        %v2488 = vld [vmem:[%s23 + $0x78] sm:$0xff]
        %v2489 = vld [vmem:[%s23 + $0x80] sm:$0xff]
        %v2490 = vld [vmem:[%s23 + $0x88] sm:$0xff]
        %v2491 = vld [vmem:[%s23 + $0x90] sm:$0xff]
        %v2492 = vld [vmem:[%s23 + $0x98] sm:$0xff]
        %v2493 = vld [vmem:[%s23 + $0xa0] sm:$0xff]
        %v2494 = vld [vmem:[%s23 + $0xa8] sm:$0xff]
        %v2495 = vld [vmem:[%s23 + $0xb0] sm:$0xff]
        %v2496 = vld [vmem:[%s23 + $0xb8] sm:$0xff]
        %v2497 = vld [vmem:[%s23 + $0xc0] sm:$0xff]
        %v2498 = vld [vmem:[%s23 + $0xc8] sm:$0xff]
        %v2499 = vld [vmem:[%s23 + $0xd0] sm:$0xff]
        %v2500 = vld [vmem:[%s23 + $0xd8] sm:$0xff]
        %v2501 = vld [vmem:[%s23 + $0xe0] sm:$0xff]
        %v2502 = vld [vmem:[%s23 + $0xe8] sm:$0xff]
        %v2503 = vld [vmem:[%s23 + $0xf0] sm:$0xff]
        %v2504 = vld [vmem:[%s23 + $0xf8] sm:$0xff]
        %v2505 = vld [vmem:[#allocation14] sm:$0x1]
        %v2507 = vperm.slane %v2505, 0
        %2509 = vmatpush.msra.mxu0 %v2488
        %2510 = vmatpush.msra.mxu0 %v2487
        %2511 = vmatpush.msra.mxu0 %v2486
        %2512 = vmatpush.msra.mxu0 %v2485
        %2513 = vmatpush.msra.mxu0 %v2484
        %2514 = vmatpush.msra.mxu0 %v2483
        %2515 = vmatpush.msra.mxu0 %v2482
        %2516 = vmatpush.msra.mxu0 %v2481
        %2517 = vmatpush.msra.mxu0 %v2480
        %2518 = vmatpush.msra.mxu0 %v2479
        %2519 = vmatpush.msra.mxu0 %v2478
        %2520 = vmatpush.msra.mxu0 %v2477
        %2521 = vmatpush.msra.mxu0 %v2476
        %2522 = vmatpush.msra.mxu0 %v2475
        %2523 = vmatpush.msra.mxu0 %v2474
        %2524 = vmatpush.msra.mxu0 %v2473
        %2525 = vmatmul.f32.gmra.mxu0 %v2471
        %v2526 = vpop.f32.mrf.mxu0
        %v2527 = vadd.f32 %v2507, %v2526
        %2528 = vdwg.mxu0
        %2529 = vmatpush.msra.mxu0 %v2504
        %2530 = vmatpush.msra.mxu0 %v2503
        %2531 = vmatpush.msra.mxu0 %v2502
        %2532 = vmatpush.msra.mxu0 %v2501
        %2533 = vmatpush.msra.mxu0 %v2500
        %2534 = vmatpush.msra.mxu0 %v2499
        %2535 = vmatpush.msra.mxu0 %v2498
        %2536 = vmatpush.msra.mxu0 %v2497
        %2537 = vmatpush.msra.mxu0 %v2496
        %2538 = vmatpush.msra.mxu0 %v2495
        %2539 = vmatpush.msra.mxu0 %v2494
        %2540 = vmatpush.msra.mxu0 %v2493
        %2541 = vmatpush.msra.mxu0 %v2492
        %2542 = vmatpush.msra.mxu0 %v2491
        %2543 = vmatpush.msra.mxu0 %v2490
        %2544 = vmatpush.msra.mxu0 %v2489
        %2545 = vmatmul.f32.gmra.mxu0 %v2472
        %v2546 = vpop.f32.mrf.mxu0
        %v2547 = vadd.f32 %v2527, %v2546
        %2548 = vdwg.mxu0
        %v2549 = vadd.f32 %v2547, %v2346
        %2550 = vst [vmem:[%s952] sm:$0xff] %v2549
        %s2551 = sand.u32 %s602, 1
        %s2552 = scalar_lea.sflag [#allocation4], %s2551
        %s2553 = sand.u32 %s602, 1
        %s2554 = smul.addr %s2553, 8
        %s2555 = scalar_lea.vmem [#allocation16], %s2554
        %s2556 = sand.u32 %s628, 1
        %s2557 = scalar_lea.sflag [#allocation18], %s2556
        %s2558 = sand.u32 %s628, 1
        %s2559 = smul.addr %s2558, 2
        %s2560 = scalar_lea.vmem [#allocation17], %s2559
        // Predicated region
        $region153: #{tpu_custom_call.1} parent=119 // pred_check
          %p2561 = pneg %p612
        $region154: #{tpu_custom_call.1} parent=119 // pred_check_branch
          %2563 = sbr.rel (%p2561) target = $region156
        $region155: #{tpu_custom_call.1} parent=119 // pred_region
          %2565 = vsyncadd %s2552, 0
          %s2566 = smul.addr %s49, 8
          %s2567 = scalar_lea.hbm %s25, %s2566
          %s2569 = sshll.u32 %s2555, 4
          %s2570 = int_to_ptr.vmem [resolvable:$true] %s2569
          %s2571 = sshll.u32 %s2567, 4
          %s2572 = int_to_ptr.hbm [resolvable:$true] %s2571
          %2574 = dma.vmem_to_hbm [thread:$0]  %s2570, 128, %s2572, %s2552
        $region156: #{tpu_custom_call.1} parent=119 // pred_fallthru
          _
        // Predicated region
        $region157: #{tpu_custom_call.1} parent=119 // pred_check
          %p2575 = pneg %p638
        $region158: #{tpu_custom_call.1} parent=119 // pred_check_branch
          %2577 = sbr.rel (%p2575) target = $region160
        $region159: #{tpu_custom_call.1} parent=119 // pred_region
          %2579 = vsyncadd %s2557, 0
          %s2580 = smul.addr %s49, 2
          %s2581 = scalar_lea.hbm %s26, %s2580
          %s2583 = sshll.u32 %s2560, 4
          %s2584 = int_to_ptr.vmem [resolvable:$true] %s2583
          %s2585 = sshll.u32 %s2581, 4
          %s2586 = int_to_ptr.hbm [resolvable:$true] %s2585
          %2588 = dma.vmem_to_hbm [thread:$0]  %s2584, 32, %s2586, %s2557
        $region160: #{tpu_custom_call.1} parent=119 // pred_fallthru
          _
      $region120: #{tpu_custom_call.1} parent=5 // pred_fallthru
        _
      %p2589 = scmp.le.s32.totalorder 2, %s44
      // Predicated region
      $region161: #{tpu_custom_call.1} parent=5 // pred_check
        %p2590 = pneg %p2589
      $region162: #{tpu_custom_call.1} parent=5 // pred_check_branch
        %2592 = sbr.rel (%p2590) target = $region164
      $region163: #{tpu_custom_call.1} parent=5 // pred_region
        %s2593 = ssub.s32 %s44, 2
        // Predicated region
        $region165: #{tpu_custom_call.1} parent=163 // pred_check
          %p2594 = pneg %p618
        $region166: #{tpu_custom_call.1} parent=163 // pred_check_branch
          %2596 = sbr.rel (%p2594) target = $region168
        $region167: #{tpu_custom_call.1} parent=163 // pred_region
          %s2597 = sand.u32 %s603, 1
          %s2598 = scalar_lea.sflag [#allocation4], %s2597
          %s2599 = sand.u32 %s603, 1
          %s2600 = smul.addr %s2599, 8
          %s2601 = scalar_lea.vmem [#allocation16], %s2600
          %2603 = dma.done %s2598, 128
        $region168: #{tpu_custom_call.1} parent=163 // pred_fallthru
          _
        // Predicated region
        $region169: #{tpu_custom_call.1} parent=163 // pred_check
          %p2604 = pneg %p644
        $region170: #{tpu_custom_call.1} parent=163 // pred_check_branch
          %2606 = sbr.rel (%p2604) target = $region172
        $region171: #{tpu_custom_call.1} parent=163 // pred_region
          %s2607 = sand.u32 %s629, 1
          %s2608 = scalar_lea.sflag [#allocation18], %s2607
          %s2609 = sand.u32 %s629, 1
          %s2610 = smul.addr %s2609, 2
          %s2611 = scalar_lea.vmem [#allocation17], %s2610
          %2613 = dma.done %s2608, 32
        $region172: #{tpu_custom_call.1} parent=163 // pred_fallthru
          _
      $region164: #{tpu_custom_call.1} parent=5 // pred_fallthru
        _
    $region6: #{tpu_custom_call.1} parent=1 // loop_footer
      %s48 = sadd.s32 1, %s44
    $region7: #{tpu_custom_call.1} parent=1 // loop_footer_branch
      %43 = sbr.rel target = $region3
    $region8: #{tpu_custom_call.1} parent=1 // loop_exit
      _
    %2614 = vsyncpa [#allocation3], 1
    %s2615 = scalar_lea.sflag [#allocation3], 1
    %2616 = vsyncpa %s2615, 1
    %2617 = vsyncpa [#allocation6], 1
    %2618 = vsyncpa [#allocation9], 1
    %2619 = vsyncpa [#allocation12], 1
    %2620 = vsyncpa [#allocation15], 1
    %2621 = vsyncpa [#allocation4], 1
    %s2622 = scalar_lea.sflag [#allocation4], 1
    %2623 = vsyncpa %s2622, 1
    %2624 = vsyncpa [#allocation18], 1
    %s2625 = scalar_lea.sflag [#allocation18], 1
    %2626 = vsyncpa %s2625, 1

</llo_original>
